<compile_context>
chip_gen: v7x
topology: tpu7x:2x2x1
jax: 0.10.0
libtpu: 0.0.40
codegen_flags: <defaults>
</compile_context>

<pallas_src>
import functools

import jax
import jax.numpy as jnp
import numpy as np
from jax import lax
from jax.experimental import pallas as pl
from jax.experimental.pallas import tpu as pltpu


# ---------------------------------------------------------------------------
# One-time probe: determine pltpu.roll's shift convention so the conv-tap
# staging is correct regardless of rotate direction.  Returns s such that
#   pltpu.roll(v, (s * d) % n, axis=-1)[..., j] == v[..., (j + d) % n]
# or 0 if the probe fails (-> concatenate-based fallback rotation).
# ---------------------------------------------------------------------------
@functools.lru_cache(maxsize=None)
def _roll_shift_sign():
    try:
        def probe(x_ref, o_ref):
            o_ref[...] = pltpu.roll(x_ref[...], 1, axis=1)

        x = jnp.tile(jnp.arange(128, dtype=jnp.float32)[None, :], (8, 1))
        out = pl.pallas_call(
            probe, out_shape=jax.ShapeDtypeStruct((8, 128), jnp.float32))(x)
        v = float(jax.block_until_ready(out)[0, 0])
        if v == 127.0:      # np.roll convention: out[j] = in[j - shift]
            return -1
        if v == 1.0:        # opposite convention: out[j] = in[j + shift]
            return 1
    except Exception:
        pass
    return 0


def _ema_kernel(x_ref, masks_ref, pr_ref, pc_ref, br_ref, bc_ref,
                w1_ref, b1_ref, w3_ref, b3_ref, gamma_ref, beta_ref,
                gsel_ref, gselT_ref, o_ref, stk_ref,
                *, h, w, C, Bt, roll_sign):
    f32 = jnp.float32
    S = h * w
    BC = Bt * C

    x = x_ref[...]                                                  # (BC, S)

    def rot_lanes(val, d):
        # out[:, j] = val[:, (j + d) % S]
        if roll_sign == 0:
            dd = d % S
            return jnp.concatenate([val[:, dd:], val[:, :dd]], axis=1)
        return pltpu.roll(val, (roll_sign * d) % S, axis=1)

    # ---- directional average pools, batched over all (group, channel) rows
    x_h = jnp.dot(x, pr_ref[...], preferred_element_type=f32) * (1.0 / w)   # (BC, h)
    x_w = jnp.dot(x, pc_ref[...], preferred_element_type=f32) * (1.0 / h)   # (BC, w)

    # ---- 1x1 conv (block-diagonal weight over the Bt groups); two small
    #      matmuls, no concatenate/slice relayout
    w1 = w1_ref[...]
    b1 = b1_ref[...]
    g_h = jax.nn.sigmoid(jnp.dot(w1, x_h, preferred_element_type=f32) + b1)  # (BC, h)
    g_w = jax.nn.sigmoid(jnp.dot(w1, x_w, preferred_element_type=f32) + b1)  # (BC, w)

    # ---- gate broadcast back to flat spatial lanes + modulation
    gate = (jnp.dot(g_h, br_ref[...], preferred_element_type=f32)
            * jnp.dot(g_w, bc_ref[...], preferred_element_type=f32))         # (BC, S)
    mod = x * gate

    # ---- GroupNorm (num_groups == channels): per-row stats over the S lanes
    mu = jnp.mean(mod, axis=1, keepdims=True)
    var = jnp.mean(jnp.square(mod - mu), axis=1, keepdims=True)
    x1 = (mod - mu) * lax.rsqrt(var + 1e-5) * gamma_ref[...] + beta_ref[...]  # (BC, S)

    # ---- 3x3 conv, padding=1: roll + edge-mask staging (full-width unmasked
    #      stores), then ONE fused matmul covering every group in the block.
    midx = 0
    for dy in (-1, 0, 1):
        for dx in (-1, 0, 1):
            k = (dy + 1) * 3 + (dx + 1)
            d = dy * w + dx
            if d == 0:
                stk_ref[k * BC:(k + 1) * BC, :] = x
            else:
                stk_ref[k * BC:(k + 1) * BC, :] = (
                    rot_lanes(x, d) * masks_ref[midx:midx + 1, :])
                midx += 1
    x2 = (jnp.dot(w3_ref[...], stk_ref[...], preferred_element_type=f32)
          + b3_ref[...])                                                      # (BC, S)

    # ---- per-group channel softmax of the global average pool, kept as
    #      (1, BC) lane rows so the cross weighting stays in plain matmuls
    ones_S = jnp.ones((1, S), f32)
    gsel = gsel_ref[...]                  # (Bt, BC): 1 where column is in that group
    gselT = gselT_ref[...]                # (BC, Bt)

    def chan_softmax(feat):
        m = lax.dot_general(ones_S, feat, (((1,), (1,)), ((), ())),
                            preferred_element_type=f32) * (1.0 / S)          # (1, BC)
        m = m - jnp.max(m, axis=1, keepdims=True)   # same const per group: softmax-invariant
        e = jnp.exp(m)
        gs = jnp.dot(e, gselT, preferred_element_type=f32)                   # (1, Bt)
        denom = jnp.dot(gs, gsel, preferred_element_type=f32)                # (1, BC)
        return e * pl.reciprocal(denom)                                      # (1, BC)

    x11 = chan_softmax(x1)
    x21 = chan_softmax(x2)

    # weights[g, s] = sum_{c in group g} (x11[c] * x2[c, s] + x21[c] * x1[c, s])
    m1 = jnp.broadcast_to(x11, (Bt, BC)) * gsel                               # (Bt, BC)
    m2 = jnp.broadcast_to(x21, (Bt, BC)) * gsel
    wg = (jnp.dot(m1, x2, preferred_element_type=f32)
          + jnp.dot(m2, x1, preferred_element_type=f32))                      # (Bt, S)
    wfull = jnp.dot(gselT, wg, preferred_element_type=f32)                    # (BC, S)

    o_ref[...] = x * jax.nn.sigmoid(wfull)


def _tensorcores_per_device():
    """Best-effort count of TensorCores sharing one Pallas grid."""
    try:
        dev = jax.devices()[0]
        n = getattr(dev, "num_cores", None)
        if isinstance(n, int) and n >= 1:
            return n
        kind = str(getattr(dev, "device_kind", "")).lower()
        if any(t in kind for t in ("v7", "tpu7", "v4", "v5p")):
            return 2
    except Exception:
        pass
    return 1


def _choose_block_groups(B, C, S, n_cores):
    """Groups-per-block Bt (divisor of B), generation-aware:
    dual-TC chips prefer an even grid >= 2 under a 64 MiB-aware budget;
    single-TC chips take the largest block that fits (grid may be 1)."""
    bpe = 4

    def vmem_bytes(bt):
        blk = bt * C * S * bpe
        return 2 * 2 * blk + 9 * bt * C * S * bpe   # dbl-buffered in+out + conv scratch

    budget = (8 if n_cores >= 2 else 16) * 1024 * 1024
    divs = [d for d in range(1, B + 1) if B % d == 0]
    legal = [d for d in divs if (d * C) % 8 == 0 or d == B]   # sublane tiling rule
    fits = [d for d in legal if vmem_bytes(d) <= budget] or [min(legal)]
    if n_cores >= 2:
        even = [d for d in fits if (B // d) % 2 == 0]
        if even:
            return max(even)
        ge2 = [d for d in fits if (B // d) >= 2]
        if ge2:
            return max(ge2)
    return max(fits)


def ema_forward(x, params, groups, block_groups=None):
    b, c, h, w = x.shape
    assert c % groups == 0 and (c // groups) > 0
    C = c // groups
    B = b * groups
    S = h * w
    w1, b1, w3, b3, gamma, beta = params

    n_cores = _tensorcores_per_device()
    Bt = _choose_block_groups(B, C, S, n_cores) if block_groups is None else block_groups
    assert B % Bt == 0
    BC = Bt * C
    grid = (B // Bt,)

    f32 = jnp.float32
    eye_bt = jnp.eye(Bt, dtype=f32)

    # Block-diagonal (per-group shared) weights, batched over the Bt groups.
    w1b = jnp.kron(eye_bt, w1.astype(f32))                               # (BC, BC)
    w3b = jnp.concatenate(
        [jnp.kron(eye_bt, w3[k].astype(f32)) for k in range(9)], axis=1)  # (BC, 9*BC)
    b1b = jnp.tile(b1.astype(f32), (Bt, 1))                              # (BC, 1)
    b3b = jnp.tile(b3.astype(f32), (Bt, 1))
    gammab = jnp.tile(gamma.astype(f32), (Bt, 1))
    betab = jnp.tile(beta.astype(f32), (Bt, 1))

    # Grid-invariant one-hot pool / broadcast matrices and conv edge masks.
    s_idx = jnp.arange(S, dtype=jnp.int32)
    row_id, col_id = s_idx // w, s_idx % w
    pool_r = (row_id[:, None] == jnp.arange(h, dtype=jnp.int32)[None, :]).astype(f32)  # (S, h)
    pool_c = (col_id[:, None] == jnp.arange(w, dtype=jnp.int32)[None, :]).astype(f32)  # (S, w)
    bcast_r = pool_r.T                                                   # (h, S)
    bcast_c = pool_c.T                                                   # (w, S)
    mask_rows = []
    for dy in (-1, 0, 1):
        for dx in (-1, 0, 1):
            if dy == 0 and dx == 0:
                continue
            mask_rows.append(((row_id + dy >= 0) & (row_id + dy < h) &
                              (col_id + dx >= 0) & (col_id + dx < w)).astype(f32))
    masks8 = jnp.stack(mask_rows, axis=0)                                # (8, S)

    gsel = jnp.kron(eye_bt, jnp.ones((1, C), f32))                       # (Bt, BC)
    gselT = jnp.kron(eye_bt, jnp.ones((C, 1), f32))                      # (BC, Bt)

    gx = x.reshape(B * C, S).astype(f32)                                 # lane-dense spatial

    def const(shape):
        return pl.BlockSpec(shape, lambda i, _s=shape: (0,) * len(_s))

    kernel = functools.partial(_ema_kernel, h=h, w=w, C=C, Bt=Bt,
                               roll_sign=_roll_shift_sign())
    out = pl.pallas_call(
        kernel,
        out_shape=jax.ShapeDtypeStruct((B * C, S), f32),
        grid=grid,
        in_specs=[
            pl.BlockSpec((BC, S), lambda i: (i, 0)),   # x block
            const((8, S)),          # edge masks
            const((S, h)),          # pool over width  (rows one-hot)
            const((S, w)),          # pool over height (cols one-hot)
            const((h, S)),          # row -> lanes broadcast
            const((w, S)),          # col -> lanes broadcast
            const((BC, BC)),        # block-diag conv1x1 weight
            const((BC, 1)),         # conv1x1 bias
            const((BC, 9 * BC)),    # block-diag fused conv3x3 weight
            const((BC, 1)),         # conv3x3 bias
            const((BC, 1)),         # GroupNorm gamma
            const((BC, 1)),         # GroupNorm beta
            const((Bt, BC)),        # group-select
            const((BC, Bt)),        # group-select transposed
        ],
        out_specs=pl.BlockSpec((BC, S), lambda i: (i, 0)),
        scratch_shapes=[pltpu.VMEM((9 * BC, S), f32)],
        compiler_params=pltpu.CompilerParams(
            dimension_semantics=("parallel",)),
    )(gx, masks8, pool_r, pool_c, bcast_r, bcast_c,
      w1b, b1b, w3b, b3b, gammab, betab, gsel, gselT)
    return out.reshape(b, c, h, w)


def ema_reference(x, params, groups):
    """Plain-JAX reference with identical semantics (sanity check)."""
    b, c, h, w = x.shape
    C = c // groups
    gx = x.reshape(b * groups, C, h, w)
    w1, b1, w3, b3, gamma, beta = params

    x_h = gx.mean(axis=3)                               # (B, C, h)
    x_w = gx.mean(axis=2)                               # (B, C, w)
    cat = jnp.concatenate([x_h, x_w], axis=2)           # (B, C, h+w)
    hw_ = jnp.einsum('oc,bcs->bos', w1, cat) + b1[None]
    gh = jax.nn.sigmoid(hw_[:, :, :h])
    gw = jax.nn.sigmoid(hw_[:, :, h:])
    mod = gx * gh[:, :, :, None] * gw[:, :, None, :]
    mu = mod.mean(axis=(2, 3), keepdims=True)
    var = mod.var(axis=(2, 3), keepdims=True)
    x1 = ((mod - mu) / jnp.sqrt(var + 1e-5)
          * gamma[None, :, :, None] + beta[None, :, :, None])
    padded = jnp.pad(gx, ((0, 0), (0, 0), (1, 1), (1, 1)))
    acc = jnp.zeros_like(gx)
    for k in range(9):
        dy, dx = k // 3, k % 3
        sh = padded[:, :, dy:dy + h, dx:dx + w]
        acc = acc + jnp.einsum('oc,bchw->bohw', w3[k], sh)
    x2 = acc + b3[None, :, :, None]
    x11 = jax.nn.softmax(x1.mean(axis=(2, 3)), axis=1)
    x21 = jax.nn.softmax(x2.mean(axis=(2, 3)), axis=1)
    weights = (jnp.einsum('bc,bchw->bhw', x11, x2)
               + jnp.einsum('bc,bchw->bhw', x21, x1))
    out = gx * jax.nn.sigmoid(weights)[:, None, :, :]
    return out.reshape(b, c, h, w)


def make_params(key, C):
    """Deterministic parameter init (conv1x1, conv3x3, GroupNorm affine)."""
    k1, k2, k3, k4, k5, k6 = jax.random.split(key, 6)
    bound1 = 1.0 / np.sqrt(C * 1 * 1)
    bound3 = 1.0 / np.sqrt(C * 3 * 3)
    w1 = jax.random.uniform(k1, (C, C), jnp.float32, -bound1, bound1)
    b1 = jax.random.uniform(k2, (C, 1), jnp.float32, -bound1, bound1)
    # conv3x3 weight stored as (9, C_out, C_in) with k = (dy+1)*3 + (dx+1)
    w3 = jax.random.uniform(k3, (9, C, C), jnp.float32, -bound3, bound3)
    b3 = jax.random.uniform(k4, (C, 1), jnp.float32, -bound3, bound3)
    gamma = 1.0 + 0.1 * jax.random.normal(k5, (C, 1), jnp.float32)
    beta = 0.1 * jax.random.normal(k6, (C, 1), jnp.float32)
    return (w1, b1, w3, b3, gamma, beta)


if __name__ == "__main__":
    key = jax.random.PRNGKey(0)
    kx, kp = jax.random.split(key)

    b, c, h, w = 2, 16, 16, 16
    factor = 4                      # groups; C = c // factor = 4
    C = c // factor

    x = jax.random.normal(kx, (b, c, h, w), jnp.float32)
    params = make_params(kp, C)

    out = jax.block_until_ready(ema_forward(x, params, factor))
    ref = jax.block_until_ready(ema_reference(x, params, factor))

    assert out.shape == (b, c, h, w)
    np.testing.assert_allclose(np.asarray(out), np.asarray(ref),
                               rtol=2e-4, atol=2e-4)
    print("KERNEL_OK")
</pallas_src>

<mosaic_0001>
module attributes {stable_mosaic.version = 11 : i64} {
  func.func @probe(%arg0: memref<8x128xf32, #tpu.memory_space<vmem>>, %arg1: memref<8x128xf32, #tpu.memory_space<vmem>>) attributes {dimension_semantics = [], scalar_prefetch = 0 : i64, scratch_operands = 0 : i64, tpu.core_type = #tpu.core_type<tc>} {
    %c0 = arith.constant 0 : index
    %c0_0 = arith.constant 0 : index
    %0 = vector.load %arg0[%c0, %c0_0] : memref<8x128xf32, #tpu.memory_space<vmem>>, vector<8x128xf32>
    %c1_i32 = arith.constant 1 : i32
    %1 = tpu.dynamic_rotate %0 by %c1_i32 dim 1 : vector<8x128xf32>, i32 -> vector<8x128xf32>
    %c0_1 = arith.constant 0 : index
    %c0_2 = arith.constant 0 : index
    %2 = vector.load %arg1[%c0_1, %c0_2] : memref<8x128xf32, #tpu.memory_space<vmem>>, vector<8x128xf32>
    tpu.vector_store %arg1[%c0_1, %c0_2], %1 {strides = array<i32>} : memref<8x128xf32, #tpu.memory_space<vmem>>, vector<8x128xf32>,
    return
  }
}

module attributes {stable_mosaic.version = 11 : i64} {
  func.func @_ema_kernel(%arg0: i32, %arg1: memref<32x256xf32, #tpu.memory_space<vmem>>, %arg2: memref<8x256xf32, #tpu.memory_space<vmem>>, %arg3: memref<256x16xf32, #tpu.memory_space<vmem>>, %arg4: memref<256x16xf32, #tpu.memory_space<vmem>>, %arg5: memref<16x256xf32, #tpu.memory_space<vmem>>, %arg6: memref<16x256xf32, #tpu.memory_space<vmem>>, %arg7: memref<32x32xf32, #tpu.memory_space<vmem>>, %arg8: memref<32x1xf32, #tpu.memory_space<vmem>>, %arg9: memref<32x288xf32, #tpu.memory_space<vmem>>, %arg10: memref<32x1xf32, #tpu.memory_space<vmem>>, %arg11: memref<32x1xf32, #tpu.memory_space<vmem>>, %arg12: memref<32x1xf32, #tpu.memory_space<vmem>>, %arg13: memref<8x32xf32, #tpu.memory_space<vmem>>, %arg14: memref<32x8xf32, #tpu.memory_space<vmem>>, %arg15: memref<32x256xf32, #tpu.memory_space<vmem>>, %arg16: memref<288x256xf32, #tpu.memory_space<vmem>>) attributes {dimension_semantics = [#tpu.dimension_semantics<parallel>], iteration_bounds = array<i64: 1>, scalar_prefetch = 0 : i64, scratch_operands = 1 : i64, tpu.core_type = #tpu.core_type<tc>, window_params = [{transform_indices = @transform_0, window_bounds = array<i64: 32, 256>}, {pipeline_mode = #tpu.pipeline_mode<synchronous>, transform_indices = @transform_1, window_bounds = array<i64: 8, 256>}, {pipeline_mode = #tpu.pipeline_mode<synchronous>, transform_indices = @transform_2, window_bounds = array<i64: 256, 16>}, {pipeline_mode = #tpu.pipeline_mode<synchronous>, transform_indices = @transform_3, window_bounds = array<i64: 256, 16>}, {pipeline_mode = #tpu.pipeline_mode<synchronous>, transform_indices = @transform_4, window_bounds = array<i64: 16, 256>}, {pipeline_mode = #tpu.pipeline_mode<synchronous>, transform_indices = @transform_5, window_bounds = array<i64: 16, 256>}, {pipeline_mode = #tpu.pipeline_mode<synchronous>, transform_indices = @transform_6, window_bounds = array<i64: 32, 32>}, {pipeline_mode = #tpu.pipeline_mode<synchronous>, transform_indices = @transform_7, window_bounds = array<i64: 32, 1>}, {pipeline_mode = #tpu.pipeline_mode<synchronous>, transform_indices = @transform_8, window_bounds = array<i64: 32, 288>}, {pipeline_mode = #tpu.pipeline_mode<synchronous>, transform_indices = @transform_9, window_bounds = array<i64: 32, 1>}, {pipeline_mode = #tpu.pipeline_mode<synchronous>, transform_indices = @transform_10, window_bounds = array<i64: 32, 1>}, {pipeline_mode = #tpu.pipeline_mode<synchronous>, transform_indices = @transform_11, window_bounds = array<i64: 32, 1>}, {pipeline_mode = #tpu.pipeline_mode<synchronous>, transform_indices = @transform_12, window_bounds = array<i64: 8, 32>}, {pipeline_mode = #tpu.pipeline_mode<synchronous>, transform_indices = @transform_13, window_bounds = array<i64: 32, 8>}, {transform_indices = @transform_14, window_bounds = array<i64: 32, 256>}]} {
    %c0 = arith.constant 0 : index
    %c0_0 = arith.constant 0 : index
    %0 = vector.load %arg1[%c0, %c0_0] : memref<32x256xf32, #tpu.memory_space<vmem>>, vector<32x256xf32>
    %c0_1 = arith.constant 0 : index
    %c0_2 = arith.constant 0 : index
    %1 = vector.load %arg3[%c0_1, %c0_2] : memref<256x16xf32, #tpu.memory_space<vmem>>, vector<256x16xf32>
    %cst = arith.constant dense<0.000000e+00> : vector<32x16xf32>
    %2 = tpu.matmul %0, %1, %cst {dimension_numbers = #tpu.dot_dimension_numbers<[1], [0], [0], [1], [0, 0, 1, 1], [], []>} : vector<32x256xf32>, vector<256x16xf32>, vector<32x16xf32> -> vector<32x16xf32>
    %cst_3 = arith.constant 6.250000e-02 : f32
    %3 = vector.broadcast %cst_3 : f32 to vector<32x16xf32>
    %4 = arith.mulf %2, %3 : vector<32x16xf32>
    %c0_4 = arith.constant 0 : index
    %c0_5 = arith.constant 0 : index
    %5 = vector.load %arg4[%c0_4, %c0_5] : memref<256x16xf32, #tpu.memory_space<vmem>>, vector<256x16xf32>
    %cst_6 = arith.constant dense<0.000000e+00> : vector<32x16xf32>
    %6 = tpu.matmul %0, %5, %cst_6 {dimension_numbers = #tpu.dot_dimension_numbers<[1], [0], [0], [1], [0, 0, 1, 1], [], []>} : vector<32x256xf32>, vector<256x16xf32>, vector<32x16xf32> -> vector<32x16xf32>
    %cst_7 = arith.constant 6.250000e-02 : f32
    %7 = vector.broadcast %cst_7 : f32 to vector<32x16xf32>
    %8 = arith.mulf %6, %7 : vector<32x16xf32>
    %c0_8 = arith.constant 0 : index
    %c0_9 = arith.constant 0 : index
    %9 = vector.load %arg7[%c0_8, %c0_9] : memref<32x32xf32, #tpu.memory_space<vmem>>, vector<32x32xf32>
    %c0_10 = arith.constant 0 : index
    %c0_11 = arith.constant 0 : index
    %10 = vector.load %arg8[%c0_10, %c0_11] : memref<32x1xf32, #tpu.memory_space<vmem>>, vector<32x1xf32>
    %cst_12 = arith.constant dense<0.000000e+00> : vector<32x16xf32>
    %11 = tpu.matmul %9, %4, %cst_12 {dimension_numbers = #tpu.dot_dimension_numbers<[1], [0], [0], [1], [0, 0, 1, 1], [], []>} : vector<32x32xf32>, vector<32x16xf32>, vector<32x16xf32> -> vector<32x16xf32>
    %12 = vector.broadcast %10 : vector<32x1xf32> to vector<32x16xf32>
    %13 = arith.addf %11, %12 : vector<32x16xf32>
    %14 = arith.negf %13 : vector<32x16xf32>
    %15 = math.exp %14 : vector<32x16xf32>
    %cst_13 = arith.constant 1.000000e+00 : f32
    %16 = vector.broadcast %cst_13 : f32 to vector<32x16xf32>
    %17 = arith.addf %16, %15 : vector<32x16xf32>
    %18 = arith.divf %16, %17 : vector<32x16xf32>
    %cst_14 = arith.constant dense<0.000000e+00> : vector<32x16xf32>
    %19 = tpu.matmul %9, %8, %cst_14 {dimension_numbers = #tpu.dot_dimension_numbers<[1], [0], [0], [1], [0, 0, 1, 1], [], []>} : vector<32x32xf32>, vector<32x16xf32>, vector<32x16xf32> -> vector<32x16xf32>
    %20 = vector.broadcast %10 : vector<32x1xf32> to vector<32x16xf32>
    %21 = arith.addf %19, %20 : vector<32x16xf32>
    %22 = arith.negf %21 : vector<32x16xf32>
    %23 = math.exp %22 : vector<32x16xf32>
    %cst_15 = arith.constant 1.000000e+00 : f32
    %24 = vector.broadcast %cst_15 : f32 to vector<32x16xf32>
    %25 = arith.addf %24, %23 : vector<32x16xf32>
    %26 = arith.divf %24, %25 : vector<32x16xf32>
    %c0_16 = arith.constant 0 : index
    %c0_17 = arith.constant 0 : index
    %27 = vector.load %arg5[%c0_16, %c0_17] : memref<16x256xf32, #tpu.memory_space<vmem>>, vector<16x256xf32>
    %cst_18 = arith.constant dense<0.000000e+00> : vector<32x256xf32>
    %28 = tpu.matmul %18, %27, %cst_18 {dimension_numbers = #tpu.dot_dimension_numbers<[1], [0], [0], [1], [0, 0, 1, 1], [], []>} : vector<32x16xf32>, vector<16x256xf32>, vector<32x256xf32> -> vector<32x256xf32>
    %c0_19 = arith.constant 0 : index
    %c0_20 = arith.constant 0 : index
    %29 = vector.load %arg6[%c0_19, %c0_20] : memref<16x256xf32, #tpu.memory_space<vmem>>, vector<16x256xf32>
    %cst_21 = arith.constant dense<0.000000e+00> : vector<32x256xf32>
    %30 = tpu.matmul %26, %29, %cst_21 {dimension_numbers = #tpu.dot_dimension_numbers<[1], [0], [0], [1], [0, 0, 1, 1], [], []>} : vector<32x16xf32>, vector<16x256xf32>, vector<32x256xf32> -> vector<32x256xf32>
    %31 = arith.mulf %28, %30 : vector<32x256xf32>
    %32 = arith.mulf %0, %31 : vector<32x256xf32>
    %cst_22 = arith.constant dense<0.000000e+00> : vector<32xf32>
    %33 = vector.multi_reduction <add>, %32, %cst_22 [1] : vector<32x256xf32> to vector<32xf32>
    %34 = vector.shape_cast %33 : vector<32xf32> to vector<32x1xf32>
    %cst_23 = arith.constant 2.560000e+02 : f32
    %35 = vector.broadcast %cst_23 : f32 to vector<32x1xf32>
    %36 = arith.divf %34, %35 : vector<32x1xf32>
    %37 = vector.broadcast %36 : vector<32x1xf32> to vector<32x256xf32>
    %38 = arith.subf %32, %37 : vector<32x256xf32>
    %39 = arith.mulf %38, %38 : vector<32x256xf32>
    %cst_24 = arith.constant dense<0.000000e+00> : vector<32xf32>
    %40 = vector.multi_reduction <add>, %39, %cst_24 [1] : vector<32x256xf32> to vector<32xf32>
    %41 = vector.shape_cast %40 : vector<32xf32> to vector<32x1xf32>
    %cst_25 = arith.constant 2.560000e+02 : f32
    %42 = vector.broadcast %cst_25 : f32 to vector<32x1xf32>
    %43 = arith.divf %41, %42 : vector<32x1xf32>
    %44 = vector.broadcast %36 : vector<32x1xf32> to vector<32x256xf32>
    %45 = arith.subf %32, %44 : vector<32x256xf32>
    %cst_26 = arith.constant 9.99999974E-6 : f32
    %46 = vector.broadcast %cst_26 : f32 to vector<32x1xf32>
    %47 = arith.addf %43, %46 : vector<32x1xf32>
    %48 = math.rsqrt %47 : vector<32x1xf32>
    %49 = vector.broadcast %48 : vector<32x1xf32> to vector<32x256xf32>
    %50 = arith.mulf %45, %49 : vector<32x256xf32>
    %c0_27 = arith.constant 0 : index
    %c0_28 = arith.constant 0 : index
    %51 = vector.load %arg11[%c0_27, %c0_28] : memref<32x1xf32, #tpu.memory_space<vmem>>, vector<32x1xf32>
    %52 = vector.broadcast %51 : vector<32x1xf32> to vector<32x256xf32>
    %53 = arith.mulf %50, %52 : vector<32x256xf32>
    %c0_29 = arith.constant 0 : index
    %c0_30 = arith.constant 0 : index
    %54 = vector.load %arg12[%c0_29, %c0_30] : memref<32x1xf32, #tpu.memory_space<vmem>>, vector<32x1xf32>
    %55 = vector.broadcast %54 : vector<32x1xf32> to vector<32x256xf32>
    %56 = arith.addf %53, %55 : vector<32x256xf32>
    %57 = vector.extract_strided_slice %0 {offsets = [0, 239], sizes = [32, 17], strides = [1, 1]} : vector<32x256xf32> to vector<32x17xf32>
    %58 = vector.extract_strided_slice %0 {offsets = [0, 0], sizes = [32, 239], strides = [1, 1]} : vector<32x256xf32> to vector<32x239xf32>
    %59 = tpu.concatenate %57, %58 in 1 : vector<32x17xf32>, vector<32x239xf32> -> vector<32x256xf32>
    %c0_31 = arith.constant 0 : index
    %c0_32 = arith.constant 0 : index
    %60 = vector.load %arg2[%c0_31, %c0_32] : memref<8x256xf32, #tpu.memory_space<vmem>>, vector<1x256xf32>
    %61 = vector.broadcast %60 : vector<1x256xf32> to vector<32x256xf32>
    %62 = arith.mulf %59, %61 : vector<32x256xf32>
    %c0_33 = arith.constant 0 : index
    %c0_34 = arith.constant 0 : index
    %63 = vector.load %arg16[%c0_33, %c0_34] : memref<288x256xf32, #tpu.memory_space<vmem>>, vector<32x256xf32>
    tpu.vector_store %arg16[%c0_33, %c0_34], %62 {strides = array<i32>} : memref<288x256xf32, #tpu.memory_space<vmem>>, vector<32x256xf32>,
    %64 = vector.extract_strided_slice %0 {offsets = [0, 240], sizes = [32, 16], strides = [1, 1]} : vector<32x256xf32> to vector<32x16xf32>
    %65 = vector.extract_strided_slice %0 {offsets = [0, 0], sizes = [32, 240], strides = [1, 1]} : vector<32x256xf32> to vector<32x240xf32>
    %66 = tpu.concatenate %64, %65 in 1 : vector<32x16xf32>, vector<32x240xf32> -> vector<32x256xf32>
    %c1 = arith.constant 1 : index
    %c0_35 = arith.constant 0 : index
    %67 = vector.load %arg2[%c1, %c0_35] : memref<8x256xf32, #tpu.memory_space<vmem>>, vector<1x256xf32>
    %68 = vector.broadcast %67 : vector<1x256xf32> to vector<32x256xf32>
    %69 = arith.mulf %66, %68 : vector<32x256xf32>
    %c32 = arith.constant 32 : index
    %c0_36 = arith.constant 0 : index
    %70 = vector.load %arg16[%c32, %c0_36] : memref<288x256xf32, #tpu.memory_space<vmem>>, vector<32x256xf32>
    tpu.vector_store %arg16[%c32, %c0_36], %69 {strides = array<i32>} : memref<288x256xf32, #tpu.memory_space<vmem>>, vector<32x256xf32>,
    %71 = vector.extract_strided_slice %0 {offsets = [0, 241], sizes = [32, 15], strides = [1, 1]} : vector<32x256xf32> to vector<32x15xf32>
    %72 = vector.extract_strided_slice %0 {offsets = [0, 0], sizes = [32, 241], strides = [1, 1]} : vector<32x256xf32> to vector<32x241xf32>
    %73 = tpu.concatenate %71, %72 in 1 : vector<32x15xf32>, vector<32x241xf32> -> vector<32x256xf32>
    %c2 = arith.constant 2 : index
    %c0_37 = arith.constant 0 : index
    %74 = vector.load %arg2[%c2, %c0_37] : memref<8x256xf32, #tpu.memory_space<vmem>>, vector<1x256xf32>
    %75 = vector.broadcast %74 : vector<1x256xf32> to vector<32x256xf32>
    %76 = arith.mulf %73, %75 : vector<32x256xf32>
    %c64 = arith.constant 64 : index
    %c0_38 = arith.constant 0 : index
    %77 = vector.load %arg16[%c64, %c0_38] : memref<288x256xf32, #tpu.memory_space<vmem>>, vector<32x256xf32>
    tpu.vector_store %arg16[%c64, %c0_38], %76 {strides = array<i32>} : memref<288x256xf32, #tpu.memory_space<vmem>>, vector<32x256xf32>,
    %78 = vector.extract_strided_slice %0 {offsets = [0, 255], sizes = [32, 1], strides = [1, 1]} : vector<32x256xf32> to vector<32x1xf32>
    %79 = vector.extract_strided_slice %0 {offsets = [0, 0], sizes = [32, 255], strides = [1, 1]} : vector<32x256xf32> to vector<32x255xf32>
    %80 = tpu.concatenate %78, %79 in 1 : vector<32x1xf32>, vector<32x255xf32> -> vector<32x256xf32>
    %c3 = arith.constant 3 : index
    %c0_39 = arith.constant 0 : index
    %81 = vector.load %arg2[%c3, %c0_39] : memref<8x256xf32, #tpu.memory_space<vmem>>, vector<1x256xf32>
    %82 = vector.broadcast %81 : vector<1x256xf32> to vector<32x256xf32>
    %83 = arith.mulf %80, %82 : vector<32x256xf32>
    %c96 = arith.constant 96 : index
    %c0_40 = arith.constant 0 : index
    %84 = vector.load %arg16[%c96, %c0_40] : memref<288x256xf32, #tpu.memory_space<vmem>>, vector<32x256xf32>
    tpu.vector_store %arg16[%c96, %c0_40], %83 {strides = array<i32>} : memref<288x256xf32, #tpu.memory_space<vmem>>, vector<32x256xf32>,
    %c128 = arith.constant 128 : index
    %c0_41 = arith.constant 0 : index
    %85 = vector.load %arg16[%c128, %c0_41] : memref<288x256xf32, #tpu.memory_space<vmem>>, vector<32x256xf32>
    tpu.vector_store %arg16[%c128, %c0_41], %0 {strides = array<i32>} : memref<288x256xf32, #tpu.memory_space<vmem>>, vector<32x256xf32>,
    %86 = vector.extract_strided_slice %0 {offsets = [0, 1], sizes = [32, 255], strides = [1, 1]} : vector<32x256xf32> to vector<32x255xf32>
    %87 = vector.extract_strided_slice %0 {offsets = [0, 0], sizes = [32, 1], strides = [1, 1]} : vector<32x256xf32> to vector<32x1xf32>
    %88 = tpu.concatenate %86, %87 in 1 : vector<32x255xf32>, vector<32x1xf32> -> vector<32x256xf32>
    %c4 = arith.constant 4 : index
    %c0_42 = arith.constant 0 : index
    %89 = vector.load %arg2[%c4, %c0_42] : memref<8x256xf32, #tpu.memory_space<vmem>>, vector<1x256xf32>
    %90 = vector.broadcast %89 : vector<1x256xf32> to vector<32x256xf32>
    %91 = arith.mulf %88, %90 : vector<32x256xf32>
    %c160 = arith.constant 160 : index
    %c0_43 = arith.constant 0 : index
    %92 = vector.load %arg16[%c160, %c0_43] : memref<288x256xf32, #tpu.memory_space<vmem>>, vector<32x256xf32>
    tpu.vector_store %arg16[%c160, %c0_43], %91 {strides = array<i32>} : memref<288x256xf32, #tpu.memory_space<vmem>>, vector<32x256xf32>,
    %93 = vector.extract_strided_slice %0 {offsets = [0, 15], sizes = [32, 241], strides = [1, 1]} : vector<32x256xf32> to vector<32x241xf32>
    %94 = vector.extract_strided_slice %0 {offsets = [0, 0], sizes = [32, 15], strides = [1, 1]} : vector<32x256xf32> to vector<32x15xf32>
    %95 = tpu.concatenate %93, %94 in 1 : vector<32x241xf32>, vector<32x15xf32> -> vector<32x256xf32>
    %c5 = arith.constant 5 : index
    %c0_44 = arith.constant 0 : index
    %96 = vector.load %arg2[%c5, %c0_44] : memref<8x256xf32, #tpu.memory_space<vmem>>, vector<1x256xf32>
    %97 = vector.broadcast %96 : vector<1x256xf32> to vector<32x256xf32>
    %98 = arith.mulf %95, %97 : vector<32x256xf32>
    %c192 = arith.constant 192 : index
    %c0_45 = arith.constant 0 : index
    %99 = vector.load %arg16[%c192, %c0_45] : memref<288x256xf32, #tpu.memory_space<vmem>>, vector<32x256xf32>
    tpu.vector_store %arg16[%c192, %c0_45], %98 {strides = array<i32>} : memref<288x256xf32, #tpu.memory_space<vmem>>, vector<32x256xf32>,
    %100 = vector.extract_strided_slice %0 {offsets = [0, 16], sizes = [32, 240], strides = [1, 1]} : vector<32x256xf32> to vector<32x240xf32>
    %101 = vector.extract_strided_slice %0 {offsets = [0, 0], sizes = [32, 16], strides = [1, 1]} : vector<32x256xf32> to vector<32x16xf32>
    %102 = tpu.concatenate %100, %101 in 1 : vector<32x240xf32>, vector<32x16xf32> -> vector<32x256xf32>
    %c6 = arith.constant 6 : index
    %c0_46 = arith.constant 0 : index
    %103 = vector.load %arg2[%c6, %c0_46] : memref<8x256xf32, #tpu.memory_space<vmem>>, vector<1x256xf32>
    %104 = vector.broadcast %103 : vector<1x256xf32> to vector<32x256xf32>
    %105 = arith.mulf %102, %104 : vector<32x256xf32>
    %c224 = arith.constant 224 : index
    %c0_47 = arith.constant 0 : index
    %106 = vector.load %arg16[%c224, %c0_47] : memref<288x256xf32, #tpu.memory_space<vmem>>, vector<32x256xf32>
    tpu.vector_store %arg16[%c224, %c0_47], %105 {strides = array<i32>} : memref<288x256xf32, #tpu.memory_space<vmem>>, vector<32x256xf32>,
    %107 = vector.extract_strided_slice %0 {offsets = [0, 17], sizes = [32, 239], strides = [1, 1]} : vector<32x256xf32> to vector<32x239xf32>
    %108 = vector.extract_strided_slice %0 {offsets = [0, 0], sizes = [32, 17], strides = [1, 1]} : vector<32x256xf32> to vector<32x17xf32>
    %109 = tpu.concatenate %107, %108 in 1 : vector<32x239xf32>, vector<32x17xf32> -> vector<32x256xf32>
    %c7 = arith.constant 7 : index
    %c0_48 = arith.constant 0 : index
    %110 = vector.load %arg2[%c7, %c0_48] : memref<8x256xf32, #tpu.memory_space<vmem>>, vector<1x256xf32>
    %111 = vector.broadcast %110 : vector<1x256xf32> to vector<32x256xf32>
    %112 = arith.mulf %109, %111 : vector<32x256xf32>
    %c256 = arith.constant 256 : index
    %c0_49 = arith.constant 0 : index
    %113 = vector.load %arg16[%c256, %c0_49] : memref<288x256xf32, #tpu.memory_space<vmem>>, vector<32x256xf32>
    tpu.vector_store %arg16[%c256, %c0_49], %112 {strides = array<i32>} : memref<288x256xf32, #tpu.memory_space<vmem>>, vector<32x256xf32>,
    %c0_50 = arith.constant 0 : index
    %c0_51 = arith.constant 0 : index
    %114 = vector.load %arg9[%c0_50, %c0_51] : memref<32x288xf32, #tpu.memory_space<vmem>>, vector<32x288xf32>
    %c0_52 = arith.constant 0 : index
    %c0_53 = arith.constant 0 : index
    %115 = vector.load %arg16[%c0_52, %c0_53] : memref<288x256xf32, #tpu.memory_space<vmem>>, vector<288x256xf32>
    %cst_54 = arith.constant dense<0.000000e+00> : vector<32x256xf32>
    %116 = tpu.matmul %114, %115, %cst_54 {dimension_numbers = #tpu.dot_dimension_numbers<[1], [0], [0], [1], [0, 0, 1, 1], [], []>} : vector<32x288xf32>, vector<288x256xf32>, vector<32x256xf32> -> vector<32x256xf32>
    %c0_55 = arith.constant 0 : index
    %c0_56 = arith.constant 0 : index
    %117 = vector.load %arg10[%c0_55, %c0_56] : memref<32x1xf32, #tpu.memory_space<vmem>>, vector<32x1xf32>
    %118 = vector.broadcast %117 : vector<32x1xf32> to vector<32x256xf32>
    %119 = arith.addf %116, %118 : vector<32x256xf32>
    %cst_57 = arith.constant 1.000000e+00 : f32
    %120 = vector.broadcast %cst_57 : f32 to vector<1x256xf32>
    %c0_58 = arith.constant 0 : index
    %c0_59 = arith.constant 0 : index
    %121 = vector.load %arg13[%c0_58, %c0_59] : memref<8x32xf32, #tpu.memory_space<vmem>>, vector<8x32xf32>
    %c0_60 = arith.constant 0 : index
    %c0_61 = arith.constant 0 : index
    %122 = vector.load %arg14[%c0_60, %c0_61] : memref<32x8xf32, #tpu.memory_space<vmem>>, vector<32x8xf32>
    %cst_62 = arith.constant dense<0.000000e+00> : vector<1x32xf32>
    %123 = tpu.matmul %120, %56, %cst_62 {dimension_numbers = #tpu.dot_dimension_numbers<[1], [1], [0], [0], [0, 0, 1, 0], [], []>} : vector<1x256xf32>, vector<32x256xf32>, vector<1x32xf32> -> vector<1x32xf32>
    %cst_63 = arith.constant 3.906250e-03 : f32
    %124 = vector.broadcast %cst_63 : f32 to vector<1x32xf32>
    %125 = arith.mulf %123, %124 : vector<1x32xf32>
    %cst_64 = arith.constant dense<0xFF800000> : vector<1xf32>
    %126 = vector.multi_reduction <maximumf>, %125, %cst_64 [1] : vector<1x32xf32> to vector<1xf32>
    %127 = vector.shape_cast %126 : vector<1xf32> to vector<1x1xf32>
    %128 = vector.broadcast %127 : vector<1x1xf32> to vector<1x32xf32>
    %129 = arith.subf %125, %128 : vector<1x32xf32>
    %130 = math.exp %129 : vector<1x32xf32>
    %cst_65 = arith.constant dense<0.000000e+00> : vector<1x8xf32>
    %131 = tpu.matmul %130, %122, %cst_65 {dimension_numbers = #tpu.dot_dimension_numbers<[1], [0], [0], [1], [0, 0, 1, 1], [], []>} : vector<1x32xf32>, vector<32x8xf32>, vector<1x8xf32> -> vector<1x8xf32>
    %cst_66 = arith.constant dense<0.000000e+00> : vector<1x32xf32>
    %132 = tpu.matmul %131, %121, %cst_66 {dimension_numbers = #tpu.dot_dimension_numbers<[1], [0], [0], [1], [0, 0, 1, 1], [], []>} : vector<1x8xf32>, vector<8x32xf32>, vector<1x32xf32> -> vector<1x32xf32>
    %133 = tpu.reciprocal %132 : vector<1x32xf32> -> vector<1x32xf32>
    %134 = arith.mulf %130, %133 : vector<1x32xf32>
    %cst_67 = arith.constant dense<0.000000e+00> : vector<1x32xf32>
    %135 = tpu.matmul %120, %119, %cst_67 {dimension_numbers = #tpu.dot_dimension_numbers<[1], [1], [0], [0], [0, 0, 1, 0], [], []>} : vector<1x256xf32>, vector<32x256xf32>, vector<1x32xf32> -> vector<1x32xf32>
    %cst_68 = arith.constant 3.906250e-03 : f32
    %136 = vector.broadcast %cst_68 : f32 to vector<1x32xf32>
    %137 = arith.mulf %135, %136 : vector<1x32xf32>
    %cst_69 = arith.constant dense<0xFF800000> : vector<1xf32>
    %138 = vector.multi_reduction <maximumf>, %137, %cst_69 [1] : vector<1x32xf32> to vector<1xf32>
    %139 = vector.shape_cast %138 : vector<1xf32> to vector<1x1xf32>
    %140 = vector.broadcast %139 : vector<1x1xf32> to vector<1x32xf32>
    %141 = arith.subf %137, %140 : vector<1x32xf32>
    %142 = math.exp %141 : vector<1x32xf32>
    %cst_70 = arith.constant dense<0.000000e+00> : vector<1x8xf32>
    %143 = tpu.matmul %142, %122, %cst_70 {dimension_numbers = #tpu.dot_dimension_numbers<[1], [0], [0], [1], [0, 0, 1, 1], [], []>} : vector<1x32xf32>, vector<32x8xf32>, vector<1x8xf32> -> vector<1x8xf32>
    %cst_71 = arith.constant dense<0.000000e+00> : vector<1x32xf32>
    %144 = tpu.matmul %143, %121, %cst_71 {dimension_numbers = #tpu.dot_dimension_numbers<[1], [0], [0], [1], [0, 0, 1, 1], [], []>} : vector<1x8xf32>, vector<8x32xf32>, vector<1x32xf32> -> vector<1x32xf32>
    %145 = tpu.reciprocal %144 : vector<1x32xf32> -> vector<1x32xf32>
    %146 = arith.mulf %142, %145 : vector<1x32xf32>
    %147 = vector.shape_cast %134 : vector<1x32xf32> to vector<1x32xf32>
    %148 = vector.broadcast %147 : vector<1x32xf32> to vector<8x32xf32>
    %149 = arith.mulf %148, %121 : vector<8x32xf32>
    %150 = vector.shape_cast %146 : vector<1x32xf32> to vector<1x32xf32>
    %151 = vector.broadcast %150 : vector<1x32xf32> to vector<8x32xf32>
    %152 = arith.mulf %151, %121 : vector<8x32xf32>
    %cst_72 = arith.constant dense<0.000000e+00> : vector<8x256xf32>
    %153 = tpu.matmul %149, %119, %cst_72 {dimension_numbers = #tpu.dot_dimension_numbers<[1], [0], [0], [1], [0, 0, 1, 1], [], []>} : vector<8x32xf32>, vector<32x256xf32>, vector<8x256xf32> -> vector<8x256xf32>
    %cst_73 = arith.constant dense<0.000000e+00> : vector<8x256xf32>
    %154 = tpu.matmul %152, %56, %cst_73 {dimension_numbers = #tpu.dot_dimension_numbers<[1], [0], [0], [1], [0, 0, 1, 1], [], []>} : vector<8x32xf32>, vector<32x256xf32>, vector<8x256xf32> -> vector<8x256xf32>
    %155 = arith.addf %153, %154 : vector<8x256xf32>
    %cst_74 = arith.constant dense<0.000000e+00> : vector<32x256xf32>
    %156 = tpu.matmul %122, %155, %cst_74 {dimension_numbers = #tpu.dot_dimension_numbers<[1], [0], [0], [1], [0, 0, 1, 1], [], []>} : vector<32x8xf32>, vector<8x256xf32>, vector<32x256xf32> -> vector<32x256xf32>
    %157 = arith.negf %156 : vector<32x256xf32>
    %158 = math.exp %157 : vector<32x256xf32>
    %cst_75 = arith.constant 1.000000e+00 : f32
    %159 = vector.broadcast %cst_75 : f32 to vector<32x256xf32>
    %160 = arith.addf %159, %158 : vector<32x256xf32>
    %161 = arith.divf %159, %160 : vector<32x256xf32>
    %162 = arith.mulf %0, %161 : vector<32x256xf32>
    %c0_76 = arith.constant 0 : index
    %c0_77 = arith.constant 0 : index
    %163 = vector.load %arg15[%c0_76, %c0_77] : memref<32x256xf32, #tpu.memory_space<vmem>>, vector<32x256xf32>
    tpu.vector_store %arg15[%c0_76, %c0_77], %162 {strides = array<i32>} : memref<32x256xf32, #tpu.memory_space<vmem>>, vector<32x256xf32>,
    return
  }
  func.func @transform_0(%arg0: i32) -> (i32, i32) {
    %c0_i32 = arith.constant 0 : i32
    %c0_i32_0 = arith.constant 0 : i32
    return %arg0, %c0_i32 : i32, i32
  }
  func.func @transform_1(%arg0: i32) -> (i32, i32) {
    %c0_i32 = arith.constant 0 : i32
    %c0_i32_0 = arith.constant 0 : i32
    %c0_i32_1 = arith.constant 0 : i32
    return %c0_i32, %c0_i32_0 : i32, i32
  }
  func.func @transform_2(%arg0: i32) -> (i32, i32) {
    %c0_i32 = arith.constant 0 : i32
    %c0_i32_0 = arith.constant 0 : i32
    %c0_i32_1 = arith.constant 0 : i32
    return %c0_i32, %c0_i32_0 : i32, i32
  }
  func.func @transform_3(%arg0: i32) -> (i32, i32) {
    %c0_i32 = arith.constant 0 : i32
    %c0_i32_0 = arith.constant 0 : i32
    %c0_i32_1 = arith.constant 0 : i32
    return %c0_i32, %c0_i32_0 : i32, i32
  }
  func.func @transform_4(%arg0: i32) -> (i32, i32) {
    %c0_i32 = arith.constant 0 : i32
    %c0_i32_0 = arith.constant 0 : i32
    %c0_i32_1 = arith.constant 0 : i32
    return %c0_i32, %c0_i32_0 : i32, i32
  }
  func.func @transform_5(%arg0: i32) -> (i32, i32) {
    %c0_i32 = arith.constant 0 : i32
    %c0_i32_0 = arith.constant 0 : i32
    %c0_i32_1 = arith.constant 0 : i32
    return %c0_i32, %c0_i32_0 : i32, i32
  }
  func.func @transform_6(%arg0: i32) -> (i32, i32) {
    %c0_i32 = arith.constant 0 : i32
    %c0_i32_0 = arith.constant 0 : i32
    %c0_i32_1 = arith.constant 0 : i32
    return %c0_i32, %c0_i32_0 : i32, i32
  }
  func.func @transform_7(%arg0: i32) -> (i32, i32) {
    %c0_i32 = arith.constant 0 : i32
    %c0_i32_0 = arith.constant 0 : i32
    %c0_i32_1 = arith.constant 0 : i32
    return %c0_i32, %c0_i32_0 : i32, i32
  }
  func.func @transform_8(%arg0: i32) -> (i32, i32) {
    %c0_i32 = arith.constant 0 : i32
    %c0_i32_0 = arith.constant 0 : i32
    %c0_i32_1 = arith.constant 0 : i32
    return %c0_i32, %c0_i32_0 : i32, i32
  }
  func.func @transform_9(%arg0: i32) -> (i32, i32) {
    %c0_i32 = arith.constant 0 : i32
    %c0_i32_0 = arith.constant 0 : i32
    %c0_i32_1 = arith.constant 0 : i32
    return %c0_i32, %c0_i32_0 : i32, i32
  }
  func.func @transform_10(%arg0: i32) -> (i32, i32) {
    %c0_i32 = arith.constant 0 : i32
    %c0_i32_0 = arith.constant 0 : i32
    %c0_i32_1 = arith.constant 0 : i32
    return %c0_i32, %c0_i32_0 : i32, i32
  }
  func.func @transform_11(%arg0: i32) -> (i32, i32) {
    %c0_i32 = arith.constant 0 : i32
    %c0_i32_0 = arith.constant 0 : i32
    %c0_i32_1 = arith.constant 0 : i32
    return %c0_i32, %c0_i32_0 : i32, i32
  }
  func.func @transform_12(%arg0: i32) -> (i32, i32) {
    %c0_i32 = arith.constant 0 : i32
    %c0_i32_0 = arith.constant 0 : i32
    %c0_i32_1 = arith.constant 0 : i32
    return %c0_i32, %c0_i32_0 : i32, i32
  }
  func.func @transform_13(%arg0: i32) -> (i32, i32) {
    %c0_i32 = arith.constant 0 : i32
    %c0_i32_0 = arith.constant 0 : i32
    %c0_i32_1 = arith.constant 0 : i32
    return %c0_i32, %c0_i32_0 : i32, i32
  }
  func.func @transform_14(%arg0: i32) -> (i32, i32) {
    %c0_i32 = arith.constant 0 : i32
    %c0_i32_0 = arith.constant 0 : i32
    return %arg0, %c0_i32 : i32, i32
  }
}

</mosaic_0001>

<llo_original>
// kernel: tpu_custom_call.1
$region0: #{tpu_custom_call.1}
  #allocation0 [shape = 'u32[]', space=smem, size = 0x4, offset = 0x4, fixed_abs, tag = 'smem constant byte address 0x4 - core index']
  #allocation1 [shape = 'u32[144,128]{1,0:T(1,128)}', space=vmem, size = 0x12000, scoped, tag = 'internal scratch']
  %s0 = inlined_call_operand.hbm [shape: f32[8,128], index: 0, kind: input, shape index: {}]
  %s1 = inlined_call_operand.hbm [shape: f32[8,128], index: 1, kind: output, shape index: {}]
  %s2 = sld [smem:[#allocation0]]
  $region18: #{tpu_custom_call.1} parent=0
    _
  %s4 = ssub.s32 1, %s2
  %s5 = scalar_select 0, %s4, %s2
  $region1: #{tpu_custom_call.1} parent=0
    #allocation2 [shape = 'u8[4096]{0}', space=vmem, size = 0x1000, scoped, tag = 'input window, operand 0, single buffered']
    #allocation3 [shape = 's32[1]{0}', space=sflag, size = 0x4, scoped, tag = 'scoped memory for tpu_custom_call.1']
    #allocation4 [shape = 's32[1]{0}', space=sflag, size = 0x4, scoped, tag = 'scoped memory for tpu_custom_call.1']
    #allocation5 [shape = 'u8[4096]{0}', space=vmem, size = 0x1000, scoped, tag = 'output window, operand 0, single buffered']
    %6 = vsyncpa [#allocation3], 0
    %7 = vsyncpa [#allocation4], 0
    // Predicated region
    $region2: #{tpu_custom_call.1} parent=1 // pred_check
      _
    $region3: #{tpu_custom_call.1} parent=1 // pred_check_branch
      %9 = sbr.rel (0) target = $region5
    $region4: #{tpu_custom_call.1} parent=1 // pred_region
      %s11 = ssub.s32 128, 128
      %12 = vsyncadd [#allocation3], %s11
      %s14 = sshll.u32 [#allocation2], 4
      %s15 = int_to_ptr.vmem [resolvable:$true] %s14
      %17 = dma.hbm_to_vmem [thread:$0]  %s0, 128, %s15, [#allocation3]
    $region5: #{tpu_custom_call.1} parent=1 // pred_fallthru
      _
    // Predicated region
    $region6: #{tpu_custom_call.1} parent=1 // pred_check
      _
    $region7: #{tpu_custom_call.1} parent=1 // pred_check_branch
      %19 = sbr.rel (0) target = $region9
    $region8: #{tpu_custom_call.1} parent=1 // pred_region
      %20 = dma.done [#allocation3], 128
    $region9: #{tpu_custom_call.1} parent=1 // pred_fallthru
      _
    %v21 = vld [vmem:[#allocation2] sm:$0xff]
    %22 = vrot.lane.b32.xlu0 %v21, 1
    %v23 = vpop.permute.xlu0 %22
    %24 = vst [vmem:[#allocation5] sm:$0xff] %v23
    // Predicated region
    $region10: #{tpu_custom_call.1} parent=1 // pred_check
      _
    $region11: #{tpu_custom_call.1} parent=1 // pred_check_branch
      %26 = sbr.rel (0) target = $region13
    $region12: #{tpu_custom_call.1} parent=1 // pred_region
      %s28 = ssub.s32 128, 128
      %29 = vsyncadd [#allocation4], %s28
      %s31 = sshll.u32 [#allocation5], 4
      %s32 = int_to_ptr.vmem [resolvable:$true] %s31
      %34 = dma.vmem_to_hbm [thread:$0]  %s32, 128, %s1, [#allocation4]
    $region13: #{tpu_custom_call.1} parent=1 // pred_fallthru
      _
    // Predicated region
    $region14: #{tpu_custom_call.1} parent=1 // pred_check
      _
    $region15: #{tpu_custom_call.1} parent=1 // pred_check_branch
      %36 = sbr.rel (0) target = $region17
    $region16: #{tpu_custom_call.1} parent=1 // pred_region
      %37 = dma.done [#allocation4], 128
    $region17: #{tpu_custom_call.1} parent=1 // pred_fallthru
      _
    %38 = vsyncpa [#allocation3], 1
    %39 = vsyncpa [#allocation4], 1

// kernel: tpu_custom_call.1
$region0: #{tpu_custom_call.1}
  #allocation0 [shape = 'u32[]', space=smem, size = 0x4, offset = 0x4, fixed_abs, tag = 'smem constant byte address 0x4 - core index']
  #allocation1 [shape = 'u32[144,128]{1,0:T(1,128)}', space=vmem, size = 0x12000, scoped, tag = 'internal scratch']
  #allocation2 [shape = 'f32[288,256]{1,0:T(8,128)}', space=vmem, size = 0x48000, scoped, tag = 'scratch operand']
  %s0 = inlined_call_operand.vmem [shape: f32[32,256], index: 0, kind: input, shape index: {}]
  %s1 = inlined_call_operand.vmem [shape: f32[8,256], index: 1, kind: input, shape index: {}]
  %s2 = inlined_call_operand.vmem [shape: f32[256,16], index: 2, kind: input, shape index: {}]
  %s3 = inlined_call_operand.vmem [shape: f32[256,16], index: 3, kind: input, shape index: {}]
  %s4 = inlined_call_operand.vmem [shape: f32[16,256], index: 4, kind: input, shape index: {}]
  %s5 = inlined_call_operand.vmem [shape: f32[16,256], index: 5, kind: input, shape index: {}]
  %s6 = inlined_call_operand.vmem [shape: f32[32,32], index: 6, kind: input, shape index: {}]
  %s7 = inlined_call_operand.vmem [shape: f32[32,1], index: 7, kind: input, shape index: {}]
  %s8 = inlined_call_operand.vmem [shape: f32[32,288], index: 8, kind: input, shape index: {}]
  %s9 = inlined_call_operand.vmem [shape: f32[32,1], index: 9, kind: input, shape index: {}]
  %s10 = inlined_call_operand.vmem [shape: f32[32,1], index: 10, kind: input, shape index: {}]
  %s11 = inlined_call_operand.vmem [shape: f32[32,1], index: 11, kind: input, shape index: {}]
  %s12 = inlined_call_operand.vmem [shape: f32[8,32], index: 12, kind: input, shape index: {}]
  %s13 = inlined_call_operand.vmem [shape: f32[32,8], index: 13, kind: input, shape index: {}]
  %s14 = inlined_call_operand.hbm [shape: f32[32,256], index: 14, kind: output, shape index: {}]
  %s15 = sld [smem:[#allocation0]]
  $region66: #{tpu_custom_call.1} parent=0
    _
  %s17 = ssub.s32 1, %s15
  %s18 = scalar_select 0, %s17, %s15
  $region1: #{tpu_custom_call.1} parent=0
    #allocation3 [shape = 'u8[32768]{0}', space=vmem, size = 0x8000, scoped, tag = 'output window, operand 0, single buffered']
    #allocation4 [shape = 's32[1]{0}', space=sflag, size = 0x4, scoped, tag = 'scoped memory for tpu_custom_call.1']
    %19 = vsyncpa [#allocation4], 0
    // Predicated region
    $region2: #{tpu_custom_call.1} parent=1 // pred_check
      _
    $region3: #{tpu_custom_call.1} parent=1 // pred_check_branch
      %21 = sbr.rel (0) target = $region5
    $region4: #{tpu_custom_call.1} parent=1 // pred_region
      _
    $region5: #{tpu_custom_call.1} parent=1 // pred_fallthru
      _
    // Predicated region
    $region6: #{tpu_custom_call.1} parent=1 // pred_check
      _
    $region7: #{tpu_custom_call.1} parent=1 // pred_check_branch
      %23 = sbr.rel (0) target = $region9
    $region8: #{tpu_custom_call.1} parent=1 // pred_region
      _
    $region9: #{tpu_custom_call.1} parent=1 // pred_fallthru
      _
    // Predicated region
    $region10: #{tpu_custom_call.1} parent=1 // pred_check
      _
    $region11: #{tpu_custom_call.1} parent=1 // pred_check_branch
      %25 = sbr.rel (0) target = $region13
    $region12: #{tpu_custom_call.1} parent=1 // pred_region
      _
    $region13: #{tpu_custom_call.1} parent=1 // pred_fallthru
      _
    // Predicated region
    $region14: #{tpu_custom_call.1} parent=1 // pred_check
      _
    $region15: #{tpu_custom_call.1} parent=1 // pred_check_branch
      %27 = sbr.rel (0) target = $region17
    $region16: #{tpu_custom_call.1} parent=1 // pred_region
      _
    $region17: #{tpu_custom_call.1} parent=1 // pred_fallthru
      _
    // Predicated region
    $region18: #{tpu_custom_call.1} parent=1 // pred_check
      _
    $region19: #{tpu_custom_call.1} parent=1 // pred_check_branch
      %29 = sbr.rel (0) target = $region21
    $region20: #{tpu_custom_call.1} parent=1 // pred_region
      _
    $region21: #{tpu_custom_call.1} parent=1 // pred_fallthru
      _
    // Predicated region
    $region22: #{tpu_custom_call.1} parent=1 // pred_check
      _
    $region23: #{tpu_custom_call.1} parent=1 // pred_check_branch
      %31 = sbr.rel (0) target = $region25
    $region24: #{tpu_custom_call.1} parent=1 // pred_region
      _
    $region25: #{tpu_custom_call.1} parent=1 // pred_fallthru
      _
    // Predicated region
    $region26: #{tpu_custom_call.1} parent=1 // pred_check
      _
    $region27: #{tpu_custom_call.1} parent=1 // pred_check_branch
      %33 = sbr.rel (0) target = $region29
    $region28: #{tpu_custom_call.1} parent=1 // pred_region
      _
    $region29: #{tpu_custom_call.1} parent=1 // pred_fallthru
      _
    // Predicated region
    $region30: #{tpu_custom_call.1} parent=1 // pred_check
      _
    $region31: #{tpu_custom_call.1} parent=1 // pred_check_branch
      %35 = sbr.rel (0) target = $region33
    $region32: #{tpu_custom_call.1} parent=1 // pred_region
      _
    $region33: #{tpu_custom_call.1} parent=1 // pred_fallthru
      _
    // Predicated region
    $region34: #{tpu_custom_call.1} parent=1 // pred_check
      _
    $region35: #{tpu_custom_call.1} parent=1 // pred_check_branch
      %37 = sbr.rel (0) target = $region37
    $region36: #{tpu_custom_call.1} parent=1 // pred_region
      _
    $region37: #{tpu_custom_call.1} parent=1 // pred_fallthru
      _
    // Predicated region
    $region38: #{tpu_custom_call.1} parent=1 // pred_check
      _
    $region39: #{tpu_custom_call.1} parent=1 // pred_check_branch
      %39 = sbr.rel (0) target = $region41
    $region40: #{tpu_custom_call.1} parent=1 // pred_region
      _
    $region41: #{tpu_custom_call.1} parent=1 // pred_fallthru
      _
    // Predicated region
    $region42: #{tpu_custom_call.1} parent=1 // pred_check
      _
    $region43: #{tpu_custom_call.1} parent=1 // pred_check_branch
      %41 = sbr.rel (0) target = $region45
    $region44: #{tpu_custom_call.1} parent=1 // pred_region
      _
    $region45: #{tpu_custom_call.1} parent=1 // pred_fallthru
      _
    // Predicated region
    $region46: #{tpu_custom_call.1} parent=1 // pred_check
      _
    $region47: #{tpu_custom_call.1} parent=1 // pred_check_branch
      %43 = sbr.rel (0) target = $region49
    $region48: #{tpu_custom_call.1} parent=1 // pred_region
      _
    $region49: #{tpu_custom_call.1} parent=1 // pred_fallthru
      _
    // Predicated region
    $region50: #{tpu_custom_call.1} parent=1 // pred_check
      _
    $region51: #{tpu_custom_call.1} parent=1 // pred_check_branch
      %45 = sbr.rel (0) target = $region53
    $region52: #{tpu_custom_call.1} parent=1 // pred_region
      _
    $region53: #{tpu_custom_call.1} parent=1 // pred_fallthru
      _
    // Predicated region
    $region54: #{tpu_custom_call.1} parent=1 // pred_check
      _
    $region55: #{tpu_custom_call.1} parent=1 // pred_check_branch
      %47 = sbr.rel (0) target = $region57
    $region56: #{tpu_custom_call.1} parent=1 // pred_region
      _
    $region57: #{tpu_custom_call.1} parent=1 // pred_fallthru
      _
    %v48 = vld [vmem:[%s0] sm:$0xff]
    %v49 = vld [vmem:[%s0 + $0x8] sm:$0xff]
    %v50 = vld [vmem:[%s0 + $0x10] sm:$0xff]
    %v51 = vld [vmem:[%s0 + $0x18] sm:$0xff]
    %v52 = vld [vmem:[%s0 + $0x20] sm:$0xff]
    %v53 = vld [vmem:[%s0 + $0x28] sm:$0xff]
    %v54 = vld [vmem:[%s0 + $0x30] sm:$0xff]
    %v55 = vld [vmem:[%s0 + $0x38] sm:$0xff]
    %v56 = vld [vmem:[%s2] sm:$0xff]
    %v57 = vld [vmem:[%s2 + $0x8] sm:$0xff]
    %v58 = vld [vmem:[%s2 + $0x10] sm:$0xff]
    %v59 = vld [vmem:[%s2 + $0x18] sm:$0xff]
    %v60 = vld [vmem:[%s2 + $0x20] sm:$0xff]
    %v61 = vld [vmem:[%s2 + $0x28] sm:$0xff]
    %v62 = vld [vmem:[%s2 + $0x30] sm:$0xff]
    %v63 = vld [vmem:[%s2 + $0x38] sm:$0xff]
    %v64 = vld [vmem:[%s2 + $0x40] sm:$0xff]
    %v65 = vld [vmem:[%s2 + $0x48] sm:$0xff]
    %v66 = vld [vmem:[%s2 + $0x50] sm:$0xff]
    %v67 = vld [vmem:[%s2 + $0x58] sm:$0xff]
    %v68 = vld [vmem:[%s2 + $0x60] sm:$0xff]
    %v69 = vld [vmem:[%s2 + $0x68] sm:$0xff]
    %v70 = vld [vmem:[%s2 + $0x70] sm:$0xff]
    %v71 = vld [vmem:[%s2 + $0x78] sm:$0xff]
    %v72 = vld [vmem:[%s2 + $0x80] sm:$0xff]
    %v73 = vld [vmem:[%s2 + $0x88] sm:$0xff]
    %v74 = vld [vmem:[%s2 + $0x90] sm:$0xff]
    %v75 = vld [vmem:[%s2 + $0x98] sm:$0xff]
    %v76 = vld [vmem:[%s2 + $0xa0] sm:$0xff]
    %v77 = vld [vmem:[%s2 + $0xa8] sm:$0xff]
    %v78 = vld [vmem:[%s2 + $0xb0] sm:$0xff]
    %v79 = vld [vmem:[%s2 + $0xb8] sm:$0xff]
    %v80 = vld [vmem:[%s2 + $0xc0] sm:$0xff]
    %v81 = vld [vmem:[%s2 + $0xc8] sm:$0xff]
    %v82 = vld [vmem:[%s2 + $0xd0] sm:$0xff]
    %v83 = vld [vmem:[%s2 + $0xd8] sm:$0xff]
    %v84 = vld [vmem:[%s2 + $0xe0] sm:$0xff]
    %v85 = vld [vmem:[%s2 + $0xe8] sm:$0xff]
    %v86 = vld [vmem:[%s2 + $0xf0] sm:$0xff]
    %v87 = vld [vmem:[%s2 + $0xf8] sm:$0xff]
    %88 = vmatprep.subr.mxu0 0.0
    %89 = vmatpush1.msra.mxu0 %v56
    %90 = vmatprep.subr.mxu0 0.0
    %91 = vmatpush1.msra.mxu0 %v57
    %92 = vmatprep.subr.mxu0 0.0
    %93 = vmatpush1.msra.mxu0 %v58
    %94 = vmatprep.subr.mxu0 0.0
    %95 = vmatpush1.msra.mxu0 %v59
    %96 = vmatprep.subr.mxu0 0.0
    %97 = vmatpush1.msra.mxu0 %v60
    %98 = vmatprep.subr.mxu0 0.0
    %99 = vmatpush1.msra.mxu0 %v61
    %100 = vmatprep.subr.mxu0 0.0
    %101 = vmatpush1.msra.mxu0 %v62
    %102 = vmatprep.subr.mxu0 0.0
    %103 = vmatpush1.msra.mxu0 %v63
    %104 = vmatprep.subr.mxu0 0.0
    %105 = vmatpush1.msra.mxu0 %v64
    %106 = vmatprep.subr.mxu0 0.0
    %107 = vmatpush1.msra.mxu0 %v65
    %108 = vmatprep.subr.mxu0 0.0
    %109 = vmatpush1.msra.mxu0 %v66
    %110 = vmatprep.subr.mxu0 0.0
    %111 = vmatpush1.msra.mxu0 %v67
    %112 = vmatprep.subr.mxu0 0.0
    %113 = vmatpush1.msra.mxu0 %v68
    %114 = vmatprep.subr.mxu0 0.0
    %115 = vmatpush1.msra.mxu0 %v69
    %116 = vmatprep.subr.mxu0 0.0
    %117 = vmatpush1.msra.mxu0 %v70
    %118 = vmatprep.subr.mxu0 0.0
    %119 = vmatpush1.msra.mxu0 %v71
    %120 = vmatprep.subr.mxu0 0.0
    %121 = vmatpush1.msra.mxu0 %v72
    %122 = vmatprep.subr.mxu0 0.0
    %123 = vmatpush1.msra.mxu0 %v73
    %124 = vmatprep.subr.mxu0 0.0
    %125 = vmatpush1.msra.mxu0 %v74
    %126 = vmatprep.subr.mxu0 0.0
    %127 = vmatpush1.msra.mxu0 %v75
    %128 = vmatprep.subr.mxu0 0.0
    %129 = vmatpush1.msra.mxu0 %v76
    %130 = vmatprep.subr.mxu0 0.0
    %131 = vmatpush1.msra.mxu0 %v77
    %132 = vmatprep.subr.mxu0 0.0
    %133 = vmatpush1.msra.mxu0 %v78
    %134 = vmatprep.subr.mxu0 0.0
    %135 = vmatpush1.msra.mxu0 %v79
    %136 = vmatprep.subr.mxu0 0.0
    %137 = vmatpush1.msra.mxu0 %v80
    %138 = vmatprep.subr.mxu0 0.0
    %139 = vmatpush1.msra.mxu0 %v81
    %140 = vmatprep.subr.mxu0 0.0
    %141 = vmatpush1.msra.mxu0 %v82
    %142 = vmatprep.subr.mxu0 0.0
    %143 = vmatpush1.msra.mxu0 %v83
    %144 = vmatprep.subr.mxu0 0.0
    %145 = vmatpush1.msra.mxu0 %v84
    %146 = vmatprep.subr.mxu0 0.0
    %147 = vmatpush1.msra.mxu0 %v85
    %148 = vmatprep.subr.mxu0 0.0
    %149 = vmatpush1.msra.mxu0 %v86
    %150 = vmatprep.subr.mxu0 0.0
    %151 = vmatpush1.msra.mxu0 %v87
    %152 = vmatprep.mubr.f32.mxu0 %v49
    %153 = vmatmul.mubr.f32.gmra.mrb[0].mxu0 %v48
    %v154 = vpop.f32.mrb[0].mxu0
    %v155 = vadd.f32 0.0, %v154
    %v156 = vpop.f32.mrb[0].mxu0
    %157 = vmatprep.mubr.f32.mxu0 %v51
    %158 = vmatmul.mubr.f32.gmra.mrb[0].mxu0 %v50
    %v159 = vpop.f32.mrb[0].mxu0
    %v160 = vadd.f32 0.0, %v159
    %v161 = vpop.f32.mrb[0].mxu0
    %162 = vmatprep.mubr.f32.mxu0 %v53
    %163 = vmatmul.mubr.f32.gmra.mrb[0].mxu0 %v52
    %v164 = vpop.f32.mrb[0].mxu0
    %v165 = vadd.f32 0.0, %v164
    %v166 = vpop.f32.mrb[0].mxu0
    %167 = vmatprep.mubr.f32.mxu0 %v55
    %168 = vmatmul.mubr.f32.gmra.mrb[0].mxu0 %v54
    %v169 = vpop.f32.mrb[0].mxu0
    %v170 = vadd.f32 0.0, %v169
    %v171 = vpop.f32.mrb[0].mxu0
    %172 = vdwg.mxu0
    %v173 = vmul.f32 %v155, 0.0625
    %v174 = vmul.f32 %v160, 0.0625
    %v175 = vmul.f32 %v165, 0.0625
    %v176 = vmul.f32 %v170, 0.0625
    %v177 = vld [vmem:[%s3] sm:$0xff]
    %v178 = vld [vmem:[%s3 + $0x8] sm:$0xff]
    %v179 = vld [vmem:[%s3 + $0x10] sm:$0xff]
    %v180 = vld [vmem:[%s3 + $0x18] sm:$0xff]
    %v181 = vld [vmem:[%s3 + $0x20] sm:$0xff]
    %v182 = vld [vmem:[%s3 + $0x28] sm:$0xff]
    %v183 = vld [vmem:[%s3 + $0x30] sm:$0xff]
    %v184 = vld [vmem:[%s3 + $0x38] sm:$0xff]
    %v185 = vld [vmem:[%s3 + $0x40] sm:$0xff]
    %v186 = vld [vmem:[%s3 + $0x48] sm:$0xff]
    %v187 = vld [vmem:[%s3 + $0x50] sm:$0xff]
    %v188 = vld [vmem:[%s3 + $0x58] sm:$0xff]
    %v189 = vld [vmem:[%s3 + $0x60] sm:$0xff]
    %v190 = vld [vmem:[%s3 + $0x68] sm:$0xff]
    %v191 = vld [vmem:[%s3 + $0x70] sm:$0xff]
    %v192 = vld [vmem:[%s3 + $0x78] sm:$0xff]
    %v193 = vld [vmem:[%s3 + $0x80] sm:$0xff]
    %v194 = vld [vmem:[%s3 + $0x88] sm:$0xff]
    %v195 = vld [vmem:[%s3 + $0x90] sm:$0xff]
    %v196 = vld [vmem:[%s3 + $0x98] sm:$0xff]
    %v197 = vld [vmem:[%s3 + $0xa0] sm:$0xff]
    %v198 = vld [vmem:[%s3 + $0xa8] sm:$0xff]
    %v199 = vld [vmem:[%s3 + $0xb0] sm:$0xff]
    %v200 = vld [vmem:[%s3 + $0xb8] sm:$0xff]
    %v201 = vld [vmem:[%s3 + $0xc0] sm:$0xff]
    %v202 = vld [vmem:[%s3 + $0xc8] sm:$0xff]
    %v203 = vld [vmem:[%s3 + $0xd0] sm:$0xff]
    %v204 = vld [vmem:[%s3 + $0xd8] sm:$0xff]
    %v205 = vld [vmem:[%s3 + $0xe0] sm:$0xff]
    %v206 = vld [vmem:[%s3 + $0xe8] sm:$0xff]
    %v207 = vld [vmem:[%s3 + $0xf0] sm:$0xff]
    %v208 = vld [vmem:[%s3 + $0xf8] sm:$0xff]
    %209 = vmatprep.subr.mxu0 0.0
    %210 = vmatpush1.msra.mxu0 %v177
    %211 = vmatprep.subr.mxu0 0.0
    %212 = vmatpush1.msra.mxu0 %v178
    %213 = vmatprep.subr.mxu0 0.0
    %214 = vmatpush1.msra.mxu0 %v179
    %215 = vmatprep.subr.mxu0 0.0
    %216 = vmatpush1.msra.mxu0 %v180
    %217 = vmatprep.subr.mxu0 0.0
    %218 = vmatpush1.msra.mxu0 %v181
    %219 = vmatprep.subr.mxu0 0.0
    %220 = vmatpush1.msra.mxu0 %v182
    %221 = vmatprep.subr.mxu0 0.0
    %222 = vmatpush1.msra.mxu0 %v183
    %223 = vmatprep.subr.mxu0 0.0
    %224 = vmatpush1.msra.mxu0 %v184
    %225 = vmatprep.subr.mxu0 0.0
    %226 = vmatpush1.msra.mxu0 %v185
    %227 = vmatprep.subr.mxu0 0.0
    %228 = vmatpush1.msra.mxu0 %v186
    %229 = vmatprep.subr.mxu0 0.0
    %230 = vmatpush1.msra.mxu0 %v187
    %231 = vmatprep.subr.mxu0 0.0
    %232 = vmatpush1.msra.mxu0 %v188
    %233 = vmatprep.subr.mxu0 0.0
    %234 = vmatpush1.msra.mxu0 %v189
    %235 = vmatprep.subr.mxu0 0.0
    %236 = vmatpush1.msra.mxu0 %v190
    %237 = vmatprep.subr.mxu0 0.0
    %238 = vmatpush1.msra.mxu0 %v191
    %239 = vmatprep.subr.mxu0 0.0
    %240 = vmatpush1.msra.mxu0 %v192
    %241 = vmatprep.subr.mxu0 0.0
    %242 = vmatpush1.msra.mxu0 %v193
    %243 = vmatprep.subr.mxu0 0.0
    %244 = vmatpush1.msra.mxu0 %v194
    %245 = vmatprep.subr.mxu0 0.0
    %246 = vmatpush1.msra.mxu0 %v195
    %247 = vmatprep.subr.mxu0 0.0
    %248 = vmatpush1.msra.mxu0 %v196
    %249 = vmatprep.subr.mxu0 0.0
    %250 = vmatpush1.msra.mxu0 %v197
    %251 = vmatprep.subr.mxu0 0.0
    %252 = vmatpush1.msra.mxu0 %v198
    %253 = vmatprep.subr.mxu0 0.0
    %254 = vmatpush1.msra.mxu0 %v199
    %255 = vmatprep.subr.mxu0 0.0
    %256 = vmatpush1.msra.mxu0 %v200
    %257 = vmatprep.subr.mxu0 0.0
    %258 = vmatpush1.msra.mxu0 %v201
    %259 = vmatprep.subr.mxu0 0.0
    %260 = vmatpush1.msra.mxu0 %v202
    %261 = vmatprep.subr.mxu0 0.0
    %262 = vmatpush1.msra.mxu0 %v203
    %263 = vmatprep.subr.mxu0 0.0
    %264 = vmatpush1.msra.mxu0 %v204
    %265 = vmatprep.subr.mxu0 0.0
    %266 = vmatpush1.msra.mxu0 %v205
    %267 = vmatprep.subr.mxu0 0.0
    %268 = vmatpush1.msra.mxu0 %v206
    %269 = vmatprep.subr.mxu0 0.0
    %270 = vmatpush1.msra.mxu0 %v207
    %271 = vmatprep.subr.mxu0 0.0
    %272 = vmatpush1.msra.mxu0 %v208
    %273 = vmatprep.mubr.f32.mxu0 %v49
    %274 = vmatmul.mubr.f32.gmra.mrb[0].mxu0 %v48
    %v275 = vpop.f32.mrb[0].mxu0
    %v276 = vadd.f32 0.0, %v275
    %v277 = vpop.f32.mrb[0].mxu0
    %278 = vmatprep.mubr.f32.mxu0 %v51
    %279 = vmatmul.mubr.f32.gmra.mrb[0].mxu0 %v50
    %v280 = vpop.f32.mrb[0].mxu0
    %v281 = vadd.f32 0.0, %v280
    %v282 = vpop.f32.mrb[0].mxu0
    %283 = vmatprep.mubr.f32.mxu0 %v53
    %284 = vmatmul.mubr.f32.gmra.mrb[0].mxu0 %v52
    %v285 = vpop.f32.mrb[0].mxu0
    %v286 = vadd.f32 0.0, %v285
    %v287 = vpop.f32.mrb[0].mxu0
    %288 = vmatprep.mubr.f32.mxu0 %v55
    %289 = vmatmul.mubr.f32.gmra.mrb[0].mxu0 %v54
    %v290 = vpop.f32.mrb[0].mxu0
    %v291 = vadd.f32 0.0, %v290
    %v292 = vpop.f32.mrb[0].mxu0
    %293 = vdwg.mxu0
    %v294 = vmul.f32 %v276, 0.0625
    %v295 = vmul.f32 %v281, 0.0625
    %v296 = vmul.f32 %v286, 0.0625
    %v297 = vmul.f32 %v291, 0.0625
    %v298 = vld [vmem:[%s6] sm:$0xff]
    %v299 = vld [vmem:[%s6 + $0x8] sm:$0xff]
    %v300 = vld [vmem:[%s6 + $0x10] sm:$0xff]
    %v301 = vld [vmem:[%s6 + $0x18] sm:$0xff]
    %v302 = vld [vmem:[%s7] sm:$0xff]
    %v303 = vld [vmem:[%s7 + $0x8] sm:$0xff]
    %v304 = vld [vmem:[%s7 + $0x10] sm:$0xff]
    %v305 = vld [vmem:[%s7 + $0x18] sm:$0xff]
    %307 = vset.pattern.permute.xlu0 0
    %308 = vperm.xlu0 %307, %v302
    %v309 = vpop.permute.xlu0 %308
    %312 = vset.pattern.permute.xlu0 0
    %313 = vperm.xlu0 %312, %v303
    %v314 = vpop.permute.xlu0 %313
    %317 = vset.pattern.permute.xlu0 0
    %318 = vperm.xlu0 %317, %v304
    %v319 = vpop.permute.xlu0 %318
    %322 = vset.pattern.permute.xlu0 0
    %323 = vperm.xlu0 %322, %v305
    %v324 = vpop.permute.xlu0 %323
    %vm326 = vcmask 261120
    %v328 = vsel %vm326, %v298, 0
    %v331 = vsel %vm326, %v299, 0
    %v334 = vsel %vm326, %v300, 0
    %v337 = vsel %vm326, %v301, 0
    %339 = vmatprep.subr.mxu0 0.0
    %340 = vmatpush1.msra.mxu0 %v173
    %341 = vmatprep.subr.mxu0 0.0
    %342 = vmatpush1.msra.mxu0 %v174
    %343 = vmatprep.subr.mxu0 0.0
    %344 = vmatpush1.msra.mxu0 %v175
    %345 = vmatprep.subr.mxu0 0.0
    %346 = vmatpush1.msra.mxu0 %v176
    %347 = vmatprep.subr.mxu0 0.0
    %348 = vmatpush1.msra.mxu0 0.0
    %349 = vmatprep.subr.mxu0 0.0
    %350 = vmatpush1.msra.mxu0 0.0
    %351 = vmatprep.subr.mxu0 0.0
    %352 = vmatpush1.msra.mxu0 0.0
    %353 = vmatprep.subr.mxu0 0.0
    %354 = vmatpush1.msra.mxu0 0.0
    %355 = vmatprep.subr.mxu0 0.0
    %356 = vmatpush1.msra.mxu0 0.0
    %357 = vmatprep.subr.mxu0 0.0
    %358 = vmatpush1.msra.mxu0 0.0
    %359 = vmatprep.subr.mxu0 0.0
    %360 = vmatpush1.msra.mxu0 0.0
    %361 = vmatprep.subr.mxu0 0.0
    %362 = vmatpush1.msra.mxu0 0.0
    %363 = vmatprep.subr.mxu0 0.0
    %364 = vmatpush1.msra.mxu0 0.0
    %365 = vmatprep.subr.mxu0 0.0
    %366 = vmatpush1.msra.mxu0 0.0
    %367 = vmatprep.subr.mxu0 0.0
    %368 = vmatpush1.msra.mxu0 0.0
    %369 = vmatprep.subr.mxu0 0.0
    %370 = vmatpush1.msra.mxu0 0.0
    %371 = vmatprep.subr.mxu0 0.0
    %372 = vmatpush1.msra.mxu0 0.0
    %373 = vmatprep.subr.mxu0 0.0
    %374 = vmatpush1.msra.mxu0 0.0
    %375 = vmatprep.subr.mxu0 0.0
    %376 = vmatpush1.msra.mxu0 0.0
    %377 = vmatprep.subr.mxu0 0.0
    %378 = vmatpush1.msra.mxu0 0.0
    %379 = vmatprep.subr.mxu0 0.0
    %380 = vmatpush1.msra.mxu0 0.0
    %381 = vmatprep.subr.mxu0 0.0
    %382 = vmatpush1.msra.mxu0 0.0
    %383 = vmatprep.subr.mxu0 0.0
    %384 = vmatpush1.msra.mxu0 0.0
    %385 = vmatprep.subr.mxu0 0.0
    %386 = vmatpush1.msra.mxu0 0.0
    %387 = vmatprep.subr.mxu0 0.0
    %388 = vmatpush1.msra.mxu0 0.0
    %389 = vmatprep.subr.mxu0 0.0
    %390 = vmatpush1.msra.mxu0 0.0
    %391 = vmatprep.subr.mxu0 0.0
    %392 = vmatpush1.msra.mxu0 0.0
    %393 = vmatprep.subr.mxu0 0.0
    %394 = vmatpush1.msra.mxu0 0.0
    %395 = vmatprep.subr.mxu0 0.0
    %396 = vmatpush1.msra.mxu0 0.0
    %397 = vmatprep.subr.mxu0 0.0
    %398 = vmatpush1.msra.mxu0 0.0
    %399 = vmatprep.subr.mxu0 0.0
    %400 = vmatpush1.msra.mxu0 0.0
    %401 = vmatprep.subr.mxu0 0.0
    %402 = vmatpush1.msra.mxu0 0.0
    %403 = vmatprep.mubr.f32.mxu0 0.0
    %404 = vmatmul.mubr.f32.gmra.mrb[0].mxu0 %v328
    %v405 = vpop.f32.mrb[0].mxu0
    %v406 = vadd.f32 %v309, %v405
    %v407 = vpop.f32.mrb[0].mxu0
    %408 = vmatprep.mubr.f32.mxu0 0.0
    %409 = vmatmul.mubr.f32.gmra.mrb[0].mxu0 %v331
    %v410 = vpop.f32.mrb[0].mxu0
    %v411 = vadd.f32 %v314, %v410
    %v412 = vpop.f32.mrb[0].mxu0
    %413 = vmatprep.mubr.f32.mxu0 0.0
    %414 = vmatmul.mubr.f32.gmra.mrb[0].mxu0 %v334
    %v415 = vpop.f32.mrb[0].mxu0
    %v416 = vadd.f32 %v319, %v415
    %v417 = vpop.f32.mrb[0].mxu0
    %418 = vmatprep.mubr.f32.mxu0 0.0
    %419 = vmatmul.mubr.f32.gmra.mrb[0].mxu0 %v337
    %v420 = vpop.f32.mrb[0].mxu0
    %v421 = vadd.f32 %v324, %v420
    %v422 = vpop.f32.mrb[0].mxu0
    %423 = vdwg.mxu0
    %v424 = vxor.u32 %v406, 2147483648
    %v425 = vxor.u32 %v411, 2147483648
    %v426 = vxor.u32 %v416, 2147483648
    %v427 = vxor.u32 %v421, 2147483648
    %v428 = vmul.f32 %v424, 1.442695
    %v429 = vpow.pop %v428
    %v430 = vmul.f32 %v425, 1.442695
    %v431 = vpow.pop %v430
    %v432 = vmul.f32 %v426, 1.442695
    %v433 = vpow.pop %v432
    %v434 = vmul.f32 %v427, 1.442695
    %v435 = vpow.pop %v434
    %v436 = vadd.f32 %v429, 1.0
    %v437 = vadd.f32 %v431, 1.0
    %v438 = vadd.f32 %v433, 1.0
    %v439 = vadd.f32 %v435, 1.0
    %v440 = vrcp.pop %v436
    %v441 = vmul.f32 1.0, %v440
    %v442 = vrcp.pop %v437
    %v443 = vmul.f32 1.0, %v442
    %v444 = vrcp.pop %v438
    %v445 = vmul.f32 1.0, %v444
    %v446 = vrcp.pop %v439
    %v447 = vmul.f32 1.0, %v446
    %448 = vmatprep.subr.mxu0 0.0
    %449 = vmatpush1.msra.mxu0 %v294
    %450 = vmatprep.subr.mxu0 0.0
    %451 = vmatpush1.msra.mxu0 %v295
    %452 = vmatprep.subr.mxu0 0.0
    %453 = vmatpush1.msra.mxu0 %v296
    %454 = vmatprep.subr.mxu0 0.0
    %455 = vmatpush1.msra.mxu0 %v297
    %456 = vmatprep.subr.mxu0 0.0
    %457 = vmatpush1.msra.mxu0 0.0
    %458 = vmatprep.subr.mxu0 0.0
    %459 = vmatpush1.msra.mxu0 0.0
    %460 = vmatprep.subr.mxu0 0.0
    %461 = vmatpush1.msra.mxu0 0.0
    %462 = vmatprep.subr.mxu0 0.0
    %463 = vmatpush1.msra.mxu0 0.0
    %464 = vmatprep.subr.mxu0 0.0
    %465 = vmatpush1.msra.mxu0 0.0
    %466 = vmatprep.subr.mxu0 0.0
    %467 = vmatpush1.msra.mxu0 0.0
    %468 = vmatprep.subr.mxu0 0.0
    %469 = vmatpush1.msra.mxu0 0.0
    %470 = vmatprep.subr.mxu0 0.0
    %471 = vmatpush1.msra.mxu0 0.0
    %472 = vmatprep.subr.mxu0 0.0
    %473 = vmatpush1.msra.mxu0 0.0
    %474 = vmatprep.subr.mxu0 0.0
    %475 = vmatpush1.msra.mxu0 0.0
    %476 = vmatprep.subr.mxu0 0.0
    %477 = vmatpush1.msra.mxu0 0.0
    %478 = vmatprep.subr.mxu0 0.0
    %479 = vmatpush1.msra.mxu0 0.0
    %480 = vmatprep.subr.mxu0 0.0
    %481 = vmatpush1.msra.mxu0 0.0
    %482 = vmatprep.subr.mxu0 0.0
    %483 = vmatpush1.msra.mxu0 0.0
    %484 = vmatprep.subr.mxu0 0.0
    %485 = vmatpush1.msra.mxu0 0.0
    %486 = vmatprep.subr.mxu0 0.0
    %487 = vmatpush1.msra.mxu0 0.0
    %488 = vmatprep.subr.mxu0 0.0
    %489 = vmatpush1.msra.mxu0 0.0
    %490 = vmatprep.subr.mxu0 0.0
    %491 = vmatpush1.msra.mxu0 0.0
    %492 = vmatprep.subr.mxu0 0.0
    %493 = vmatpush1.msra.mxu0 0.0
    %494 = vmatprep.subr.mxu0 0.0
    %495 = vmatpush1.msra.mxu0 0.0
    %496 = vmatprep.subr.mxu0 0.0
    %497 = vmatpush1.msra.mxu0 0.0
    %498 = vmatprep.subr.mxu0 0.0
    %499 = vmatpush1.msra.mxu0 0.0
    %500 = vmatprep.subr.mxu0 0.0
    %501 = vmatpush1.msra.mxu0 0.0
    %502 = vmatprep.subr.mxu0 0.0
    %503 = vmatpush1.msra.mxu0 0.0
    %504 = vmatprep.subr.mxu0 0.0
    %505 = vmatpush1.msra.mxu0 0.0
    %506 = vmatprep.subr.mxu0 0.0
    %507 = vmatpush1.msra.mxu0 0.0
    %508 = vmatprep.subr.mxu0 0.0
    %509 = vmatpush1.msra.mxu0 0.0
    %510 = vmatprep.subr.mxu0 0.0
    %511 = vmatpush1.msra.mxu0 0.0
    %512 = vmatprep.mubr.f32.mxu0 0.0
    %513 = vmatmul.mubr.f32.gmra.mrb[0].mxu0 %v328
    %v514 = vpop.f32.mrb[0].mxu0
    %v515 = vadd.f32 %v309, %v514
    %v516 = vpop.f32.mrb[0].mxu0
    %517 = vmatprep.mubr.f32.mxu0 0.0
    %518 = vmatmul.mubr.f32.gmra.mrb[0].mxu0 %v331
    %v519 = vpop.f32.mrb[0].mxu0
    %v520 = vadd.f32 %v314, %v519
    %v521 = vpop.f32.mrb[0].mxu0
    %522 = vmatprep.mubr.f32.mxu0 0.0
    %523 = vmatmul.mubr.f32.gmra.mrb[0].mxu0 %v334
    %v524 = vpop.f32.mrb[0].mxu0
    %v525 = vadd.f32 %v319, %v524
    %v526 = vpop.f32.mrb[0].mxu0
    %527 = vmatprep.mubr.f32.mxu0 0.0
    %528 = vmatmul.mubr.f32.gmra.mrb[0].mxu0 %v337
    %v529 = vpop.f32.mrb[0].mxu0
    %v530 = vadd.f32 %v324, %v529
    %v531 = vpop.f32.mrb[0].mxu0
    %532 = vdwg.mxu0
    %v533 = vxor.u32 %v515, 2147483648
    %v534 = vxor.u32 %v520, 2147483648
    %v535 = vxor.u32 %v525, 2147483648
    %v536 = vxor.u32 %v530, 2147483648
    %v537 = vmul.f32 %v533, 1.442695
    %v538 = vpow.pop %v537
    %v539 = vmul.f32 %v534, 1.442695
    %v540 = vpow.pop %v539
    %v541 = vmul.f32 %v535, 1.442695
    %v542 = vpow.pop %v541
    %v543 = vmul.f32 %v536, 1.442695
    %v544 = vpow.pop %v543
    %v545 = vadd.f32 %v538, 1.0
    %v546 = vadd.f32 %v540, 1.0
    %v547 = vadd.f32 %v542, 1.0
    %v548 = vadd.f32 %v544, 1.0
    %v549 = vrcp.pop %v545
    %v550 = vmul.f32 1.0, %v549
    %v551 = vrcp.pop %v546
    %v552 = vmul.f32 1.0, %v551
    %v553 = vrcp.pop %v547
    %v554 = vmul.f32 1.0, %v553
    %v555 = vrcp.pop %v548
    %v556 = vmul.f32 1.0, %v555
    %v557 = vld [vmem:[%s4] sm:$0xff]
    %v558 = vld [vmem:[%s4 + $0x8] sm:$0xff]
    %v559 = vld [vmem:[%s4 + $0x10] sm:$0xff]
    %v560 = vld [vmem:[%s4 + $0x18] sm:$0xff]
    %vm561 = vcmask 130048
    %v563 = vsel %vm561, %v441, 0
    %v566 = vsel %vm561, %v443, 0
    %v569 = vsel %vm561, %v445, 0
    %v572 = vsel %vm561, %v447, 0
    %574 = vmatprep.subr.mxu0 %v558
    %575 = vmatpush1.msra.mxu0 %v557
    %576 = vmatprep.subr.mxu0 %v560
    %577 = vmatpush1.msra.mxu0 %v559
    %578 = vmatprep.subr.mxu0 0.0
    %579 = vmatpush1.msra.mxu0 0.0
    %580 = vmatprep.subr.mxu0 0.0
    %581 = vmatpush1.msra.mxu0 0.0
    %582 = vmatprep.subr.mxu0 0.0
    %583 = vmatpush1.msra.mxu0 0.0
    %584 = vmatprep.subr.mxu0 0.0
    %585 = vmatpush1.msra.mxu0 0.0
    %586 = vmatprep.subr.mxu0 0.0
    %587 = vmatpush1.msra.mxu0 0.0
    %588 = vmatprep.subr.mxu0 0.0
    %589 = vmatpush1.msra.mxu0 0.0
    %590 = vmatprep.subr.mxu0 0.0
    %591 = vmatpush1.msra.mxu0 0.0
    %592 = vmatprep.subr.mxu0 0.0
    %593 = vmatpush1.msra.mxu0 0.0
    %594 = vmatprep.subr.mxu0 0.0
    %595 = vmatpush1.msra.mxu0 0.0
    %596 = vmatprep.subr.mxu0 0.0
    %597 = vmatpush1.msra.mxu0 0.0
    %598 = vmatprep.subr.mxu0 0.0
    %599 = vmatpush1.msra.mxu0 0.0
    %600 = vmatprep.subr.mxu0 0.0
    %601 = vmatpush1.msra.mxu0 0.0
    %602 = vmatprep.subr.mxu0 0.0
    %603 = vmatpush1.msra.mxu0 0.0
    %604 = vmatprep.subr.mxu0 0.0
    %605 = vmatpush1.msra.mxu0 0.0
    %606 = vmatprep.subr.mxu0 0.0
    %607 = vmatpush1.msra.mxu0 0.0
    %608 = vmatprep.subr.mxu0 0.0
    %609 = vmatpush1.msra.mxu0 0.0
    %610 = vmatprep.subr.mxu0 0.0
    %611 = vmatpush1.msra.mxu0 0.0
    %612 = vmatprep.subr.mxu0 0.0
    %613 = vmatpush1.msra.mxu0 0.0
    %614 = vmatprep.subr.mxu0 0.0
    %615 = vmatpush1.msra.mxu0 0.0
    %616 = vmatprep.subr.mxu0 0.0
    %617 = vmatpush1.msra.mxu0 0.0
    %618 = vmatprep.subr.mxu0 0.0
    %619 = vmatpush1.msra.mxu0 0.0
    %620 = vmatprep.subr.mxu0 0.0
    %621 = vmatpush1.msra.mxu0 0.0
    %622 = vmatprep.subr.mxu0 0.0
    %623 = vmatpush1.msra.mxu0 0.0
    %624 = vmatprep.subr.mxu0 0.0
    %625 = vmatpush1.msra.mxu0 0.0
    %626 = vmatprep.subr.mxu0 0.0
    %627 = vmatpush1.msra.mxu0 0.0
    %628 = vmatprep.subr.mxu0 0.0
    %629 = vmatpush1.msra.mxu0 0.0
    %630 = vmatprep.subr.mxu0 0.0
    %631 = vmatpush1.msra.mxu0 0.0
    %632 = vmatprep.subr.mxu0 0.0
    %633 = vmatpush1.msra.mxu0 0.0
    %634 = vmatprep.subr.mxu0 0.0
    %635 = vmatpush1.msra.mxu0 0.0
    %636 = vmatprep.subr.mxu0 0.0
    %637 = vmatpush1.msra.mxu0 0.0
    %638 = vmatprep.mubr.f32.mxu0 0.0
    %639 = vmatmul.mubr.f32.gmra.mrb[0].mxu0 %v563
    %v640 = vpop.f32.mrb[0].mxu0
    %v641 = vadd.f32 0.0, %v640
    %v642 = vpop.f32.mrb[0].mxu0
    %v643 = vadd.f32 0.0, %v642
    %644 = vmatprep.mubr.f32.mxu0 0.0
    %645 = vmatmul.mubr.f32.gmra.mrb[0].mxu0 %v566
    %v646 = vpop.f32.mrb[0].mxu0
    %v647 = vadd.f32 0.0, %v646
    %v648 = vpop.f32.mrb[0].mxu0
    %v649 = vadd.f32 0.0, %v648
    %650 = vmatprep.mubr.f32.mxu0 0.0
    %651 = vmatmul.mubr.f32.gmra.mrb[0].mxu0 %v569
    %v652 = vpop.f32.mrb[0].mxu0
    %v653 = vadd.f32 0.0, %v652
    %v654 = vpop.f32.mrb[0].mxu0
    %v655 = vadd.f32 0.0, %v654
    %656 = vmatprep.mubr.f32.mxu0 0.0
    %657 = vmatmul.mubr.f32.gmra.mrb[0].mxu0 %v572
    %v658 = vpop.f32.mrb[0].mxu0
    %v659 = vadd.f32 0.0, %v658
    %v660 = vpop.f32.mrb[0].mxu0
    %v661 = vadd.f32 0.0, %v660
    %662 = vdwg.mxu0
    %v663 = vld [vmem:[%s5] sm:$0xff]
    %v664 = vld [vmem:[%s5 + $0x8] sm:$0xff]
    %v665 = vld [vmem:[%s5 + $0x10] sm:$0xff]
    %v666 = vld [vmem:[%s5 + $0x18] sm:$0xff]
    %v668 = vsel %vm561, %v550, 0
    %v671 = vsel %vm561, %v552, 0
    %v674 = vsel %vm561, %v554, 0
    %v677 = vsel %vm561, %v556, 0
    %679 = vmatprep.subr.mxu0 %v664
    %680 = vmatpush1.msra.mxu0 %v663
    %681 = vmatprep.subr.mxu0 %v666
    %682 = vmatpush1.msra.mxu0 %v665
    %683 = vmatprep.subr.mxu0 0.0
    %684 = vmatpush1.msra.mxu0 0.0
    %685 = vmatprep.subr.mxu0 0.0
    %686 = vmatpush1.msra.mxu0 0.0
    %687 = vmatprep.subr.mxu0 0.0
    %688 = vmatpush1.msra.mxu0 0.0
    %689 = vmatprep.subr.mxu0 0.0
    %690 = vmatpush1.msra.mxu0 0.0
    %691 = vmatprep.subr.mxu0 0.0
    %692 = vmatpush1.msra.mxu0 0.0
    %693 = vmatprep.subr.mxu0 0.0
    %694 = vmatpush1.msra.mxu0 0.0
    %695 = vmatprep.subr.mxu0 0.0
    %696 = vmatpush1.msra.mxu0 0.0
    %697 = vmatprep.subr.mxu0 0.0
    %698 = vmatpush1.msra.mxu0 0.0
    %699 = vmatprep.subr.mxu0 0.0
    %700 = vmatpush1.msra.mxu0 0.0
    %701 = vmatprep.subr.mxu0 0.0
    %702 = vmatpush1.msra.mxu0 0.0
    %703 = vmatprep.subr.mxu0 0.0
    %704 = vmatpush1.msra.mxu0 0.0
    %705 = vmatprep.subr.mxu0 0.0
    %706 = vmatpush1.msra.mxu0 0.0
    %707 = vmatprep.subr.mxu0 0.0
    %708 = vmatpush1.msra.mxu0 0.0
    %709 = vmatprep.subr.mxu0 0.0
    %710 = vmatpush1.msra.mxu0 0.0
    %711 = vmatprep.subr.mxu0 0.0
    %712 = vmatpush1.msra.mxu0 0.0
    %713 = vmatprep.subr.mxu0 0.0
    %714 = vmatpush1.msra.mxu0 0.0
    %715 = vmatprep.subr.mxu0 0.0
    %716 = vmatpush1.msra.mxu0 0.0
    %717 = vmatprep.subr.mxu0 0.0
    %718 = vmatpush1.msra.mxu0 0.0
    %719 = vmatprep.subr.mxu0 0.0
    %720 = vmatpush1.msra.mxu0 0.0
    %721 = vmatprep.subr.mxu0 0.0
    %722 = vmatpush1.msra.mxu0 0.0
    %723 = vmatprep.subr.mxu0 0.0
    %724 = vmatpush1.msra.mxu0 0.0
    %725 = vmatprep.subr.mxu0 0.0
    %726 = vmatpush1.msra.mxu0 0.0
    %727 = vmatprep.subr.mxu0 0.0
    %728 = vmatpush1.msra.mxu0 0.0
    %729 = vmatprep.subr.mxu0 0.0
    %730 = vmatpush1.msra.mxu0 0.0
    %731 = vmatprep.subr.mxu0 0.0
    %732 = vmatpush1.msra.mxu0 0.0
    %733 = vmatprep.subr.mxu0 0.0
    %734 = vmatpush1.msra.mxu0 0.0
    %735 = vmatprep.subr.mxu0 0.0
    %736 = vmatpush1.msra.mxu0 0.0
    %737 = vmatprep.subr.mxu0 0.0
    %738 = vmatpush1.msra.mxu0 0.0
    %739 = vmatprep.subr.mxu0 0.0
    %740 = vmatpush1.msra.mxu0 0.0
    %741 = vmatprep.subr.mxu0 0.0
    %742 = vmatpush1.msra.mxu0 0.0
    %743 = vmatprep.mubr.f32.mxu0 0.0
    %744 = vmatmul.mubr.f32.gmra.mrb[0].mxu0 %v668
    %v745 = vpop.f32.mrb[0].mxu0
    %v746 = vadd.f32 0.0, %v745
    %v747 = vpop.f32.mrb[0].mxu0
    %v748 = vadd.f32 0.0, %v747
    %749 = vmatprep.mubr.f32.mxu0 0.0
    %750 = vmatmul.mubr.f32.gmra.mrb[0].mxu0 %v671
    %v751 = vpop.f32.mrb[0].mxu0
    %v752 = vadd.f32 0.0, %v751
    %v753 = vpop.f32.mrb[0].mxu0
    %v754 = vadd.f32 0.0, %v753
    %755 = vmatprep.mubr.f32.mxu0 0.0
    %756 = vmatmul.mubr.f32.gmra.mrb[0].mxu0 %v674
    %v757 = vpop.f32.mrb[0].mxu0
    %v758 = vadd.f32 0.0, %v757
    %v759 = vpop.f32.mrb[0].mxu0
    %v760 = vadd.f32 0.0, %v759
    %761 = vmatprep.mubr.f32.mxu0 0.0
    %762 = vmatmul.mubr.f32.gmra.mrb[0].mxu0 %v677
    %v763 = vpop.f32.mrb[0].mxu0
    %v764 = vadd.f32 0.0, %v763
    %v765 = vpop.f32.mrb[0].mxu0
    %v766 = vadd.f32 0.0, %v765
    %767 = vdwg.mxu0
    %v768 = vmul.f32 %v641, %v746
    %v769 = vmul.f32 %v643, %v748
    %v770 = vmul.f32 %v647, %v752
    %v771 = vmul.f32 %v649, %v754
    %v772 = vmul.f32 %v653, %v758
    %v773 = vmul.f32 %v655, %v760
    %v774 = vmul.f32 %v659, %v764
    %v775 = vmul.f32 %v661, %v766
    %v776 = vmul.f32 %v48, %v768
    %v777 = vmul.f32 %v49, %v769
    %v778 = vmul.f32 %v50, %v770
    %v779 = vmul.f32 %v51, %v771
    %v780 = vmul.f32 %v52, %v772
    %v781 = vmul.f32 %v53, %v773
    %v782 = vmul.f32 %v54, %v774
    %v783 = vmul.f32 %v55, %v775
    %v784 = vadd.f32 %v776, %v777
    %785 = vadd.xlane.f32.xlu0 %v784
    %v786 = vpop.xlane.xlu0 %785
    %v787 = vadd.f32 %v778, %v779
    %788 = vadd.xlane.f32.xlu0 %v787
    %v789 = vpop.xlane.xlu0 %788
    %v790 = vadd.f32 %v780, %v781
    %791 = vadd.xlane.f32.xlu0 %v790
    %v792 = vpop.xlane.xlu0 %791
    %v793 = vadd.f32 %v782, %v783
    %794 = vadd.xlane.f32.xlu0 %v793
    %v795 = vpop.xlane.xlu0 %794
    %v796 = vrcp.pop 256.0
    %v797 = vmul.f32 %v786, %v796
    %v798 = vmul.f32 %v789, %v796
    %v799 = vmul.f32 %v792, %v796
    %v800 = vmul.f32 %v795, %v796
    %v801 = vsub.f32 %v776, %v797
    %v802 = vsub.f32 %v777, %v797
    %v803 = vsub.f32 %v778, %v798
    %v804 = vsub.f32 %v779, %v798
    %v805 = vsub.f32 %v780, %v799
    %v806 = vsub.f32 %v781, %v799
    %v807 = vsub.f32 %v782, %v800
    %v808 = vsub.f32 %v783, %v800
    %v809 = vmul.f32 %v801, %v801
    %v810 = vmul.f32 %v802, %v802
    %v811 = vmul.f32 %v803, %v803
    %v812 = vmul.f32 %v804, %v804
    %v813 = vmul.f32 %v805, %v805
    %v814 = vmul.f32 %v806, %v806
    %v815 = vmul.f32 %v807, %v807
    %v816 = vmul.f32 %v808, %v808
    %v817 = vadd.f32 %v809, %v810
    %818 = vadd.xlane.f32.xlu0 %v817
    %v819 = vpop.xlane.xlu0 %818
    %v820 = vadd.f32 %v811, %v812
    %821 = vadd.xlane.f32.xlu0 %v820
    %v822 = vpop.xlane.xlu0 %821
    %v823 = vadd.f32 %v813, %v814
    %824 = vadd.xlane.f32.xlu0 %v823
    %v825 = vpop.xlane.xlu0 %824
    %v826 = vadd.f32 %v815, %v816
    %827 = vadd.xlane.f32.xlu0 %v826
    %v828 = vpop.xlane.xlu0 %827
    %v829 = vmul.f32 %v819, %v796
    %v830 = vmul.f32 %v822, %v796
    %v831 = vmul.f32 %v825, %v796
    %v832 = vmul.f32 %v828, %v796
    %v833 = vadd.f32 %v829, 1e-05
    %v834 = vadd.f32 %v830, 1e-05
    %v835 = vadd.f32 %v831, 1e-05
    %v836 = vadd.f32 %v832, 1e-05
    %v837 = vrsqrt.pop %v833
    %v838 = vrsqrt.pop %v834
    %v839 = vrsqrt.pop %v835
    %v840 = vrsqrt.pop %v836
    %v841 = vmul.f32 %v801, %v837
    %v842 = vmul.f32 %v802, %v837
    %v843 = vmul.f32 %v803, %v838
    %v844 = vmul.f32 %v804, %v838
    %v845 = vmul.f32 %v805, %v839
    %v846 = vmul.f32 %v806, %v839
    %v847 = vmul.f32 %v807, %v840
    %v848 = vmul.f32 %v808, %v840
    %v849 = vld [vmem:[%s10] sm:$0xff]
    %v850 = vld [vmem:[%s10 + $0x8] sm:$0xff]
    %v851 = vld [vmem:[%s10 + $0x10] sm:$0xff]
    %v852 = vld [vmem:[%s10 + $0x18] sm:$0xff]
    %854 = vset.pattern.permute.xlu0 0
    %855 = vperm.xlu0 %854, %v849
    %v856 = vpop.permute.xlu0 %855
    %859 = vset.pattern.permute.xlu0 0
    %860 = vperm.xlu0 %859, %v850
    %v861 = vpop.permute.xlu0 %860
    %864 = vset.pattern.permute.xlu0 0
    %865 = vperm.xlu0 %864, %v851
    %v866 = vpop.permute.xlu0 %865
    %869 = vset.pattern.permute.xlu0 0
    %870 = vperm.xlu0 %869, %v852
    %v871 = vpop.permute.xlu0 %870
    %v873 = vmul.f32 %v841, %v856
    %v874 = vmul.f32 %v842, %v856
    %v875 = vmul.f32 %v843, %v861
    %v876 = vmul.f32 %v844, %v861
    %v877 = vmul.f32 %v845, %v866
    %v878 = vmul.f32 %v846, %v866
    %v879 = vmul.f32 %v847, %v871
    %v880 = vmul.f32 %v848, %v871
    %v881 = vld [vmem:[%s11] sm:$0xff]
    %v882 = vld [vmem:[%s11 + $0x8] sm:$0xff]
    %v883 = vld [vmem:[%s11 + $0x10] sm:$0xff]
    %v884 = vld [vmem:[%s11 + $0x18] sm:$0xff]
    %886 = vset.pattern.permute.xlu0 0
    %887 = vperm.xlu0 %886, %v881
    %v888 = vpop.permute.xlu0 %887
    %891 = vset.pattern.permute.xlu0 0
    %892 = vperm.xlu0 %891, %v882
    %v893 = vpop.permute.xlu0 %892
    %896 = vset.pattern.permute.xlu0 0
    %897 = vperm.xlu0 %896, %v883
    %v898 = vpop.permute.xlu0 %897
    %901 = vset.pattern.permute.xlu0 0
    %902 = vperm.xlu0 %901, %v884
    %v903 = vpop.permute.xlu0 %902
    %v905 = vadd.f32 %v873, %v888
    %v906 = vadd.f32 %v874, %v888
    %v907 = vadd.f32 %v875, %v893
    %v908 = vadd.f32 %v876, %v893
    %v909 = vadd.f32 %v877, %v898
    %v910 = vadd.f32 %v878, %v898
    %v911 = vadd.f32 %v879, %v903
    %v912 = vadd.f32 %v880, %v903
    %917 = vrot.lane.b32.xlu0 %v49, 17
    %v918 = vpop.permute.xlu0 %917
    %919 = vrot.lane.b32.xlu0 %v51, 17
    %v920 = vpop.permute.xlu0 %919
    %921 = vrot.lane.b32.xlu0 %v53, 17
    %v922 = vpop.permute.xlu0 %921
    %923 = vrot.lane.b32.xlu0 %v55, 17
    %v924 = vpop.permute.xlu0 %923
    %933 = vrot.lane.b32.xlu0 %v48, 17
    %v934 = vpop.permute.xlu0 %933
    %935 = vrot.lane.b32.xlu0 %v50, 17
    %v936 = vpop.permute.xlu0 %935
    %937 = vrot.lane.b32.xlu0 %v52, 17
    %v938 = vpop.permute.xlu0 %937
    %939 = vrot.lane.b32.xlu0 %v54, 17
    %v940 = vpop.permute.xlu0 %939
    %vm941 = vcmask 138240
    %v942 = vsel %vm941, %v934, %v918
    %v943 = vsel %vm941, %v936, %v920
    %v944 = vsel %vm941, %v938, %v922
    %v945 = vsel %vm941, %v940, %v924
    %v954 = vsel %vm941, %v918, %v934
    %v955 = vsel %vm941, %v920, %v936
    %v956 = vsel %vm941, %v922, %v938
    %v957 = vsel %vm941, %v924, %v940
    %v958 = vld [vmem:[%s1] ss:$8 sm:$0x3]
    %v960 = vlaneseq
    %v961 = vshrl.u32 %v960, 7
    %v962 = vsub.s32 0, %v961
    %v963 = vrot.slane %v958, %v962
    %v964 = vlaneseq
    %v965 = vshrl.u32 %v964, 7
    %v966 = vsub.s32 1, %v965
    %v967 = vrot.slane %v958, %v966
    %v970 = vmul.f32 %v954, %v963
    %v971 = vmul.f32 %v942, %v967
    %v972 = vmul.f32 %v955, %v963
    %v973 = vmul.f32 %v943, %v967
    %v974 = vmul.f32 %v956, %v963
    %v975 = vmul.f32 %v944, %v967
    %v976 = vmul.f32 %v957, %v963
    %v977 = vmul.f32 %v945, %v967
    %978 = vst [vmem:[#allocation2] sm:$0xff] %v970
    %979 = vst [vmem:[#allocation2 + $0x8] sm:$0xff] %v971
    %980 = vst [vmem:[#allocation2 + $0x10] sm:$0xff] %v972
    %981 = vst [vmem:[#allocation2 + $0x18] sm:$0xff] %v973
    %982 = vst [vmem:[#allocation2 + $0x20] sm:$0xff] %v974
    %983 = vst [vmem:[#allocation2 + $0x28] sm:$0xff] %v975
    %984 = vst [vmem:[#allocation2 + $0x30] sm:$0xff] %v976
    %985 = vst [vmem:[#allocation2 + $0x38] sm:$0xff] %v977
    %986 = vrot.lane.b32.xlu0 %v49, 16
    %v987 = vpop.permute.xlu0 %986
    %988 = vrot.lane.b32.xlu0 %v51, 16
    %v989 = vpop.permute.xlu0 %988
    %990 = vrot.lane.b32.xlu0 %v53, 16
    %v991 = vpop.permute.xlu0 %990
    %992 = vrot.lane.b32.xlu0 %v55, 16
    %v993 = vpop.permute.xlu0 %992
    %998 = vrot.lane.b32.xlu0 %v48, 16
    %v999 = vpop.permute.xlu0 %998
    %1000 = vrot.lane.b32.xlu0 %v50, 16
    %v1001 = vpop.permute.xlu0 %1000
    %1002 = vrot.lane.b32.xlu0 %v52, 16
    %v1003 = vpop.permute.xlu0 %1002
    %1004 = vrot.lane.b32.xlu0 %v54, 16
    %v1005 = vpop.permute.xlu0 %1004
    %v1006 = vsel %vm561, %v999, %v987
    %v1007 = vsel %vm561, %v1001, %v989
    %v1008 = vsel %vm561, %v1003, %v991
    %v1009 = vsel %vm561, %v1005, %v993
    %v1018 = vsel %vm561, %v987, %v999
    %v1019 = vsel %vm561, %v989, %v1001
    %v1020 = vsel %vm561, %v991, %v1003
    %v1021 = vsel %vm561, %v993, %v1005
    %s1022 = scalar_lea.vmem %s1, 1
    %v1023 = vld [vmem:[%s1022] ss:$8 sm:$0x3]
    %v1025 = vlaneseq
    %v1026 = vshrl.u32 %v1025, 7
    %v1027 = vsub.s32 0, %v1026
    %v1028 = vrot.slane %v1023, %v1027
    %v1029 = vlaneseq
    %v1030 = vshrl.u32 %v1029, 7
    %v1031 = vsub.s32 1, %v1030
    %v1032 = vrot.slane %v1023, %v1031
    %v1035 = vmul.f32 %v1018, %v1028
    %v1036 = vmul.f32 %v1006, %v1032
    %v1037 = vmul.f32 %v1019, %v1028
    %v1038 = vmul.f32 %v1007, %v1032
    %v1039 = vmul.f32 %v1020, %v1028
    %v1040 = vmul.f32 %v1008, %v1032
    %v1041 = vmul.f32 %v1021, %v1028
    %v1042 = vmul.f32 %v1009, %v1032
    %1043 = vst [vmem:[#allocation2 + $0x40] sm:$0xff] %v1035
    %1044 = vst [vmem:[#allocation2 + $0x48] sm:$0xff] %v1036
    %1045 = vst [vmem:[#allocation2 + $0x50] sm:$0xff] %v1037
    %1046 = vst [vmem:[#allocation2 + $0x58] sm:$0xff] %v1038
    %1047 = vst [vmem:[#allocation2 + $0x60] sm:$0xff] %v1039
    %1048 = vst [vmem:[#allocation2 + $0x68] sm:$0xff] %v1040
    %1049 = vst [vmem:[#allocation2 + $0x70] sm:$0xff] %v1041
    %1050 = vst [vmem:[#allocation2 + $0x78] sm:$0xff] %v1042
    %1051 = vrot.lane.b32.xlu0 %v49, 15
    %v1052 = vpop.permute.xlu0 %1051
    %1053 = vrot.lane.b32.xlu0 %v51, 15
    %v1054 = vpop.permute.xlu0 %1053
    %1055 = vrot.lane.b32.xlu0 %v53, 15
    %v1056 = vpop.permute.xlu0 %1055
    %1057 = vrot.lane.b32.xlu0 %v55, 15
    %v1058 = vpop.permute.xlu0 %1057
    %1063 = vrot.lane.b32.xlu0 %v48, 15
    %v1064 = vpop.permute.xlu0 %1063
    %1065 = vrot.lane.b32.xlu0 %v50, 15
    %v1066 = vpop.permute.xlu0 %1065
    %1067 = vrot.lane.b32.xlu0 %v52, 15
    %v1068 = vpop.permute.xlu0 %1067
    %1069 = vrot.lane.b32.xlu0 %v54, 15
    %v1070 = vpop.permute.xlu0 %1069
    %vm1071 = vcmask 121856
    %v1072 = vsel %vm1071, %v1064, %v1052
    %v1073 = vsel %vm1071, %v1066, %v1054
    %v1074 = vsel %vm1071, %v1068, %v1056
    %v1075 = vsel %vm1071, %v1070, %v1058
    %v1084 = vsel %vm1071, %v1052, %v1064
    %v1085 = vsel %vm1071, %v1054, %v1066
    %v1086 = vsel %vm1071, %v1056, %v1068
    %v1087 = vsel %vm1071, %v1058, %v1070
    %s1088 = scalar_lea.vmem %s1, 2
    %v1089 = vld [vmem:[%s1088] ss:$8 sm:$0x3]
    %v1091 = vlaneseq
    %v1092 = vshrl.u32 %v1091, 7
    %v1093 = vsub.s32 0, %v1092
    %v1094 = vrot.slane %v1089, %v1093
    %v1095 = vlaneseq
    %v1096 = vshrl.u32 %v1095, 7
    %v1097 = vsub.s32 1, %v1096
    %v1098 = vrot.slane %v1089, %v1097
    %v1101 = vmul.f32 %v1084, %v1094
    %v1102 = vmul.f32 %v1072, %v1098
    %v1103 = vmul.f32 %v1085, %v1094
    %v1104 = vmul.f32 %v1073, %v1098
    %v1105 = vmul.f32 %v1086, %v1094
    %v1106 = vmul.f32 %v1074, %v1098
    %v1107 = vmul.f32 %v1087, %v1094
    %v1108 = vmul.f32 %v1075, %v1098
    %1109 = vst [vmem:[#allocation2 + $0x80] sm:$0xff] %v1101
    %1110 = vst [vmem:[#allocation2 + $0x88] sm:$0xff] %v1102
    %1111 = vst [vmem:[#allocation2 + $0x90] sm:$0xff] %v1103
    %1112 = vst [vmem:[#allocation2 + $0x98] sm:$0xff] %v1104
    %1113 = vst [vmem:[#allocation2 + $0xa0] sm:$0xff] %v1105
    %1114 = vst [vmem:[#allocation2 + $0xa8] sm:$0xff] %v1106
    %1115 = vst [vmem:[#allocation2 + $0xb0] sm:$0xff] %v1107
    %1116 = vst [vmem:[#allocation2 + $0xb8] sm:$0xff] %v1108
    %1117 = vrot.lane.b32.xlu0 %v49, 1
    %v1118 = vpop.permute.xlu0 %1117
    %1119 = vrot.lane.b32.xlu0 %v51, 1
    %v1120 = vpop.permute.xlu0 %1119
    %1121 = vrot.lane.b32.xlu0 %v53, 1
    %v1122 = vpop.permute.xlu0 %1121
    %1123 = vrot.lane.b32.xlu0 %v55, 1
    %v1124 = vpop.permute.xlu0 %1123
    %1129 = vrot.lane.b32.xlu0 %v48, 1
    %v1130 = vpop.permute.xlu0 %1129
    %1131 = vrot.lane.b32.xlu0 %v50, 1
    %v1132 = vpop.permute.xlu0 %1131
    %1133 = vrot.lane.b32.xlu0 %v52, 1
    %v1134 = vpop.permute.xlu0 %1133
    %1135 = vrot.lane.b32.xlu0 %v54, 1
    %v1136 = vpop.permute.xlu0 %1135
    %vm1137 = vcmask 7168
    %v1138 = vsel %vm1137, %v1130, %v1118
    %v1139 = vsel %vm1137, %v1132, %v1120
    %v1140 = vsel %vm1137, %v1134, %v1122
    %v1141 = vsel %vm1137, %v1136, %v1124
    %v1150 = vsel %vm1137, %v1118, %v1130
    %v1151 = vsel %vm1137, %v1120, %v1132
    %v1152 = vsel %vm1137, %v1122, %v1134
    %v1153 = vsel %vm1137, %v1124, %v1136
    %s1154 = scalar_lea.vmem %s1, 3
    %v1155 = vld [vmem:[%s1154] ss:$8 sm:$0x3]
    %v1157 = vlaneseq
    %v1158 = vshrl.u32 %v1157, 7
    %v1159 = vsub.s32 0, %v1158
    %v1160 = vrot.slane %v1155, %v1159
    %v1161 = vlaneseq
    %v1162 = vshrl.u32 %v1161, 7
    %v1163 = vsub.s32 1, %v1162
    %v1164 = vrot.slane %v1155, %v1163
    %v1167 = vmul.f32 %v1150, %v1160
    %v1168 = vmul.f32 %v1138, %v1164
    %v1169 = vmul.f32 %v1151, %v1160
    %v1170 = vmul.f32 %v1139, %v1164
    %v1171 = vmul.f32 %v1152, %v1160
    %v1172 = vmul.f32 %v1140, %v1164
    %v1173 = vmul.f32 %v1153, %v1160
    %v1174 = vmul.f32 %v1141, %v1164
    %1175 = vst [vmem:[#allocation2 + $0xc0] sm:$0xff] %v1167
    %1176 = vst [vmem:[#allocation2 + $0xc8] sm:$0xff] %v1168
    %1177 = vst [vmem:[#allocation2 + $0xd0] sm:$0xff] %v1169
    %1178 = vst [vmem:[#allocation2 + $0xd8] sm:$0xff] %v1170
    %1179 = vst [vmem:[#allocation2 + $0xe0] sm:$0xff] %v1171
    %1180 = vst [vmem:[#allocation2 + $0xe8] sm:$0xff] %v1172
    %1181 = vst [vmem:[#allocation2 + $0xf0] sm:$0xff] %v1173
    %1182 = vst [vmem:[#allocation2 + $0xf8] sm:$0xff] %v1174
    %1183 = vst [vmem:[#allocation2 + $0x100] sm:$0xff] %v48
    %1184 = vst [vmem:[#allocation2 + $0x108] sm:$0xff] %v49
    %1185 = vst [vmem:[#allocation2 + $0x110] sm:$0xff] %v50
    %1186 = vst [vmem:[#allocation2 + $0x118] sm:$0xff] %v51
    %1187 = vst [vmem:[#allocation2 + $0x120] sm:$0xff] %v52
    %1188 = vst [vmem:[#allocation2 + $0x128] sm:$0xff] %v53
    %1189 = vst [vmem:[#allocation2 + $0x130] sm:$0xff] %v54
    %1190 = vst [vmem:[#allocation2 + $0x138] sm:$0xff] %v55
    %1191 = vrot.lane.b32.xlu0 %v48, 127
    %v1192 = vpop.permute.xlu0 %1191
    %1193 = vrot.lane.b32.xlu0 %v49, 127
    %v1194 = vpop.permute.xlu0 %1193
    %1195 = vrot.lane.b32.xlu0 %v50, 127
    %v1196 = vpop.permute.xlu0 %1195
    %1197 = vrot.lane.b32.xlu0 %v51, 127
    %v1198 = vpop.permute.xlu0 %1197
    %1199 = vrot.lane.b32.xlu0 %v52, 127
    %v1200 = vpop.permute.xlu0 %1199
    %1201 = vrot.lane.b32.xlu0 %v53, 127
    %v1202 = vpop.permute.xlu0 %1201
    %1203 = vrot.lane.b32.xlu0 %v54, 127
    %v1204 = vpop.permute.xlu0 %1203
    %1205 = vrot.lane.b32.xlu0 %v55, 127
    %v1206 = vpop.permute.xlu0 %1205
    %vm1207 = vcmask 1039360
    %v1208 = vsel %vm1207, %v1192, %v1194
    %v1209 = vsel %vm1207, %v1196, %v1198
    %v1210 = vsel %vm1207, %v1200, %v1202
    %v1211 = vsel %vm1207, %v1204, %v1206
    %v1224 = vsel %vm1207, %v1194, %v1192
    %v1225 = vsel %vm1207, %v1198, %v1196
    %v1226 = vsel %vm1207, %v1202, %v1200
    %v1227 = vsel %vm1207, %v1206, %v1204
    %s1228 = scalar_lea.vmem %s1, 4
    %v1229 = vld [vmem:[%s1228] ss:$8 sm:$0x3]
    %v1231 = vlaneseq
    %v1232 = vshrl.u32 %v1231, 7
    %v1233 = vsub.s32 0, %v1232
    %v1234 = vrot.slane %v1229, %v1233
    %v1235 = vlaneseq
    %v1236 = vshrl.u32 %v1235, 7
    %v1237 = vsub.s32 1, %v1236
    %v1238 = vrot.slane %v1229, %v1237
    %v1241 = vmul.f32 %v1208, %v1234
    %v1242 = vmul.f32 %v1224, %v1238
    %v1243 = vmul.f32 %v1209, %v1234
    %v1244 = vmul.f32 %v1225, %v1238
    %v1245 = vmul.f32 %v1210, %v1234
    %v1246 = vmul.f32 %v1226, %v1238
    %v1247 = vmul.f32 %v1211, %v1234
    %v1248 = vmul.f32 %v1227, %v1238
    %1249 = vst [vmem:[#allocation2 + $0x140] sm:$0xff] %v1241
    %1250 = vst [vmem:[#allocation2 + $0x148] sm:$0xff] %v1242
    %1251 = vst [vmem:[#allocation2 + $0x150] sm:$0xff] %v1243
    %1252 = vst [vmem:[#allocation2 + $0x158] sm:$0xff] %v1244
    %1253 = vst [vmem:[#allocation2 + $0x160] sm:$0xff] %v1245
    %1254 = vst [vmem:[#allocation2 + $0x168] sm:$0xff] %v1246
    %1255 = vst [vmem:[#allocation2 + $0x170] sm:$0xff] %v1247
    %1256 = vst [vmem:[#allocation2 + $0x178] sm:$0xff] %v1248
    %1257 = vrot.lane.b32.xlu0 %v48, 113
    %v1258 = vpop.permute.xlu0 %1257
    %1259 = vrot.lane.b32.xlu0 %v49, 113
    %v1260 = vpop.permute.xlu0 %1259
    %1261 = vrot.lane.b32.xlu0 %v50, 113
    %v1262 = vpop.permute.xlu0 %1261
    %1263 = vrot.lane.b32.xlu0 %v51, 113
    %v1264 = vpop.permute.xlu0 %1263
    %1265 = vrot.lane.b32.xlu0 %v52, 113
    %v1266 = vpop.permute.xlu0 %1265
    %1267 = vrot.lane.b32.xlu0 %v53, 113
    %v1268 = vpop.permute.xlu0 %1267
    %1269 = vrot.lane.b32.xlu0 %v54, 113
    %v1270 = vpop.permute.xlu0 %1269
    %1271 = vrot.lane.b32.xlu0 %v55, 113
    %v1272 = vpop.permute.xlu0 %1271
    %vm1273 = vcmask 924672
    %v1274 = vsel %vm1273, %v1258, %v1260
    %v1275 = vsel %vm1273, %v1262, %v1264
    %v1276 = vsel %vm1273, %v1266, %v1268
    %v1277 = vsel %vm1273, %v1270, %v1272
    %v1290 = vsel %vm1273, %v1260, %v1258
    %v1291 = vsel %vm1273, %v1264, %v1262
    %v1292 = vsel %vm1273, %v1268, %v1266
    %v1293 = vsel %vm1273, %v1272, %v1270
    %s1294 = scalar_lea.vmem %s1, 5
    %v1295 = vld [vmem:[%s1294] ss:$8 sm:$0x3]
    %v1297 = vlaneseq
    %v1298 = vshrl.u32 %v1297, 7
    %v1299 = vsub.s32 0, %v1298
    %v1300 = vrot.slane %v1295, %v1299
    %v1301 = vlaneseq
    %v1302 = vshrl.u32 %v1301, 7
    %v1303 = vsub.s32 1, %v1302
    %v1304 = vrot.slane %v1295, %v1303
    %v1307 = vmul.f32 %v1274, %v1300
    %v1308 = vmul.f32 %v1290, %v1304
    %v1309 = vmul.f32 %v1275, %v1300
    %v1310 = vmul.f32 %v1291, %v1304
    %v1311 = vmul.f32 %v1276, %v1300
    %v1312 = vmul.f32 %v1292, %v1304
    %v1313 = vmul.f32 %v1277, %v1300
    %v1314 = vmul.f32 %v1293, %v1304
    %1315 = vst [vmem:[#allocation2 + $0x180] sm:$0xff] %v1307
    %1316 = vst [vmem:[#allocation2 + $0x188] sm:$0xff] %v1308
    %1317 = vst [vmem:[#allocation2 + $0x190] sm:$0xff] %v1309
    %1318 = vst [vmem:[#allocation2 + $0x198] sm:$0xff] %v1310
    %1319 = vst [vmem:[#allocation2 + $0x1a0] sm:$0xff] %v1311
    %1320 = vst [vmem:[#allocation2 + $0x1a8] sm:$0xff] %v1312
    %1321 = vst [vmem:[#allocation2 + $0x1b0] sm:$0xff] %v1313
    %1322 = vst [vmem:[#allocation2 + $0x1b8] sm:$0xff] %v1314
    %1323 = vrot.lane.b32.xlu0 %v48, 112
    %v1324 = vpop.permute.xlu0 %1323
    %1325 = vrot.lane.b32.xlu0 %v49, 112
    %v1326 = vpop.permute.xlu0 %1325
    %1327 = vrot.lane.b32.xlu0 %v50, 112
    %v1328 = vpop.permute.xlu0 %1327
    %1329 = vrot.lane.b32.xlu0 %v51, 112
    %v1330 = vpop.permute.xlu0 %1329
    %1331 = vrot.lane.b32.xlu0 %v52, 112
    %v1332 = vpop.permute.xlu0 %1331
    %1333 = vrot.lane.b32.xlu0 %v53, 112
    %v1334 = vpop.permute.xlu0 %1333
    %1335 = vrot.lane.b32.xlu0 %v54, 112
    %v1336 = vpop.permute.xlu0 %1335
    %1337 = vrot.lane.b32.xlu0 %v55, 112
    %v1338 = vpop.permute.xlu0 %1337
    %vm1339 = vcmask 916480
    %v1340 = vsel %vm1339, %v1324, %v1326
    %v1341 = vsel %vm1339, %v1328, %v1330
    %v1342 = vsel %vm1339, %v1332, %v1334
    %v1343 = vsel %vm1339, %v1336, %v1338
    %v1356 = vsel %vm1339, %v1326, %v1324
    %v1357 = vsel %vm1339, %v1330, %v1328
    %v1358 = vsel %vm1339, %v1334, %v1332
    %v1359 = vsel %vm1339, %v1338, %v1336
    %s1360 = scalar_lea.vmem %s1, 6
    %v1361 = vld [vmem:[%s1360] ss:$8 sm:$0x3]
    %v1363 = vlaneseq
    %v1364 = vshrl.u32 %v1363, 7
    %v1365 = vsub.s32 0, %v1364
    %v1366 = vrot.slane %v1361, %v1365
    %v1367 = vlaneseq
    %v1368 = vshrl.u32 %v1367, 7
    %v1369 = vsub.s32 1, %v1368
    %v1370 = vrot.slane %v1361, %v1369
    %v1373 = vmul.f32 %v1340, %v1366
    %v1374 = vmul.f32 %v1356, %v1370
    %v1375 = vmul.f32 %v1341, %v1366
    %v1376 = vmul.f32 %v1357, %v1370
    %v1377 = vmul.f32 %v1342, %v1366
    %v1378 = vmul.f32 %v1358, %v1370
    %v1379 = vmul.f32 %v1343, %v1366
    %v1380 = vmul.f32 %v1359, %v1370
    %1381 = vst [vmem:[#allocation2 + $0x1c0] sm:$0xff] %v1373
    %1382 = vst [vmem:[#allocation2 + $0x1c8] sm:$0xff] %v1374
    %1383 = vst [vmem:[#allocation2 + $0x1d0] sm:$0xff] %v1375
    %1384 = vst [vmem:[#allocation2 + $0x1d8] sm:$0xff] %v1376
    %1385 = vst [vmem:[#allocation2 + $0x1e0] sm:$0xff] %v1377
    %1386 = vst [vmem:[#allocation2 + $0x1e8] sm:$0xff] %v1378
    %1387 = vst [vmem:[#allocation2 + $0x1f0] sm:$0xff] %v1379
    %1388 = vst [vmem:[#allocation2 + $0x1f8] sm:$0xff] %v1380
    %1389 = vrot.lane.b32.xlu0 %v48, 111
    %v1390 = vpop.permute.xlu0 %1389
    %1391 = vrot.lane.b32.xlu0 %v49, 111
    %v1392 = vpop.permute.xlu0 %1391
    %1393 = vrot.lane.b32.xlu0 %v50, 111
    %v1394 = vpop.permute.xlu0 %1393
    %1395 = vrot.lane.b32.xlu0 %v51, 111
    %v1396 = vpop.permute.xlu0 %1395
    %1397 = vrot.lane.b32.xlu0 %v52, 111
    %v1398 = vpop.permute.xlu0 %1397
    %1399 = vrot.lane.b32.xlu0 %v53, 111
    %v1400 = vpop.permute.xlu0 %1399
    %1401 = vrot.lane.b32.xlu0 %v54, 111
    %v1402 = vpop.permute.xlu0 %1401
    %1403 = vrot.lane.b32.xlu0 %v55, 111
    %v1404 = vpop.permute.xlu0 %1403
    %vm1405 = vcmask 908288
    %v1406 = vsel %vm1405, %v1390, %v1392
    %v1407 = vsel %vm1405, %v1394, %v1396
    %v1408 = vsel %vm1405, %v1398, %v1400
    %v1409 = vsel %vm1405, %v1402, %v1404
    %v1422 = vsel %vm1405, %v1392, %v1390
    %v1423 = vsel %vm1405, %v1396, %v1394
    %v1424 = vsel %vm1405, %v1400, %v1398
    %v1425 = vsel %vm1405, %v1404, %v1402
    %s1426 = scalar_lea.vmem %s1, 7
    %v1427 = vld [vmem:[%s1426] ss:$8 sm:$0x3]
    %v1429 = vlaneseq
    %v1430 = vshrl.u32 %v1429, 7
    %v1431 = vsub.s32 0, %v1430
    %v1432 = vrot.slane %v1427, %v1431
    %v1433 = vlaneseq
    %v1434 = vshrl.u32 %v1433, 7
    %v1435 = vsub.s32 1, %v1434
    %v1436 = vrot.slane %v1427, %v1435
    %v1439 = vmul.f32 %v1406, %v1432
    %v1440 = vmul.f32 %v1422, %v1436
    %v1441 = vmul.f32 %v1407, %v1432
    %v1442 = vmul.f32 %v1423, %v1436
    %v1443 = vmul.f32 %v1408, %v1432
    %v1444 = vmul.f32 %v1424, %v1436
    %v1445 = vmul.f32 %v1409, %v1432
    %v1446 = vmul.f32 %v1425, %v1436
    %1447 = vst [vmem:[#allocation2 + $0x200] sm:$0xff] %v1439
    %1448 = vst [vmem:[#allocation2 + $0x208] sm:$0xff] %v1440
    %1449 = vst [vmem:[#allocation2 + $0x210] sm:$0xff] %v1441
    %1450 = vst [vmem:[#allocation2 + $0x218] sm:$0xff] %v1442
    %1451 = vst [vmem:[#allocation2 + $0x220] sm:$0xff] %v1443
    %1452 = vst [vmem:[#allocation2 + $0x228] sm:$0xff] %v1444
    %1453 = vst [vmem:[#allocation2 + $0x230] sm:$0xff] %v1445
    %1454 = vst [vmem:[#allocation2 + $0x238] sm:$0xff] %v1446
    %v1455 = vld [vmem:[%s8] sm:$0xff]
    %v1456 = vld [vmem:[%s8 + $0x8] sm:$0xff]
    %v1457 = vld [vmem:[%s8 + $0x10] sm:$0xff]
    %v1458 = vld [vmem:[%s8 + $0x18] sm:$0xff]
    %v1459 = vld [vmem:[%s8 + $0x20] sm:$0xff]
    %v1460 = vld [vmem:[%s8 + $0x28] sm:$0xff]
    %v1461 = vld [vmem:[%s8 + $0x30] sm:$0xff]
    %v1462 = vld [vmem:[%s8 + $0x38] sm:$0xff]
    %v1463 = vld [vmem:[%s8 + $0x40] sm:$0xff]
    %v1464 = vld [vmem:[%s8 + $0x48] sm:$0xff]
    %v1465 = vld [vmem:[%s8 + $0x50] sm:$0xff]
    %v1466 = vld [vmem:[%s8 + $0x58] sm:$0xff]
    %v1467 = vld [vmem:[#allocation2] sm:$0xff]
    %v1468 = vld [vmem:[#allocation2 + $0x8] sm:$0xff]
    %v1469 = vld [vmem:[#allocation2 + $0x10] sm:$0xff]
    %v1470 = vld [vmem:[#allocation2 + $0x18] sm:$0xff]
    %v1471 = vld [vmem:[#allocation2 + $0x20] sm:$0xff]
    %v1472 = vld [vmem:[#allocation2 + $0x28] sm:$0xff]
    %v1473 = vld [vmem:[#allocation2 + $0x30] sm:$0xff]
    %v1474 = vld [vmem:[#allocation2 + $0x38] sm:$0xff]
    %v1475 = vld [vmem:[#allocation2 + $0x40] sm:$0xff]
    %v1476 = vld [vmem:[#allocation2 + $0x48] sm:$0xff]
    %v1477 = vld [vmem:[#allocation2 + $0x50] sm:$0xff]
    %v1478 = vld [vmem:[#allocation2 + $0x58] sm:$0xff]
    %v1479 = vld [vmem:[#allocation2 + $0x60] sm:$0xff]
    %v1480 = vld [vmem:[#allocation2 + $0x68] sm:$0xff]
    %v1481 = vld [vmem:[#allocation2 + $0x70] sm:$0xff]
    %v1482 = vld [vmem:[#allocation2 + $0x78] sm:$0xff]
    %v1483 = vld [vmem:[#allocation2 + $0x80] sm:$0xff]
    %v1484 = vld [vmem:[#allocation2 + $0x88] sm:$0xff]
    %v1485 = vld [vmem:[#allocation2 + $0x90] sm:$0xff]
    %v1486 = vld [vmem:[#allocation2 + $0x98] sm:$0xff]
    %v1487 = vld [vmem:[#allocation2 + $0xa0] sm:$0xff]
    %v1488 = vld [vmem:[#allocation2 + $0xa8] sm:$0xff]
    %v1489 = vld [vmem:[#allocation2 + $0xb0] sm:$0xff]
    %v1490 = vld [vmem:[#allocation2 + $0xb8] sm:$0xff]
    %v1491 = vld [vmem:[#allocation2 + $0xc0] sm:$0xff]
    %v1492 = vld [vmem:[#allocation2 + $0xc8] sm:$0xff]
    %v1493 = vld [vmem:[#allocation2 + $0xd0] sm:$0xff]
    %v1494 = vld [vmem:[#allocation2 + $0xd8] sm:$0xff]
    %v1495 = vld [vmem:[#allocation2 + $0xe0] sm:$0xff]
    %v1496 = vld [vmem:[#allocation2 + $0xe8] sm:$0xff]
    %v1497 = vld [vmem:[#allocation2 + $0xf0] sm:$0xff]
    %v1498 = vld [vmem:[#allocation2 + $0xf8] sm:$0xff]
    %v1499 = vld [vmem:[#allocation2 + $0x100] sm:$0xff]
    %v1500 = vld [vmem:[#allocation2 + $0x108] sm:$0xff]
    %v1501 = vld [vmem:[#allocation2 + $0x110] sm:$0xff]
    %v1502 = vld [vmem:[#allocation2 + $0x118] sm:$0xff]
    %v1503 = vld [vmem:[#allocation2 + $0x120] sm:$0xff]
    %v1504 = vld [vmem:[#allocation2 + $0x128] sm:$0xff]
    %v1505 = vld [vmem:[#allocation2 + $0x130] sm:$0xff]
    %v1506 = vld [vmem:[#allocation2 + $0x138] sm:$0xff]
    %v1507 = vld [vmem:[#allocation2 + $0x140] sm:$0xff]
    %v1508 = vld [vmem:[#allocation2 + $0x148] sm:$0xff]
    %v1509 = vld [vmem:[#allocation2 + $0x150] sm:$0xff]
    %v1510 = vld [vmem:[#allocation2 + $0x158] sm:$0xff]
    %v1511 = vld [vmem:[#allocation2 + $0x160] sm:$0xff]
    %v1512 = vld [vmem:[#allocation2 + $0x168] sm:$0xff]
    %v1513 = vld [vmem:[#allocation2 + $0x170] sm:$0xff]
    %v1514 = vld [vmem:[#allocation2 + $0x178] sm:$0xff]
    %v1515 = vld [vmem:[#allocation2 + $0x180] sm:$0xff]
    %v1516 = vld [vmem:[#allocation2 + $0x188] sm:$0xff]
    %v1517 = vld [vmem:[#allocation2 + $0x190] sm:$0xff]
    %v1518 = vld [vmem:[#allocation2 + $0x198] sm:$0xff]
    %v1519 = vld [vmem:[#allocation2 + $0x1a0] sm:$0xff]
    %v1520 = vld [vmem:[#allocation2 + $0x1a8] sm:$0xff]
    %v1521 = vld [vmem:[#allocation2 + $0x1b0] sm:$0xff]
    %v1522 = vld [vmem:[#allocation2 + $0x1b8] sm:$0xff]
    %v1523 = vld [vmem:[#allocation2 + $0x1c0] sm:$0xff]
    %v1524 = vld [vmem:[#allocation2 + $0x1c8] sm:$0xff]
    %v1525 = vld [vmem:[#allocation2 + $0x1d0] sm:$0xff]
    %v1526 = vld [vmem:[#allocation2 + $0x1d8] sm:$0xff]
    %v1527 = vld [vmem:[#allocation2 + $0x1e0] sm:$0xff]
    %v1528 = vld [vmem:[#allocation2 + $0x1e8] sm:$0xff]
    %v1529 = vld [vmem:[#allocation2 + $0x1f0] sm:$0xff]
    %v1530 = vld [vmem:[#allocation2 + $0x1f8] sm:$0xff]
    %v1531 = vld [vmem:[#allocation2 + $0x200] sm:$0xff]
    %v1532 = vld [vmem:[#allocation2 + $0x208] sm:$0xff]
    %v1533 = vld [vmem:[#allocation2 + $0x210] sm:$0xff]
    %v1534 = vld [vmem:[#allocation2 + $0x218] sm:$0xff]
    %v1535 = vld [vmem:[#allocation2 + $0x220] sm:$0xff]
    %v1536 = vld [vmem:[#allocation2 + $0x228] sm:$0xff]
    %v1537 = vld [vmem:[#allocation2 + $0x230] sm:$0xff]
    %v1538 = vld [vmem:[#allocation2 + $0x238] sm:$0xff]
    %v1539 = vld [vmem:[%s9] sm:$0xff]
    %v1540 = vld [vmem:[%s9 + $0x8] sm:$0xff]
    %v1541 = vld [vmem:[%s9 + $0x10] sm:$0xff]
    %v1542 = vld [vmem:[%s9 + $0x18] sm:$0xff]
    %1544 = vset.pattern.permute.xlu0 0
    %1545 = vperm.xlu0 %1544, %v1539
    %v1546 = vpop.permute.xlu0 %1545
    %1549 = vset.pattern.permute.xlu0 0
    %1550 = vperm.xlu0 %1549, %v1540
    %v1551 = vpop.permute.xlu0 %1550
    %1554 = vset.pattern.permute.xlu0 0
    %1555 = vperm.xlu0 %1554, %v1541
    %v1556 = vpop.permute.xlu0 %1555
    %1559 = vset.pattern.permute.xlu0 0
    %1560 = vperm.xlu0 %1559, %v1542
    %v1561 = vpop.permute.xlu0 %1560
    %v1564 = vsel %vm326, %v1457, 0
    %v1567 = vsel %vm326, %v1460, 0
    %v1570 = vsel %vm326, %v1463, 0
    %v1573 = vsel %vm326, %v1466, 0
    %1575 = vmatprep.subr.mxu0 %v1468
    %1576 = vmatpush1.msra.mxu0 %v1467
    %1577 = vmatprep.subr.mxu0 %v1470
    %1578 = vmatpush1.msra.mxu0 %v1469
    %1579 = vmatprep.subr.mxu0 %v1472
    %1580 = vmatpush1.msra.mxu0 %v1471
    %1581 = vmatprep.subr.mxu0 %v1474
    %1582 = vmatpush1.msra.mxu0 %v1473
    %1583 = vmatprep.subr.mxu0 %v1476
    %1584 = vmatpush1.msra.mxu0 %v1475
    %1585 = vmatprep.subr.mxu0 %v1478
    %1586 = vmatpush1.msra.mxu0 %v1477
    %1587 = vmatprep.subr.mxu0 %v1480
    %1588 = vmatpush1.msra.mxu0 %v1479
    %1589 = vmatprep.subr.mxu0 %v1482
    %1590 = vmatpush1.msra.mxu0 %v1481
    %1591 = vmatprep.subr.mxu0 %v1484
    %1592 = vmatpush1.msra.mxu0 %v1483
    %1593 = vmatprep.subr.mxu0 %v1486
    %1594 = vmatpush1.msra.mxu0 %v1485
    %1595 = vmatprep.subr.mxu0 %v1488
    %1596 = vmatpush1.msra.mxu0 %v1487
    %1597 = vmatprep.subr.mxu0 %v1490
    %1598 = vmatpush1.msra.mxu0 %v1489
    %1599 = vmatprep.subr.mxu0 %v1492
    %1600 = vmatpush1.msra.mxu0 %v1491
    %1601 = vmatprep.subr.mxu0 %v1494
    %1602 = vmatpush1.msra.mxu0 %v1493
    %1603 = vmatprep.subr.mxu0 %v1496
    %1604 = vmatpush1.msra.mxu0 %v1495
    %1605 = vmatprep.subr.mxu0 %v1498
    %1606 = vmatpush1.msra.mxu0 %v1497
    %1607 = vmatprep.subr.mxu0 %v1500
    %1608 = vmatpush1.msra.mxu0 %v1499
    %1609 = vmatprep.subr.mxu0 %v1502
    %1610 = vmatpush1.msra.mxu0 %v1501
    %1611 = vmatprep.subr.mxu0 %v1504
    %1612 = vmatpush1.msra.mxu0 %v1503
    %1613 = vmatprep.subr.mxu0 %v1506
    %1614 = vmatpush1.msra.mxu0 %v1505
    %1615 = vmatprep.subr.mxu0 %v1508
    %1616 = vmatpush1.msra.mxu0 %v1507
    %1617 = vmatprep.subr.mxu0 %v1510
    %1618 = vmatpush1.msra.mxu0 %v1509
    %1619 = vmatprep.subr.mxu0 %v1512
    %1620 = vmatpush1.msra.mxu0 %v1511
    %1621 = vmatprep.subr.mxu0 %v1514
    %1622 = vmatpush1.msra.mxu0 %v1513
    %1623 = vmatprep.subr.mxu0 %v1516
    %1624 = vmatpush1.msra.mxu0 %v1515
    %1625 = vmatprep.subr.mxu0 %v1518
    %1626 = vmatpush1.msra.mxu0 %v1517
    %1627 = vmatprep.subr.mxu0 %v1520
    %1628 = vmatpush1.msra.mxu0 %v1519
    %1629 = vmatprep.subr.mxu0 %v1522
    %1630 = vmatpush1.msra.mxu0 %v1521
    %1631 = vmatprep.subr.mxu0 %v1524
    %1632 = vmatpush1.msra.mxu0 %v1523
    %1633 = vmatprep.subr.mxu0 %v1526
    %1634 = vmatpush1.msra.mxu0 %v1525
    %1635 = vmatprep.subr.mxu0 %v1528
    %1636 = vmatpush1.msra.mxu0 %v1527
    %1637 = vmatprep.subr.mxu0 %v1530
    %1638 = vmatpush1.msra.mxu0 %v1529
    %1639 = vmatprep.mubr.f32.mxu0 %v1456
    %1640 = vmatmul.mubr.f32.gmra.mrb[0].mxu0 %v1455
    %v1641 = vpop.f32.mrb[0].mxu0
    %v1642 = vadd.f32 %v1546, %v1641
    %v1643 = vpop.f32.mrb[0].mxu0
    %v1644 = vadd.f32 %v1546, %v1643
    %1645 = vmatprep.mubr.f32.mxu0 %v1459
    %1646 = vmatmul.mubr.f32.gmra.mrb[0].mxu0 %v1458
    %v1647 = vpop.f32.mrb[0].mxu0
    %v1648 = vadd.f32 %v1551, %v1647
    %v1649 = vpop.f32.mrb[0].mxu0
    %v1650 = vadd.f32 %v1551, %v1649
    %1651 = vmatprep.mubr.f32.mxu0 %v1462
    %1652 = vmatmul.mubr.f32.gmra.mrb[0].mxu0 %v1461
    %v1653 = vpop.f32.mrb[0].mxu0
    %v1654 = vadd.f32 %v1556, %v1653
    %v1655 = vpop.f32.mrb[0].mxu0
    %v1656 = vadd.f32 %v1556, %v1655
    %1657 = vmatprep.mubr.f32.mxu0 %v1465
    %1658 = vmatmul.mubr.f32.gmra.mrb[0].mxu0 %v1464
    %v1659 = vpop.f32.mrb[0].mxu0
    %v1660 = vadd.f32 %v1561, %v1659
    %v1661 = vpop.f32.mrb[0].mxu0
    %v1662 = vadd.f32 %v1561, %v1661
    %1663 = vdwg.mxu0
    %1664 = vmatprep.subr.mxu0 %v1532
    %1665 = vmatpush1.msra.mxu0 %v1531
    %1666 = vmatprep.subr.mxu0 %v1534
    %1667 = vmatpush1.msra.mxu0 %v1533
    %1668 = vmatprep.subr.mxu0 %v1536
    %1669 = vmatpush1.msra.mxu0 %v1535
    %1670 = vmatprep.subr.mxu0 %v1538
    %1671 = vmatpush1.msra.mxu0 %v1537
    %1672 = vmatprep.subr.mxu0 0.0
    %1673 = vmatpush1.msra.mxu0 0.0
    %1674 = vmatprep.subr.mxu0 0.0
    %1675 = vmatpush1.msra.mxu0 0.0
    %1676 = vmatprep.subr.mxu0 0.0
    %1677 = vmatpush1.msra.mxu0 0.0
    %1678 = vmatprep.subr.mxu0 0.0
    %1679 = vmatpush1.msra.mxu0 0.0
    %1680 = vmatprep.subr.mxu0 0.0
    %1681 = vmatpush1.msra.mxu0 0.0
    %1682 = vmatprep.subr.mxu0 0.0
    %1683 = vmatpush1.msra.mxu0 0.0
    %1684 = vmatprep.subr.mxu0 0.0
    %1685 = vmatpush1.msra.mxu0 0.0
    %1686 = vmatprep.subr.mxu0 0.0
    %1687 = vmatpush1.msra.mxu0 0.0
    %1688 = vmatprep.subr.mxu0 0.0
    %1689 = vmatpush1.msra.mxu0 0.0
    %1690 = vmatprep.subr.mxu0 0.0
    %1691 = vmatpush1.msra.mxu0 0.0
    %1692 = vmatprep.subr.mxu0 0.0
    %1693 = vmatpush1.msra.mxu0 0.0
    %1694 = vmatprep.subr.mxu0 0.0
    %1695 = vmatpush1.msra.mxu0 0.0
    %1696 = vmatprep.subr.mxu0 0.0
    %1697 = vmatpush1.msra.mxu0 0.0
    %1698 = vmatprep.subr.mxu0 0.0
    %1699 = vmatpush1.msra.mxu0 0.0
    %1700 = vmatprep.subr.mxu0 0.0
    %1701 = vmatpush1.msra.mxu0 0.0
    %1702 = vmatprep.subr.mxu0 0.0
    %1703 = vmatpush1.msra.mxu0 0.0
    %1704 = vmatprep.subr.mxu0 0.0
    %1705 = vmatpush1.msra.mxu0 0.0
    %1706 = vmatprep.subr.mxu0 0.0
    %1707 = vmatpush1.msra.mxu0 0.0
    %1708 = vmatprep.subr.mxu0 0.0
    %1709 = vmatpush1.msra.mxu0 0.0
    %1710 = vmatprep.subr.mxu0 0.0
    %1711 = vmatpush1.msra.mxu0 0.0
    %1712 = vmatprep.subr.mxu0 0.0
    %1713 = vmatpush1.msra.mxu0 0.0
    %1714 = vmatprep.subr.mxu0 0.0
    %1715 = vmatpush1.msra.mxu0 0.0
    %1716 = vmatprep.subr.mxu0 0.0
    %1717 = vmatpush1.msra.mxu0 0.0
    %1718 = vmatprep.subr.mxu0 0.0
    %1719 = vmatpush1.msra.mxu0 0.0
    %1720 = vmatprep.subr.mxu0 0.0
    %1721 = vmatpush1.msra.mxu0 0.0
    %1722 = vmatprep.subr.mxu0 0.0
    %1723 = vmatpush1.msra.mxu0 0.0
    %1724 = vmatprep.subr.mxu0 0.0
    %1725 = vmatpush1.msra.mxu0 0.0
    %1726 = vmatprep.subr.mxu0 0.0
    %1727 = vmatpush1.msra.mxu0 0.0
    %1728 = vmatprep.mubr.f32.mxu0 0.0
    %1729 = vmatmul.mubr.f32.gmra.mrb[0].mxu0 %v1564
    %v1730 = vpop.f32.mrb[0].mxu0
    %v1731 = vadd.f32 %v1642, %v1730
    %v1732 = vpop.f32.mrb[0].mxu0
    %v1733 = vadd.f32 %v1644, %v1732
    %1734 = vmatprep.mubr.f32.mxu0 0.0
    %1735 = vmatmul.mubr.f32.gmra.mrb[0].mxu0 %v1567
    %v1736 = vpop.f32.mrb[0].mxu0
    %v1737 = vadd.f32 %v1648, %v1736
    %v1738 = vpop.f32.mrb[0].mxu0
    %v1739 = vadd.f32 %v1650, %v1738
    %1740 = vmatprep.mubr.f32.mxu0 0.0
    %1741 = vmatmul.mubr.f32.gmra.mrb[0].mxu0 %v1570
    %v1742 = vpop.f32.mrb[0].mxu0
    %v1743 = vadd.f32 %v1654, %v1742
    %v1744 = vpop.f32.mrb[0].mxu0
    %v1745 = vadd.f32 %v1656, %v1744
    %1746 = vmatprep.mubr.f32.mxu0 0.0
    %1747 = vmatmul.mubr.f32.gmra.mrb[0].mxu0 %v1573
    %v1748 = vpop.f32.mrb[0].mxu0
    %v1749 = vadd.f32 %v1660, %v1748
    %v1750 = vpop.f32.mrb[0].mxu0
    %v1751 = vadd.f32 %v1662, %v1750
    %1752 = vdwg.mxu0
    %v1753 = vld [vmem:[%s12] sm:$0xff]
    %v1754 = vld [vmem:[%s13] sm:$0xff]
    %v1755 = vld [vmem:[%s13 + $0x8] sm:$0xff]
    %v1756 = vld [vmem:[%s13 + $0x10] sm:$0xff]
    %v1757 = vld [vmem:[%s13 + $0x18] sm:$0xff]
    %1758 = vmatprep.subr.mxu0 %v906
    %1759 = vmatpush1.xpose.msra.mxu0 %v905
    %1760 = vmatprep.subr.mxu0 %v908
    %1761 = vmatpush1.xpose.msra.mxu0 %v907
    %1762 = vmatprep.subr.mxu0 %v910
    %1763 = vmatpush1.xpose.msra.mxu0 %v909
    %1764 = vmatprep.subr.mxu0 %v912
    %1765 = vmatpush1.xpose.msra.mxu0 %v911
    %1766 = vmatprep.subr.mxu0 0.0
    %1767 = vmatpush1.xpose.msra.mxu0 0.0
    %1768 = vmatprep.subr.mxu0 0.0
    %1769 = vmatpush1.xpose.msra.mxu0 0.0
    %1770 = vmatprep.subr.mxu0 0.0
    %1771 = vmatpush1.xpose.msra.mxu0 0.0
    %1772 = vmatprep.subr.mxu0 0.0
    %1773 = vmatpush1.xpose.msra.mxu0 0.0
    %1774 = vmatprep.subr.mxu0 0.0
    %1775 = vmatpush1.xpose.msra.mxu0 0.0
    %1776 = vmatprep.subr.mxu0 0.0
    %1777 = vmatpush1.xpose.msra.mxu0 0.0
    %1778 = vmatprep.subr.mxu0 0.0
    %1779 = vmatpush1.xpose.msra.mxu0 0.0
    %1780 = vmatprep.subr.mxu0 0.0
    %1781 = vmatpush1.xpose.msra.mxu0 0.0
    %1782 = vmatprep.subr.mxu0 0.0
    %1783 = vmatpush1.xpose.msra.mxu0 0.0
    %1784 = vmatprep.subr.mxu0 0.0
    %1785 = vmatpush1.xpose.msra.mxu0 0.0
    %1786 = vmatprep.subr.mxu0 0.0
    %1787 = vmatpush1.xpose.msra.mxu0 0.0
    %1788 = vmatprep.subr.mxu0 0.0
    %1789 = vmatpush1.xpose.msra.mxu0 0.0
    %1790 = vmatprep.subr.mxu0 0.0
    %1791 = vmatpush1.xpose.msra.mxu0 0.0
    %1792 = vmatprep.subr.mxu0 0.0
    %1793 = vmatpush1.xpose.msra.mxu0 0.0
    %1794 = vmatprep.subr.mxu0 0.0
    %1795 = vmatpush1.xpose.msra.mxu0 0.0
    %1796 = vmatprep.subr.mxu0 0.0
    %1797 = vmatpush1.xpose.msra.mxu0 0.0
    %1798 = vmatprep.subr.mxu0 0.0
    %1799 = vmatpush1.xpose.msra.mxu0 0.0
    %1800 = vmatprep.subr.mxu0 0.0
    %1801 = vmatpush1.xpose.msra.mxu0 0.0
    %1802 = vmatprep.subr.mxu0 0.0
    %1803 = vmatpush1.xpose.msra.mxu0 0.0
    %1804 = vmatprep.subr.mxu0 0.0
    %1805 = vmatpush1.xpose.msra.mxu0 0.0
    %1806 = vmatprep.subr.mxu0 0.0
    %1807 = vmatpush1.xpose.msra.mxu0 0.0
    %1808 = vmatprep.subr.mxu0 0.0
    %1809 = vmatpush1.xpose.msra.mxu0 0.0
    %1810 = vmatprep.subr.mxu0 0.0
    %1811 = vmatpush1.xpose.msra.mxu0 0.0
    %1812 = vmatprep.subr.mxu0 0.0
    %1813 = vmatpush1.xpose.msra.mxu0 0.0
    %1814 = vmatprep.subr.mxu0 0.0
    %1815 = vmatpush1.xpose.msra.mxu0 0.0
    %1816 = vmatprep.subr.mxu0 0.0
    %1817 = vmatpush1.xpose.msra.mxu0 0.0
    %1818 = vmatprep.subr.mxu0 0.0
    %1819 = vmatpush1.xpose.msra.mxu0 0.0
    %1820 = vmatprep.subr.mxu0 0.0
    %1821 = vmatpush1.xpose.msra.mxu0 0.0
    %1822 = vmatprep.mubr.f32.mxu0 1.0
    %1823 = vmatmul.mubr.f32.gmra.mrb[0].mxu0 1.0
    %v1824 = vpop.f32.mrb[0].mxu0
    %v1825 = vadd.f32 0.0, %v1824
    %v1826 = vpop.f32.mrb[0].mxu0
    %1827 = vdwg.mxu0
    %v1828 = vmul.f32 %v1825, 0.00390625
    %vm1829 = vcmask 253952
    %v1830 = vsel %vm1829, %v1828, -inf
    %1831 = vmax.xlane.f32.xlu0 %v1830
    %v1832 = vpop.xlane.xlu0 %1831
    %v1833 = vsub.f32 %v1828, %v1832
    %v1834 = vmul.f32 %v1833, 1.442695
    %v1835 = vpow.pop %v1834
    %v1837 = vsel %vm326, %v1835, 0
    %1839 = vmatprep.subr.mxu0 0.0
    %1840 = vmatpush1.msra.mxu0 %v1754
    %1841 = vmatprep.subr.mxu0 0.0
    %1842 = vmatpush1.msra.mxu0 %v1755
    %1843 = vmatprep.subr.mxu0 0.0
    %1844 = vmatpush1.msra.mxu0 %v1756
    %1845 = vmatprep.subr.mxu0 0.0
    %1846 = vmatpush1.msra.mxu0 %v1757
    %1847 = vmatprep.subr.mxu0 0.0
    %1848 = vmatpush1.msra.mxu0 0.0
    %1849 = vmatprep.subr.mxu0 0.0
    %1850 = vmatpush1.msra.mxu0 0.0
    %1851 = vmatprep.subr.mxu0 0.0
    %1852 = vmatpush1.msra.mxu0 0.0
    %1853 = vmatprep.subr.mxu0 0.0
    %1854 = vmatpush1.msra.mxu0 0.0
    %1855 = vmatprep.subr.mxu0 0.0
    %1856 = vmatpush1.msra.mxu0 0.0
    %1857 = vmatprep.subr.mxu0 0.0
    %1858 = vmatpush1.msra.mxu0 0.0
    %1859 = vmatprep.subr.mxu0 0.0
    %1860 = vmatpush1.msra.mxu0 0.0
    %1861 = vmatprep.subr.mxu0 0.0
    %1862 = vmatpush1.msra.mxu0 0.0
    %1863 = vmatprep.subr.mxu0 0.0
    %1864 = vmatpush1.msra.mxu0 0.0
    %1865 = vmatprep.subr.mxu0 0.0
    %1866 = vmatpush1.msra.mxu0 0.0
    %1867 = vmatprep.subr.mxu0 0.0
    %1868 = vmatpush1.msra.mxu0 0.0
    %1869 = vmatprep.subr.mxu0 0.0
    %1870 = vmatpush1.msra.mxu0 0.0
    %1871 = vmatprep.subr.mxu0 0.0
    %1872 = vmatpush1.msra.mxu0 0.0
    %1873 = vmatprep.subr.mxu0 0.0
    %1874 = vmatpush1.msra.mxu0 0.0
    %1875 = vmatprep.subr.mxu0 0.0
    %1876 = vmatpush1.msra.mxu0 0.0
    %1877 = vmatprep.subr.mxu0 0.0
    %1878 = vmatpush1.msra.mxu0 0.0
    %1879 = vmatprep.subr.mxu0 0.0
    %1880 = vmatpush1.msra.mxu0 0.0
    %1881 = vmatprep.subr.mxu0 0.0
    %1882 = vmatpush1.msra.mxu0 0.0
    %1883 = vmatprep.subr.mxu0 0.0
    %1884 = vmatpush1.msra.mxu0 0.0
    %1885 = vmatprep.subr.mxu0 0.0
    %1886 = vmatpush1.msra.mxu0 0.0
    %1887 = vmatprep.subr.mxu0 0.0
    %1888 = vmatpush1.msra.mxu0 0.0
    %1889 = vmatprep.subr.mxu0 0.0
    %1890 = vmatpush1.msra.mxu0 0.0
    %1891 = vmatprep.subr.mxu0 0.0
    %1892 = vmatpush1.msra.mxu0 0.0
    %1893 = vmatprep.subr.mxu0 0.0
    %1894 = vmatpush1.msra.mxu0 0.0
    %1895 = vmatprep.subr.mxu0 0.0
    %1896 = vmatpush1.msra.mxu0 0.0
    %1897 = vmatprep.subr.mxu0 0.0
    %1898 = vmatpush1.msra.mxu0 0.0
    %1899 = vmatprep.subr.mxu0 0.0
    %1900 = vmatpush1.msra.mxu0 0.0
    %1901 = vmatprep.subr.mxu0 0.0
    %1902 = vmatpush1.msra.mxu0 0.0
    %1903 = vmatprep.mubr.f32.mxu0 0.0
    %1904 = vmatmul.mubr.f32.gmra.mrb[0].mxu0 %v1837
    %v1905 = vpop.f32.mrb[0].mxu0
    %v1906 = vadd.f32 0.0, %v1905
    %v1907 = vpop.f32.mrb[0].mxu0
    %1908 = vdwg.mxu0
    %vm1909 = vcmask 64512
    %v1911 = vsel %vm1909, %v1906, 0
    %1913 = vmatprep.subr.mxu0 0.0
    %1914 = vmatpush1.msra.mxu0 %v1753
    %1915 = vmatprep.subr.mxu0 0.0
    %1916 = vmatpush1.msra.mxu0 0.0
    %1917 = vmatprep.subr.mxu0 0.0
    %1918 = vmatpush1.msra.mxu0 0.0
    %1919 = vmatprep.subr.mxu0 0.0
    %1920 = vmatpush1.msra.mxu0 0.0
    %1921 = vmatprep.subr.mxu0 0.0
    %1922 = vmatpush1.msra.mxu0 0.0
    %1923 = vmatprep.subr.mxu0 0.0
    %1924 = vmatpush1.msra.mxu0 0.0
    %1925 = vmatprep.subr.mxu0 0.0
    %1926 = vmatpush1.msra.mxu0 0.0
    %1927 = vmatprep.subr.mxu0 0.0
    %1928 = vmatpush1.msra.mxu0 0.0
    %1929 = vmatprep.subr.mxu0 0.0
    %1930 = vmatpush1.msra.mxu0 0.0
    %1931 = vmatprep.subr.mxu0 0.0
    %1932 = vmatpush1.msra.mxu0 0.0
    %1933 = vmatprep.subr.mxu0 0.0
    %1934 = vmatpush1.msra.mxu0 0.0
    %1935 = vmatprep.subr.mxu0 0.0
    %1936 = vmatpush1.msra.mxu0 0.0
    %1937 = vmatprep.subr.mxu0 0.0
    %1938 = vmatpush1.msra.mxu0 0.0
    %1939 = vmatprep.subr.mxu0 0.0
    %1940 = vmatpush1.msra.mxu0 0.0
    %1941 = vmatprep.subr.mxu0 0.0
    %1942 = vmatpush1.msra.mxu0 0.0
    %1943 = vmatprep.subr.mxu0 0.0
    %1944 = vmatpush1.msra.mxu0 0.0
    %1945 = vmatprep.subr.mxu0 0.0
    %1946 = vmatpush1.msra.mxu0 0.0
    %1947 = vmatprep.subr.mxu0 0.0
    %1948 = vmatpush1.msra.mxu0 0.0
    %1949 = vmatprep.subr.mxu0 0.0
    %1950 = vmatpush1.msra.mxu0 0.0
    %1951 = vmatprep.subr.mxu0 0.0
    %1952 = vmatpush1.msra.mxu0 0.0
    %1953 = vmatprep.subr.mxu0 0.0
    %1954 = vmatpush1.msra.mxu0 0.0
    %1955 = vmatprep.subr.mxu0 0.0
    %1956 = vmatpush1.msra.mxu0 0.0
    %1957 = vmatprep.subr.mxu0 0.0
    %1958 = vmatpush1.msra.mxu0 0.0
    %1959 = vmatprep.subr.mxu0 0.0
    %1960 = vmatpush1.msra.mxu0 0.0
    %1961 = vmatprep.subr.mxu0 0.0
    %1962 = vmatpush1.msra.mxu0 0.0
    %1963 = vmatprep.subr.mxu0 0.0
    %1964 = vmatpush1.msra.mxu0 0.0
    %1965 = vmatprep.subr.mxu0 0.0
    %1966 = vmatpush1.msra.mxu0 0.0
    %1967 = vmatprep.subr.mxu0 0.0
    %1968 = vmatpush1.msra.mxu0 0.0
    %1969 = vmatprep.subr.mxu0 0.0
    %1970 = vmatpush1.msra.mxu0 0.0
    %1971 = vmatprep.subr.mxu0 0.0
    %1972 = vmatpush1.msra.mxu0 0.0
    %1973 = vmatprep.subr.mxu0 0.0
    %1974 = vmatpush1.msra.mxu0 0.0
    %1975 = vmatprep.subr.mxu0 0.0
    %1976 = vmatpush1.msra.mxu0 0.0
    %1977 = vmatprep.mubr.f32.mxu0 0.0
    %1978 = vmatmul.mubr.f32.gmra.mrb[0].mxu0 %v1911
    %v1979 = vpop.f32.mrb[0].mxu0
    %v1980 = vadd.f32 0.0, %v1979
    %v1981 = vpop.f32.mrb[0].mxu0
    %1982 = vdwg.mxu0
    %v1983 = vrcp.pop %v1980
    %v1984 = vmul.f32 %v1835, %v1983
    %1985 = vmatprep.subr.mxu0 %v1733
    %1986 = vmatpush1.xpose.msra.mxu0 %v1731
    %1987 = vmatprep.subr.mxu0 %v1739
    %1988 = vmatpush1.xpose.msra.mxu0 %v1737
    %1989 = vmatprep.subr.mxu0 %v1745
    %1990 = vmatpush1.xpose.msra.mxu0 %v1743
    %1991 = vmatprep.subr.mxu0 %v1751
    %1992 = vmatpush1.xpose.msra.mxu0 %v1749
    %1993 = vmatprep.subr.mxu0 0.0
    %1994 = vmatpush1.xpose.msra.mxu0 0.0
    %1995 = vmatprep.subr.mxu0 0.0
    %1996 = vmatpush1.xpose.msra.mxu0 0.0
    %1997 = vmatprep.subr.mxu0 0.0
    %1998 = vmatpush1.xpose.msra.mxu0 0.0
    %1999 = vmatprep.subr.mxu0 0.0
    %2000 = vmatpush1.xpose.msra.mxu0 0.0
    %2001 = vmatprep.subr.mxu0 0.0
    %2002 = vmatpush1.xpose.msra.mxu0 0.0
    %2003 = vmatprep.subr.mxu0 0.0
    %2004 = vmatpush1.xpose.msra.mxu0 0.0
    %2005 = vmatprep.subr.mxu0 0.0
    %2006 = vmatpush1.xpose.msra.mxu0 0.0
    %2007 = vmatprep.subr.mxu0 0.0
    %2008 = vmatpush1.xpose.msra.mxu0 0.0
    %2009 = vmatprep.subr.mxu0 0.0
    %2010 = vmatpush1.xpose.msra.mxu0 0.0
    %2011 = vmatprep.subr.mxu0 0.0
    %2012 = vmatpush1.xpose.msra.mxu0 0.0
    %2013 = vmatprep.subr.mxu0 0.0
    %2014 = vmatpush1.xpose.msra.mxu0 0.0
    %2015 = vmatprep.subr.mxu0 0.0
    %2016 = vmatpush1.xpose.msra.mxu0 0.0
    %2017 = vmatprep.subr.mxu0 0.0
    %2018 = vmatpush1.xpose.msra.mxu0 0.0
    %2019 = vmatprep.subr.mxu0 0.0
    %2020 = vmatpush1.xpose.msra.mxu0 0.0
    %2021 = vmatprep.subr.mxu0 0.0
    %2022 = vmatpush1.xpose.msra.mxu0 0.0
    %2023 = vmatprep.subr.mxu0 0.0
    %2024 = vmatpush1.xpose.msra.mxu0 0.0
    %2025 = vmatprep.subr.mxu0 0.0
    %2026 = vmatpush1.xpose.msra.mxu0 0.0
    %2027 = vmatprep.subr.mxu0 0.0
    %2028 = vmatpush1.xpose.msra.mxu0 0.0
    %2029 = vmatprep.subr.mxu0 0.0
    %2030 = vmatpush1.xpose.msra.mxu0 0.0
    %2031 = vmatprep.subr.mxu0 0.0
    %2032 = vmatpush1.xpose.msra.mxu0 0.0
    %2033 = vmatprep.subr.mxu0 0.0
    %2034 = vmatpush1.xpose.msra.mxu0 0.0
    %2035 = vmatprep.subr.mxu0 0.0
    %2036 = vmatpush1.xpose.msra.mxu0 0.0
    %2037 = vmatprep.subr.mxu0 0.0
    %2038 = vmatpush1.xpose.msra.mxu0 0.0
    %2039 = vmatprep.subr.mxu0 0.0
    %2040 = vmatpush1.xpose.msra.mxu0 0.0
    %2041 = vmatprep.subr.mxu0 0.0
    %2042 = vmatpush1.xpose.msra.mxu0 0.0
    %2043 = vmatprep.subr.mxu0 0.0
    %2044 = vmatpush1.xpose.msra.mxu0 0.0
    %2045 = vmatprep.subr.mxu0 0.0
    %2046 = vmatpush1.xpose.msra.mxu0 0.0
    %2047 = vmatprep.subr.mxu0 0.0
    %2048 = vmatpush1.xpose.msra.mxu0 0.0
    %2049 = vmatprep.mubr.f32.mxu0 1.0
    %2050 = vmatmul.mubr.f32.gmra.mrb[0].mxu0 1.0
    %v2051 = vpop.f32.mrb[0].mxu0
    %v2052 = vadd.f32 0.0, %v2051
    %v2053 = vpop.f32.mrb[0].mxu0
    %2054 = vdwg.mxu0
    %v2055 = vmul.f32 %v2052, 0.00390625
    %v2056 = vsel %vm1829, %v2055, -inf
    %2057 = vmax.xlane.f32.xlu0 %v2056
    %v2058 = vpop.xlane.xlu0 %2057
    %v2059 = vsub.f32 %v2055, %v2058
    %v2060 = vmul.f32 %v2059, 1.442695
    %v2061 = vpow.pop %v2060
    %v2063 = vsel %vm326, %v2061, 0
    %2065 = vmatprep.subr.mxu0 0.0
    %2066 = vmatpush1.msra.mxu0 %v1754
    %2067 = vmatprep.subr.mxu0 0.0
    %2068 = vmatpush1.msra.mxu0 %v1755
    %2069 = vmatprep.subr.mxu0 0.0
    %2070 = vmatpush1.msra.mxu0 %v1756
    %2071 = vmatprep.subr.mxu0 0.0
    %2072 = vmatpush1.msra.mxu0 %v1757
    %2073 = vmatprep.subr.mxu0 0.0
    %2074 = vmatpush1.msra.mxu0 0.0
    %2075 = vmatprep.subr.mxu0 0.0
    %2076 = vmatpush1.msra.mxu0 0.0
    %2077 = vmatprep.subr.mxu0 0.0
    %2078 = vmatpush1.msra.mxu0 0.0
    %2079 = vmatprep.subr.mxu0 0.0
    %2080 = vmatpush1.msra.mxu0 0.0
    %2081 = vmatprep.subr.mxu0 0.0
    %2082 = vmatpush1.msra.mxu0 0.0
    %2083 = vmatprep.subr.mxu0 0.0
    %2084 = vmatpush1.msra.mxu0 0.0
    %2085 = vmatprep.subr.mxu0 0.0
    %2086 = vmatpush1.msra.mxu0 0.0
    %2087 = vmatprep.subr.mxu0 0.0
    %2088 = vmatpush1.msra.mxu0 0.0
    %2089 = vmatprep.subr.mxu0 0.0
    %2090 = vmatpush1.msra.mxu0 0.0
    %2091 = vmatprep.subr.mxu0 0.0
    %2092 = vmatpush1.msra.mxu0 0.0
    %2093 = vmatprep.subr.mxu0 0.0
    %2094 = vmatpush1.msra.mxu0 0.0
    %2095 = vmatprep.subr.mxu0 0.0
    %2096 = vmatpush1.msra.mxu0 0.0
    %2097 = vmatprep.subr.mxu0 0.0
    %2098 = vmatpush1.msra.mxu0 0.0
    %2099 = vmatprep.subr.mxu0 0.0
    %2100 = vmatpush1.msra.mxu0 0.0
    %2101 = vmatprep.subr.mxu0 0.0
    %2102 = vmatpush1.msra.mxu0 0.0
    %2103 = vmatprep.subr.mxu0 0.0
    %2104 = vmatpush1.msra.mxu0 0.0
    %2105 = vmatprep.subr.mxu0 0.0
    %2106 = vmatpush1.msra.mxu0 0.0
    %2107 = vmatprep.subr.mxu0 0.0
    %2108 = vmatpush1.msra.mxu0 0.0
    %2109 = vmatprep.subr.mxu0 0.0
    %2110 = vmatpush1.msra.mxu0 0.0
    %2111 = vmatprep.subr.mxu0 0.0
    %2112 = vmatpush1.msra.mxu0 0.0
    %2113 = vmatprep.subr.mxu0 0.0
    %2114 = vmatpush1.msra.mxu0 0.0
    %2115 = vmatprep.subr.mxu0 0.0
    %2116 = vmatpush1.msra.mxu0 0.0
    %2117 = vmatprep.subr.mxu0 0.0
    %2118 = vmatpush1.msra.mxu0 0.0
    %2119 = vmatprep.subr.mxu0 0.0
    %2120 = vmatpush1.msra.mxu0 0.0
    %2121 = vmatprep.subr.mxu0 0.0
    %2122 = vmatpush1.msra.mxu0 0.0
    %2123 = vmatprep.subr.mxu0 0.0
    %2124 = vmatpush1.msra.mxu0 0.0
    %2125 = vmatprep.subr.mxu0 0.0
    %2126 = vmatpush1.msra.mxu0 0.0
    %2127 = vmatprep.subr.mxu0 0.0
    %2128 = vmatpush1.msra.mxu0 0.0
    %2129 = vmatprep.mubr.f32.mxu0 0.0
    %2130 = vmatmul.mubr.f32.gmra.mrb[0].mxu0 %v2063
    %v2131 = vpop.f32.mrb[0].mxu0
    %v2132 = vadd.f32 0.0, %v2131
    %v2133 = vpop.f32.mrb[0].mxu0
    %2134 = vdwg.mxu0
    %v2136 = vsel %vm1909, %v2132, 0
    %2138 = vmatprep.subr.mxu0 0.0
    %2139 = vmatpush1.msra.mxu0 %v1753
    %2140 = vmatprep.subr.mxu0 0.0
    %2141 = vmatpush1.msra.mxu0 0.0
    %2142 = vmatprep.subr.mxu0 0.0
    %2143 = vmatpush1.msra.mxu0 0.0
    %2144 = vmatprep.subr.mxu0 0.0
    %2145 = vmatpush1.msra.mxu0 0.0
    %2146 = vmatprep.subr.mxu0 0.0
    %2147 = vmatpush1.msra.mxu0 0.0
    %2148 = vmatprep.subr.mxu0 0.0
    %2149 = vmatpush1.msra.mxu0 0.0
    %2150 = vmatprep.subr.mxu0 0.0
    %2151 = vmatpush1.msra.mxu0 0.0
    %2152 = vmatprep.subr.mxu0 0.0
    %2153 = vmatpush1.msra.mxu0 0.0
    %2154 = vmatprep.subr.mxu0 0.0
    %2155 = vmatpush1.msra.mxu0 0.0
    %2156 = vmatprep.subr.mxu0 0.0
    %2157 = vmatpush1.msra.mxu0 0.0
    %2158 = vmatprep.subr.mxu0 0.0
    %2159 = vmatpush1.msra.mxu0 0.0
    %2160 = vmatprep.subr.mxu0 0.0
    %2161 = vmatpush1.msra.mxu0 0.0
    %2162 = vmatprep.subr.mxu0 0.0
    %2163 = vmatpush1.msra.mxu0 0.0
    %2164 = vmatprep.subr.mxu0 0.0
    %2165 = vmatpush1.msra.mxu0 0.0
    %2166 = vmatprep.subr.mxu0 0.0
    %2167 = vmatpush1.msra.mxu0 0.0
    %2168 = vmatprep.subr.mxu0 0.0
    %2169 = vmatpush1.msra.mxu0 0.0
    %2170 = vmatprep.subr.mxu0 0.0
    %2171 = vmatpush1.msra.mxu0 0.0
    %2172 = vmatprep.subr.mxu0 0.0
    %2173 = vmatpush1.msra.mxu0 0.0
    %2174 = vmatprep.subr.mxu0 0.0
    %2175 = vmatpush1.msra.mxu0 0.0
    %2176 = vmatprep.subr.mxu0 0.0
    %2177 = vmatpush1.msra.mxu0 0.0
    %2178 = vmatprep.subr.mxu0 0.0
    %2179 = vmatpush1.msra.mxu0 0.0
    %2180 = vmatprep.subr.mxu0 0.0
    %2181 = vmatpush1.msra.mxu0 0.0
    %2182 = vmatprep.subr.mxu0 0.0
    %2183 = vmatpush1.msra.mxu0 0.0
    %2184 = vmatprep.subr.mxu0 0.0
    %2185 = vmatpush1.msra.mxu0 0.0
    %2186 = vmatprep.subr.mxu0 0.0
    %2187 = vmatpush1.msra.mxu0 0.0
    %2188 = vmatprep.subr.mxu0 0.0
    %2189 = vmatpush1.msra.mxu0 0.0
    %2190 = vmatprep.subr.mxu0 0.0
    %2191 = vmatpush1.msra.mxu0 0.0
    %2192 = vmatprep.subr.mxu0 0.0
    %2193 = vmatpush1.msra.mxu0 0.0
    %2194 = vmatprep.subr.mxu0 0.0
    %2195 = vmatpush1.msra.mxu0 0.0
    %2196 = vmatprep.subr.mxu0 0.0
    %2197 = vmatpush1.msra.mxu0 0.0
    %2198 = vmatprep.subr.mxu0 0.0
    %2199 = vmatpush1.msra.mxu0 0.0
    %2200 = vmatprep.subr.mxu0 0.0
    %2201 = vmatpush1.msra.mxu0 0.0
    %2202 = vmatprep.mubr.f32.mxu0 0.0
    %2203 = vmatmul.mubr.f32.gmra.mrb[0].mxu0 %v2136
    %v2204 = vpop.f32.mrb[0].mxu0
    %v2205 = vadd.f32 0.0, %v2204
    %v2206 = vpop.f32.mrb[0].mxu0
    %2207 = vdwg.mxu0
    %v2208 = vrcp.pop %v2205
    %v2209 = vmul.f32 %v2061, %v2208
    %v2210 = vlaneseq
    %v2211 = vshrl.u32 %v2210, 7
    %v2212 = vsub.s32 0, %v2211
    %v2213 = vrot.slane %v1984, %v2212
    %v2214 = vmul.f32 %v2213, %v1753
    %v2215 = vlaneseq
    %v2216 = vshrl.u32 %v2215, 7
    %v2217 = vsub.s32 0, %v2216
    %v2218 = vrot.slane %v2209, %v2217
    %v2219 = vmul.f32 %v2218, %v1753
    %v2221 = vsel %vm326, %v2219, 0
    %2223 = vmatprep.subr.mxu0 %v906
    %2224 = vmatpush1.msra.mxu0 %v905
    %2225 = vmatprep.subr.mxu0 %v908
    %2226 = vmatpush1.msra.mxu0 %v907
    %2227 = vmatprep.subr.mxu0 %v910
    %2228 = vmatpush1.msra.mxu0 %v909
    %2229 = vmatprep.subr.mxu0 %v912
    %2230 = vmatpush1.msra.mxu0 %v911
    %2231 = vmatprep.subr.mxu0 0.0
    %2232 = vmatpush1.msra.mxu0 0.0
    %2233 = vmatprep.subr.mxu0 0.0
    %2234 = vmatpush1.msra.mxu0 0.0
    %2235 = vmatprep.subr.mxu0 0.0
    %2236 = vmatpush1.msra.mxu0 0.0
    %2237 = vmatprep.subr.mxu0 0.0
    %2238 = vmatpush1.msra.mxu0 0.0
    %2239 = vmatprep.subr.mxu0 0.0
    %2240 = vmatpush1.msra.mxu0 0.0
    %2241 = vmatprep.subr.mxu0 0.0
    %2242 = vmatpush1.msra.mxu0 0.0
    %2243 = vmatprep.subr.mxu0 0.0
    %2244 = vmatpush1.msra.mxu0 0.0
    %2245 = vmatprep.subr.mxu0 0.0
    %2246 = vmatpush1.msra.mxu0 0.0
    %2247 = vmatprep.subr.mxu0 0.0
    %2248 = vmatpush1.msra.mxu0 0.0
    %2249 = vmatprep.subr.mxu0 0.0
    %2250 = vmatpush1.msra.mxu0 0.0
    %2251 = vmatprep.subr.mxu0 0.0
    %2252 = vmatpush1.msra.mxu0 0.0
    %2253 = vmatprep.subr.mxu0 0.0
    %2254 = vmatpush1.msra.mxu0 0.0
    %2255 = vmatprep.subr.mxu0 0.0
    %2256 = vmatpush1.msra.mxu0 0.0
    %2257 = vmatprep.subr.mxu0 0.0
    %2258 = vmatpush1.msra.mxu0 0.0
    %2259 = vmatprep.subr.mxu0 0.0
    %2260 = vmatpush1.msra.mxu0 0.0
    %2261 = vmatprep.subr.mxu0 0.0
    %2262 = vmatpush1.msra.mxu0 0.0
    %2263 = vmatprep.subr.mxu0 0.0
    %2264 = vmatpush1.msra.mxu0 0.0
    %2265 = vmatprep.subr.mxu0 0.0
    %2266 = vmatpush1.msra.mxu0 0.0
    %2267 = vmatprep.subr.mxu0 0.0
    %2268 = vmatpush1.msra.mxu0 0.0
    %2269 = vmatprep.subr.mxu0 0.0
    %2270 = vmatpush1.msra.mxu0 0.0
    %2271 = vmatprep.subr.mxu0 0.0
    %2272 = vmatpush1.msra.mxu0 0.0
    %2273 = vmatprep.subr.mxu0 0.0
    %2274 = vmatpush1.msra.mxu0 0.0
    %2275 = vmatprep.subr.mxu0 0.0
    %2276 = vmatpush1.msra.mxu0 0.0
    %2277 = vmatprep.subr.mxu0 0.0
    %2278 = vmatpush1.msra.mxu0 0.0
    %2279 = vmatprep.subr.mxu0 0.0
    %2280 = vmatpush1.msra.mxu0 0.0
    %2281 = vmatprep.subr.mxu0 0.0
    %2282 = vmatpush1.msra.mxu0 0.0
    %2283 = vmatprep.subr.mxu0 0.0
    %2284 = vmatpush1.msra.mxu0 0.0
    %2285 = vmatprep.subr.mxu0 0.0
    %2286 = vmatpush1.msra.mxu0 0.0
    %2287 = vmatprep.mubr.f32.mxu0 0.0
    %2288 = vmatmul.mubr.f32.gmra.mrb[0].mxu0 %v2221
    %v2289 = vpop.f32.mrb[0].mxu0
    %v2290 = vadd.f32 0.0, %v2289
    %v2291 = vpop.f32.mrb[0].mxu0
    %v2292 = vadd.f32 0.0, %v2291
    %2293 = vdwg.mxu0
    %v2295 = vsel %vm326, %v2214, 0
    %2297 = vmatprep.subr.mxu0 %v1733
    %2298 = vmatpush1.msra.mxu0 %v1731
    %2299 = vmatprep.subr.mxu0 %v1739
    %2300 = vmatpush1.msra.mxu0 %v1737
    %2301 = vmatprep.subr.mxu0 %v1745
    %2302 = vmatpush1.msra.mxu0 %v1743
    %2303 = vmatprep.subr.mxu0 %v1751
    %2304 = vmatpush1.msra.mxu0 %v1749
    %2305 = vmatprep.subr.mxu0 0.0
    %2306 = vmatpush1.msra.mxu0 0.0
    %2307 = vmatprep.subr.mxu0 0.0
    %2308 = vmatpush1.msra.mxu0 0.0
    %2309 = vmatprep.subr.mxu0 0.0
    %2310 = vmatpush1.msra.mxu0 0.0
    %2311 = vmatprep.subr.mxu0 0.0
    %2312 = vmatpush1.msra.mxu0 0.0
    %2313 = vmatprep.subr.mxu0 0.0
    %2314 = vmatpush1.msra.mxu0 0.0
    %2315 = vmatprep.subr.mxu0 0.0
    %2316 = vmatpush1.msra.mxu0 0.0
    %2317 = vmatprep.subr.mxu0 0.0
    %2318 = vmatpush1.msra.mxu0 0.0
    %2319 = vmatprep.subr.mxu0 0.0
    %2320 = vmatpush1.msra.mxu0 0.0
    %2321 = vmatprep.subr.mxu0 0.0
    %2322 = vmatpush1.msra.mxu0 0.0
    %2323 = vmatprep.subr.mxu0 0.0
    %2324 = vmatpush1.msra.mxu0 0.0
    %2325 = vmatprep.subr.mxu0 0.0
    %2326 = vmatpush1.msra.mxu0 0.0
    %2327 = vmatprep.subr.mxu0 0.0
    %2328 = vmatpush1.msra.mxu0 0.0
    %2329 = vmatprep.subr.mxu0 0.0
    %2330 = vmatpush1.msra.mxu0 0.0
    %2331 = vmatprep.subr.mxu0 0.0
    %2332 = vmatpush1.msra.mxu0 0.0
    %2333 = vmatprep.subr.mxu0 0.0
    %2334 = vmatpush1.msra.mxu0 0.0
    %2335 = vmatprep.subr.mxu0 0.0
    %2336 = vmatpush1.msra.mxu0 0.0
    %2337 = vmatprep.subr.mxu0 0.0
    %2338 = vmatpush1.msra.mxu0 0.0
    %2339 = vmatprep.subr.mxu0 0.0
    %2340 = vmatpush1.msra.mxu0 0.0
    %2341 = vmatprep.subr.mxu0 0.0
    %2342 = vmatpush1.msra.mxu0 0.0
    %2343 = vmatprep.subr.mxu0 0.0
    %2344 = vmatpush1.msra.mxu0 0.0
    %2345 = vmatprep.subr.mxu0 0.0
    %2346 = vmatpush1.msra.mxu0 0.0
    %2347 = vmatprep.subr.mxu0 0.0
    %2348 = vmatpush1.msra.mxu0 0.0
    %2349 = vmatprep.subr.mxu0 0.0
    %2350 = vmatpush1.msra.mxu0 0.0
    %2351 = vmatprep.subr.mxu0 0.0
    %2352 = vmatpush1.msra.mxu0 0.0
    %2353 = vmatprep.subr.mxu0 0.0
    %2354 = vmatpush1.msra.mxu0 0.0
    %2355 = vmatprep.subr.mxu0 0.0
    %2356 = vmatpush1.msra.mxu0 0.0
    %2357 = vmatprep.subr.mxu0 0.0
    %2358 = vmatpush1.msra.mxu0 0.0
    %2359 = vmatprep.subr.mxu0 0.0
    %2360 = vmatpush1.msra.mxu0 0.0
    %2361 = vmatprep.mubr.f32.mxu0 0.0
    %2362 = vmatmul.mubr.f32.gmra.mrb[0].mxu0 %v2295
    %v2363 = vpop.f32.mrb[0].mxu0
    %v2364 = vadd.f32 %v2290, %v2363
    %v2365 = vpop.f32.mrb[0].mxu0
    %v2366 = vadd.f32 %v2292, %v2365
    %2367 = vdwg.mxu0
    %v2369 = vsel %vm1909, %v1754, 0
    %v2372 = vsel %vm1909, %v1755, 0
    %v2375 = vsel %vm1909, %v1756, 0
    %v2378 = vsel %vm1909, %v1757, 0
    %2380 = vmatprep.subr.mxu0 %v2366
    %2381 = vmatpush1.msra.mxu0 %v2364
    %2382 = vmatprep.subr.mxu0 0.0
    %2383 = vmatpush1.msra.mxu0 0.0
    %2384 = vmatprep.subr.mxu0 0.0
    %2385 = vmatpush1.msra.mxu0 0.0
    %2386 = vmatprep.subr.mxu0 0.0
    %2387 = vmatpush1.msra.mxu0 0.0
    %2388 = vmatprep.subr.mxu0 0.0
    %2389 = vmatpush1.msra.mxu0 0.0
    %2390 = vmatprep.subr.mxu0 0.0
    %2391 = vmatpush1.msra.mxu0 0.0
    %2392 = vmatprep.subr.mxu0 0.0
    %2393 = vmatpush1.msra.mxu0 0.0
    %2394 = vmatprep.subr.mxu0 0.0
    %2395 = vmatpush1.msra.mxu0 0.0
    %2396 = vmatprep.subr.mxu0 0.0
    %2397 = vmatpush1.msra.mxu0 0.0
    %2398 = vmatprep.subr.mxu0 0.0
    %2399 = vmatpush1.msra.mxu0 0.0
    %2400 = vmatprep.subr.mxu0 0.0
    %2401 = vmatpush1.msra.mxu0 0.0
    %2402 = vmatprep.subr.mxu0 0.0
    %2403 = vmatpush1.msra.mxu0 0.0
    %2404 = vmatprep.subr.mxu0 0.0
    %2405 = vmatpush1.msra.mxu0 0.0
    %2406 = vmatprep.subr.mxu0 0.0
    %2407 = vmatpush1.msra.mxu0 0.0
    %2408 = vmatprep.subr.mxu0 0.0
    %2409 = vmatpush1.msra.mxu0 0.0
    %2410 = vmatprep.subr.mxu0 0.0
    %2411 = vmatpush1.msra.mxu0 0.0
    %2412 = vmatprep.subr.mxu0 0.0
    %2413 = vmatpush1.msra.mxu0 0.0
    %2414 = vmatprep.subr.mxu0 0.0
    %2415 = vmatpush1.msra.mxu0 0.0
    %2416 = vmatprep.subr.mxu0 0.0
    %2417 = vmatpush1.msra.mxu0 0.0
    %2418 = vmatprep.subr.mxu0 0.0
    %2419 = vmatpush1.msra.mxu0 0.0
    %2420 = vmatprep.subr.mxu0 0.0
    %2421 = vmatpush1.msra.mxu0 0.0
    %2422 = vmatprep.subr.mxu0 0.0
    %2423 = vmatpush1.msra.mxu0 0.0
    %2424 = vmatprep.subr.mxu0 0.0
    %2425 = vmatpush1.msra.mxu0 0.0
    %2426 = vmatprep.subr.mxu0 0.0
    %2427 = vmatpush1.msra.mxu0 0.0
    %2428 = vmatprep.subr.mxu0 0.0
    %2429 = vmatpush1.msra.mxu0 0.0
    %2430 = vmatprep.subr.mxu0 0.0
    %2431 = vmatpush1.msra.mxu0 0.0
    %2432 = vmatprep.subr.mxu0 0.0
    %2433 = vmatpush1.msra.mxu0 0.0
    %2434 = vmatprep.subr.mxu0 0.0
    %2435 = vmatpush1.msra.mxu0 0.0
    %2436 = vmatprep.subr.mxu0 0.0
    %2437 = vmatpush1.msra.mxu0 0.0
    %2438 = vmatprep.subr.mxu0 0.0
    %2439 = vmatpush1.msra.mxu0 0.0
    %2440 = vmatprep.subr.mxu0 0.0
    %2441 = vmatpush1.msra.mxu0 0.0
    %2442 = vmatprep.subr.mxu0 0.0
    %2443 = vmatpush1.msra.mxu0 0.0
    %2444 = vmatprep.mubr.f32.mxu0 0.0
    %2445 = vmatmul.mubr.f32.gmra.mrb[0].mxu0 %v2369
    %v2446 = vpop.f32.mrb[0].mxu0
    %v2447 = vadd.f32 0.0, %v2446
    %v2448 = vpop.f32.mrb[0].mxu0
    %v2449 = vadd.f32 0.0, %v2448
    %2450 = vmatprep.mubr.f32.mxu0 0.0
    %2451 = vmatmul.mubr.f32.gmra.mrb[0].mxu0 %v2372
    %v2452 = vpop.f32.mrb[0].mxu0
    %v2453 = vadd.f32 0.0, %v2452
    %v2454 = vpop.f32.mrb[0].mxu0
    %v2455 = vadd.f32 0.0, %v2454
    %2456 = vmatprep.mubr.f32.mxu0 0.0
    %2457 = vmatmul.mubr.f32.gmra.mrb[0].mxu0 %v2375
    %v2458 = vpop.f32.mrb[0].mxu0
    %v2459 = vadd.f32 0.0, %v2458
    %v2460 = vpop.f32.mrb[0].mxu0
    %v2461 = vadd.f32 0.0, %v2460
    %2462 = vmatprep.mubr.f32.mxu0 0.0
    %2463 = vmatmul.mubr.f32.gmra.mrb[0].mxu0 %v2378
    %v2464 = vpop.f32.mrb[0].mxu0
    %v2465 = vadd.f32 0.0, %v2464
    %v2466 = vpop.f32.mrb[0].mxu0
    %v2467 = vadd.f32 0.0, %v2466
    %2468 = vdwg.mxu0
    %v2469 = vxor.u32 %v2447, 2147483648
    %v2470 = vxor.u32 %v2449, 2147483648
    %v2471 = vxor.u32 %v2453, 2147483648
    %v2472 = vxor.u32 %v2455, 2147483648
    %v2473 = vxor.u32 %v2459, 2147483648
    %v2474 = vxor.u32 %v2461, 2147483648
    %v2475 = vxor.u32 %v2465, 2147483648
    %v2476 = vxor.u32 %v2467, 2147483648
    %v2477 = vmul.f32 %v2469, 1.442695
    %v2478 = vpow.pop %v2477
    %v2479 = vmul.f32 %v2470, 1.442695
    %v2480 = vpow.pop %v2479
    %v2481 = vmul.f32 %v2471, 1.442695
    %v2482 = vpow.pop %v2481
    %v2483 = vmul.f32 %v2472, 1.442695
    %v2484 = vpow.pop %v2483
    %v2485 = vmul.f32 %v2473, 1.442695
    %v2486 = vpow.pop %v2485
    %v2487 = vmul.f32 %v2474, 1.442695
    %v2488 = vpow.pop %v2487
    %v2489 = vmul.f32 %v2475, 1.442695
    %v2490 = vpow.pop %v2489
    %v2491 = vmul.f32 %v2476, 1.442695
    %v2492 = vpow.pop %v2491
    %v2493 = vadd.f32 %v2478, 1.0
    %v2494 = vadd.f32 %v2480, 1.0
    %v2495 = vadd.f32 %v2482, 1.0
    %v2496 = vadd.f32 %v2484, 1.0
    %v2497 = vadd.f32 %v2486, 1.0
    %v2498 = vadd.f32 %v2488, 1.0
    %v2499 = vadd.f32 %v2490, 1.0
    %v2500 = vadd.f32 %v2492, 1.0
    %v2501 = vrcp.pop %v2493
    %v2502 = vmul.f32 1.0, %v2501
    %v2503 = vrcp.pop %v2494
    %v2504 = vmul.f32 1.0, %v2503
    %v2505 = vrcp.pop %v2495
    %v2506 = vmul.f32 1.0, %v2505
    %v2507 = vrcp.pop %v2496
    %v2508 = vmul.f32 1.0, %v2507
    %v2509 = vrcp.pop %v2497
    %v2510 = vmul.f32 1.0, %v2509
    %v2511 = vrcp.pop %v2498
    %v2512 = vmul.f32 1.0, %v2511
    %v2513 = vrcp.pop %v2499
    %v2514 = vmul.f32 1.0, %v2513
    %v2515 = vrcp.pop %v2500
    %v2516 = vmul.f32 1.0, %v2515
    %v2517 = vmul.f32 %v48, %v2502
    %v2518 = vmul.f32 %v49, %v2504
    %v2519 = vmul.f32 %v50, %v2506
    %v2520 = vmul.f32 %v51, %v2508
    %v2521 = vmul.f32 %v52, %v2510
    %v2522 = vmul.f32 %v53, %v2512
    %v2523 = vmul.f32 %v54, %v2514
    %v2524 = vmul.f32 %v55, %v2516
    %2525 = vst [vmem:[#allocation3] sm:$0xff] %v2517
    %2526 = vst [vmem:[#allocation3 + $0x8] sm:$0xff] %v2518
    %2527 = vst [vmem:[#allocation3 + $0x10] sm:$0xff] %v2519
    %2528 = vst [vmem:[#allocation3 + $0x18] sm:$0xff] %v2520
    %2529 = vst [vmem:[#allocation3 + $0x20] sm:$0xff] %v2521
    %2530 = vst [vmem:[#allocation3 + $0x28] sm:$0xff] %v2522
    %2531 = vst [vmem:[#allocation3 + $0x30] sm:$0xff] %v2523
    %2532 = vst [vmem:[#allocation3 + $0x38] sm:$0xff] %v2524
    // Predicated region
    $region58: #{tpu_custom_call.1} parent=1 // pred_check
      _
    $region59: #{tpu_custom_call.1} parent=1 // pred_check_branch
      %2534 = sbr.rel (0) target = $region61
    $region60: #{tpu_custom_call.1} parent=1 // pred_region
      %s2536 = ssub.s32 1024, 1024
      %2537 = vsyncadd [#allocation4], %s2536
      %s2538 = sshll.u32 [#allocation3], 4
      %s2539 = int_to_ptr.vmem [resolvable:$true] %s2538
      %2544 = dma.vmem_to_hbm [thread:$0]  %s2539, 1024, %s14, [#allocation4], 256, 256, 16
    $region61: #{tpu_custom_call.1} parent=1 // pred_fallthru
      _
    // Predicated region
    $region62: #{tpu_custom_call.1} parent=1 // pred_check
      _
    $region63: #{tpu_custom_call.1} parent=1 // pred_check_branch
      %2546 = sbr.rel (0) target = $region65
    $region64: #{tpu_custom_call.1} parent=1 // pred_region
      %2547 = dma.done [#allocation4], 1024
    $region65: #{tpu_custom_call.1} parent=1 // pred_fallthru
      _
    %2548 = vsyncpa [#allocation4], 1

</llo_original>
